<compile_context>
chip_gen: v6e
topology: v6e:2x2x1
jax: 0.10.0
libtpu: 0.0.40
codegen_flags: <defaults>
</compile_context>

<pallas_src>
import jax
import jax.numpy as jnp
from jax import lax
from jax.experimental import pallas as pl
from jax.experimental.pallas import tpu as pltpu

# ----------------------------------------------------------------------------
# Layout constants (28x28 input so that flatten -> 9216 = 64 * 12 * 12).
# ----------------------------------------------------------------------------
H_IN, W_IN = 28, 28
H1, W1P = 26, 32          # conv1 out rows; row width padded 26 -> 32
H2, W2P = 24, 32          # conv2 out rows; row width padded 24 -> 32
M1 = H1 * W1P             # 832  packed conv1 rows per image
M2 = H2 * W2P             # 768  conv2 rows per image
MP = 728                  # pooled/fc working rows (mult. of 8, covers anchor 726)
C_PAD = 128               # lane-dense channel padding / full MXU N
K1 = 16                   # packed conv1 taps: 3x5 window = 15, padded to 16
TM1 = 208                 # conv1 M tile (4 tiles / image)
TM2 = 256                 # conv2 M tile (3 tiles / image), acc lives in vregs
TEP = 104                 # epilogue row chunk (7 chunks)
XW = 36                   # padded input width (needs w + ww <= 35)


# ----------------------------------------------------------------------------
# Fused kernel: conv1 (packed) -> conv2 (3 packed-K matmuls) -> pool -> fc.
# One grid step processes IMG_BLK images.
#   pp_ref : (IMG_BLK, 832, 16) bf16   packed im2col patches (3x5 window taps)
#   w1_ref : (16, 128) bf16            block-structured conv1 weight
#   b1_ref : (1, 128)  f32             conv1 bias replicated in 3 lane groups
#   w2_ref : (3, 128, 128) bf16        conv2 weight, per-kh (32*kw+ci, co)
#   b2_ref : (1, 128)  f32
#   wfc_ref: (728, 128) f32            fc weight scattered on pool-anchor rows
#   bfc_ref: (1, 1)    f32
#   o_ref  : (IMG_BLK, 1) f32
#   y1p_s  : (IMG_BLK*832, 128) bf16   packed conv1 activations
#   y2_s   : (IMG_BLK*768, 128) f32    conv2 activations
# ----------------------------------------------------------------------------
def fused_net_kernel(pp_ref, w1_ref, b1_ref, w2_ref, b2_ref, wfc_ref, bfc_ref,
                     o_ref, y1p_s, y2_s):
    img_blk = pp_ref.shape[0]
    w1v = w1_ref[...]                       # hoisted loads (reused every tile)
    b1v = b1_ref[...]
    b2v = b2_ref[...]
    bfcv = bfc_ref[...]

    # ---- stage 1: conv1, packed layout.  lanes [32c:32c+32] of row q=h*32+w
    #      hold conv1(h, w+c, :).  M-tiled so no >26-vreg value stays live. ---
    for i in range(img_blk):
        for t in range(M1 // TM1):
            s0 = t * TM1
            y1t = jnp.dot(pp_ref[i, pl.ds(s0, TM1), :], w1v,
                          preferred_element_type=jnp.float32)
            y1p_s[pl.ds(i * M1 + s0, TM1), :] = (y1t + b1v).astype(jnp.bfloat16)

    # ---- stage 2: conv2.  Per 256-row tile: 3 chained dots (one per kh tap
    #      group), f32 accumulator stays in vregs, bias+store once per tile. --
    for i in range(img_blk):
        for t in range(M2 // TM2):
            r0 = i * M1 + t * TM2
            acc = jnp.dot(y1p_s[pl.ds(r0, TM2), :], w2_ref[0],
                          preferred_element_type=jnp.float32)
            acc = acc + jnp.dot(y1p_s[pl.ds(r0 + W1P, TM2), :], w2_ref[1],
                                preferred_element_type=jnp.float32)
            acc = acc + jnp.dot(y1p_s[pl.ds(r0 + 2 * W1P, TM2), :], w2_ref[2],
                                preferred_element_type=jnp.float32)
            y2_s[pl.ds(i * M2 + t * TM2, TM2), :] = acc + b2v

    # ---- stage 3: 2x2 max-pool + fc, chunked (13-vreg working set).
    #      Window at anchor p0 = 2i*32+2j = rows {p0, p0+1, p0+32, p0+33};
    #      non-anchor rows / padded lanes hit zero fc weight. -----------------
    for i in range(img_blk):
        base = i * M2
        col = jnp.zeros((1, C_PAD), jnp.float32)
        for c in range(MP // TEP):
            q0 = base + c * TEP
            m = jnp.maximum(
                jnp.maximum(y2_s[pl.ds(q0, TEP), :],
                            y2_s[pl.ds(q0 + 1, TEP), :]),
                jnp.maximum(y2_s[pl.ds(q0 + W2P, TEP), :],
                            y2_s[pl.ds(q0 + W2P + 1, TEP), :]))
            col = col + jnp.sum(m * wfc_ref[pl.ds(c * TEP, TEP), :],
                                axis=0, keepdims=True)
        tot = jnp.sum(col, axis=1, keepdims=True)            # (1, 1)
        o_ref[pl.ds(i, 1), :] = tot + bfcv


# ----------------------------------------------------------------------------
# One-time parameter preprocessing (PyTorch layouts in, kernel layouts out).
# ----------------------------------------------------------------------------
def prepare_params(params):
    w1, b1, w2, b2, wfc, bfc = params

    # conv1: OIHW (32,1,3,3) -> block-structured (16,128) bf16.
    #   row kh*5 + (kw + c), lanes [32c:32c+32]  <-  w1[:, 0, kh, kw]
    w1t = jnp.transpose(w1[:, 0, :, :], (1, 2, 0))                 # (kh, kw, ch)
    w1p = jnp.zeros((K1, C_PAD), jnp.float32)
    for c in range(3):
        for kh in range(3):
            for kw in range(3):
                w1p = w1p.at[kh * 5 + kw + c,
                             32 * c:32 * c + 32].set(w1t[kh, kw])
    w1p = w1p.astype(jnp.bfloat16)

    b1p = jnp.zeros((1, C_PAD), jnp.float32)
    for c in range(3):
        b1p = b1p.at[0, 32 * c:32 * c + 32].set(b1)                # lanes 96:128 = 0

    # conv2: OIHW (64,32,3,3) -> per-kh packed (3,128,128) bf16:
    #   [kh, 32*kw + ci, co] = w2[co, ci, kh, kw]
    w2t = jnp.transpose(w2, (2, 3, 1, 0))                          # (kh, kw, ci, co)
    w2p = jnp.zeros((3, C_PAD, C_PAD), jnp.float32)
    for kh in range(3):
        for kw in range(3):
            w2p = w2p.at[kh, 32 * kw:32 * kw + 32, :64].set(w2t[kh, kw])
    w2p = w2p.astype(jnp.bfloat16)
    b2p = jnp.zeros((1, C_PAD), jnp.float32).at[0, :64].set(b2)

    # fc1: torch CHW-flatten order -> HWC, scattered onto the 12x12 pool
    # anchor positions p0 = (2i)*32 + (2j) of the flat (24,32,128) conv2 map.
    wfc_hwc = jnp.transpose(wfc.reshape(64, 12, 12), (1, 2, 0))    # (i, j, c)
    wfc_grid = jnp.zeros((H2, W2P, C_PAD), jnp.float32)
    wfc_grid = wfc_grid.at[0:H2:2, 0:24:2, :64].set(wfc_hwc)       # (12,12,64) slice
    wfcp = wfc_grid.reshape(M2, C_PAD)[:MP]                        # (728, 128)

    bfcp = bfc.reshape(1, 1).astype(jnp.float32)
    return (w1p, b1p, w2p, b2p, wfcp, bfcp)


def _pick_img_blk(batch):
    # Multiple images per grid step to amortise per-step overhead, while
    # keeping the grid even (>= 2) so both v7x TensorCores stay busy.
    for blk in (8, 4, 2):
        if batch % blk == 0 and (batch // blk) % 2 == 0:
            return blk
    return 1


# ----------------------------------------------------------------------------
# Forward pass: tiny XLA glue (3x5 im2col on the ~3 KB/image input) + one
# fused Pallas kernel over the batch.
# ----------------------------------------------------------------------------
def net_forward_pallas(x_nchw, prepped):
    # TODO(synk): move the im2col patch construction into the kernel (pass the
    # padded (B,28,36) image) to drop the remaining ~27 KB/image of patch DMA.
    w1p, b1p, w2p, b2p, wfcp, bfcp = prepped
    B = x_nchw.shape[0]
    img_blk = _pick_img_blk(B)
    grid_len = B // img_blk

    # Packed im2col patches: column kh*5 + ww holds x_pad[h+kh, w+ww]
    # (ww = 0..4 covers the three shifted 3x3 windows used by the packing).
    x = x_nchw[:, 0, :, :].astype(jnp.float32)                     # (B, 28, 28)
    x = jnp.pad(x, ((0, 0), (0, 0), (0, XW - W_IN)))               # (B, 28, 36)
    taps = [x[:, kh:kh + H1, ww:ww + W1P].reshape(B, M1)
            for kh in range(3) for ww in range(5)]
    pp = jnp.stack(taps, axis=-1)                                  # (B, 832, 15)
    pp = jnp.pad(pp, ((0, 0), (0, 0), (0, K1 - 15))).astype(jnp.bfloat16)

    flops = B * (2 * M1 * K1 * C_PAD            # conv1 (padded)
                 + 3 * 2 * M2 * C_PAD * C_PAD   # conv2 (padded)
                 + 6 * MP * C_PAD)              # pool + fc epilogue
    bytes_accessed = (pp.size * 2 + w1p.size * 2 + w2p.size * 2
                      + wfcp.size * 4 + (b1p.size + b2p.size + 1 + B) * 4)

    out = pl.pallas_call(
        fused_net_kernel,
        out_shape=jax.ShapeDtypeStruct((grid_len, img_blk, 1), jnp.float32),
        grid=(grid_len,),
        in_specs=[
            pl.BlockSpec((img_blk, M1, K1), lambda g: (g, 0, 0)),  # patches
            pl.BlockSpec((K1, C_PAD), lambda g: (0, 0)),           # w1 (bf16)
            pl.BlockSpec((1, C_PAD), lambda g: (0, 0)),            # b1
            pl.BlockSpec((3, C_PAD, C_PAD), lambda g: (0, 0, 0)),  # w2 (bf16)
            pl.BlockSpec((1, C_PAD), lambda g: (0, 0)),            # b2
            pl.BlockSpec((MP, C_PAD), lambda g: (0, 0)),           # fc weight
            pl.BlockSpec((1, 1), lambda g: (0, 0)),                # fc bias
        ],
        out_specs=pl.BlockSpec((None, img_blk, 1), lambda g: (g, 0, 0)),
        scratch_shapes=[
            pltpu.VMEM((img_blk * M1, C_PAD), jnp.bfloat16),       # packed conv1
            pltpu.VMEM((img_blk * M2, C_PAD), jnp.float32),        # conv2 acts
        ],
        compiler_params=pltpu.CompilerParams(
            dimension_semantics=("parallel",)),
        cost_estimate=pl.CostEstimate(flops=flops, transcendentals=0,
                                      bytes_accessed=bytes_accessed),
    )(pp, w1p, b1p, w2p, b2p, wfcp, bfcp)

    return out.reshape(B, 1)


# ----------------------------------------------------------------------------
# Pure-JAX (XLA) reference with identical PyTorch semantics, for verification.
# ----------------------------------------------------------------------------
def net_forward_reference(x_nchw, params):
    w1, b1, w2, b2, wfc, bfc = params
    dn = ("NCHW", "OIHW", "NCHW")
    y = lax.conv_general_dilated(x_nchw, w1, (1, 1), "VALID",
                                 dimension_numbers=dn) + b1.reshape(1, -1, 1, 1)
    y = lax.conv_general_dilated(y, w2, (1, 1), "VALID",
                                 dimension_numbers=dn) + b2.reshape(1, -1, 1, 1)
    y = lax.reduce_window(y, -jnp.inf, lax.max, (1, 1, 2, 2), (1, 1, 2, 2), "VALID")
    y = y.reshape(y.shape[0], -1)                                  # NCHW flatten
    return y @ wfc.T + bfc


if __name__ == "__main__":
    key = jax.random.PRNGKey(0)
    kx, k1, k2, k3, k4, k5, k6 = jax.random.split(key, 7)

    # Input: batch=2, 1 channel, 28x28 (so flatten yields 9216 = 64*12*12).
    x = jax.random.normal(kx, (2, 1, 28, 28), dtype=jnp.float32)

    # Deterministic synthetic parameters in PyTorch layouts.
    params = (
        jax.random.normal(k1, (32, 1, 3, 3), dtype=jnp.float32) * 0.10,   # conv1.weight
        jax.random.normal(k2, (32,), dtype=jnp.float32) * 0.10,           # conv1.bias
        jax.random.normal(k3, (64, 32, 3, 3), dtype=jnp.float32) * 0.05,  # conv2.weight
        jax.random.normal(k4, (64,), dtype=jnp.float32) * 0.05,           # conv2.bias
        jax.random.normal(k5, (1, 9216), dtype=jnp.float32) * 0.02,       # fc1.weight
        jax.random.normal(k6, (1,), dtype=jnp.float32) * 0.02,            # fc1.bias
    )

    prepped = jax.tree_util.tree_map(jax.block_until_ready, prepare_params(params))

    fwd = jax.jit(net_forward_pallas)
    out = jax.block_until_ready(fwd(x, prepped))
    assert out.shape == (2, 1) and out.dtype == jnp.float32

    ref = jax.block_until_ready(net_forward_reference(x, params))
    max_err = float(jnp.max(jnp.abs(out - ref)))
    assert max_err < 5e-2, f"mismatch vs reference: {max_err}"

    print("KERNEL_OK")
</pallas_src>

<mosaic_0001>
module attributes {stable_mosaic.version = 11 : i64} {
  func.func @fused_net_kernel(%arg0: i32, %arg1: memref<1x832x16xbf16, #tpu.memory_space<vmem>>, %arg2: memref<16x128xbf16, #tpu.memory_space<vmem>>, %arg3: memref<1x128xf32, #tpu.memory_space<vmem>>, %arg4: memref<3x128x128xbf16, #tpu.memory_space<vmem>>, %arg5: memref<1x128xf32, #tpu.memory_space<vmem>>, %arg6: memref<728x128xf32, #tpu.memory_space<vmem>>, %arg7: memref<1x1xf32, #tpu.memory_space<vmem>>, %arg8: memref<1x1x1xf32, #tpu.memory_space<vmem>>, %arg9: memref<832x128xbf16, #tpu.memory_space<vmem>>, %arg10: memref<768x128xf32, #tpu.memory_space<vmem>>) attributes {dimension_semantics = [#tpu.dimension_semantics<parallel>], iteration_bounds = array<i64: 2>, scalar_prefetch = 0 : i64, scratch_operands = 2 : i64, tpu.core_type = #tpu.core_type<tc>, window_params = [{transform_indices = @transform_0, window_bounds = array<i64: 1, 832, 16>}, {pipeline_mode = #tpu.pipeline_mode<synchronous>, transform_indices = @transform_1, window_bounds = array<i64: 16, 128>}, {pipeline_mode = #tpu.pipeline_mode<synchronous>, transform_indices = @transform_2, window_bounds = array<i64: 1, 128>}, {pipeline_mode = #tpu.pipeline_mode<synchronous>, transform_indices = @transform_3, window_bounds = array<i64: 3, 128, 128>}, {pipeline_mode = #tpu.pipeline_mode<synchronous>, transform_indices = @transform_4, window_bounds = array<i64: 1, 128>}, {pipeline_mode = #tpu.pipeline_mode<synchronous>, transform_indices = @transform_5, window_bounds = array<i64: 728, 128>}, {pipeline_mode = #tpu.pipeline_mode<synchronous>, transform_indices = @transform_6, window_bounds = array<i64: 1, 1>}, {transform_indices = @transform_7, window_bounds = array<i64: 1, 1, 1>}]} {
    %c0 = arith.constant 0 : index
    %c0_0 = arith.constant 0 : index
    %0 = vector.load %arg2[%c0, %c0_0] : memref<16x128xbf16, #tpu.memory_space<vmem>>, vector<16x128xbf16>
    %c0_1 = arith.constant 0 : index
    %c0_2 = arith.constant 0 : index
    %1 = vector.load %arg3[%c0_1, %c0_2] : memref<1x128xf32, #tpu.memory_space<vmem>>, vector<1x128xf32>
    %c0_3 = arith.constant 0 : index
    %c0_4 = arith.constant 0 : index
    %2 = vector.load %arg5[%c0_3, %c0_4] : memref<1x128xf32, #tpu.memory_space<vmem>>, vector<1x128xf32>
    %c0_5 = arith.constant 0 : index
    %c0_6 = arith.constant 0 : index
    %3 = vector.load %arg7[%c0_5, %c0_6] : memref<1x1xf32, #tpu.memory_space<vmem>>, vector<1x1xf32>
    %c0_7 = arith.constant 0 : index
    %c0_8 = arith.constant 0 : index
    %c0_9 = arith.constant 0 : index
    %4 = vector.load %arg1[%c0_7, %c0_8, %c0_9] : memref<1x832x16xbf16, #tpu.memory_space<vmem>>, vector<1x208x16xbf16>
    %5 = vector.shape_cast %4 : vector<1x208x16xbf16> to vector<208x16xbf16>
    %cst = arith.constant dense<0.000000e+00> : vector<208x128xf32>
    %6 = tpu.matmul %5, %0, %cst {dimension_numbers = #tpu.dot_dimension_numbers<[1], [0], [0], [1], [0, 0, 1, 1], [], []>} : vector<208x16xbf16>, vector<16x128xbf16>, vector<208x128xf32> -> vector<208x128xf32>
    %7 = vector.broadcast %1 : vector<1x128xf32> to vector<208x128xf32>
    %8 = arith.addf %6, %7 : vector<208x128xf32>
    %9 = arith.truncf %8 : vector<208x128xf32> to vector<208x128xbf16>
    %c0_10 = arith.constant 0 : index
    %c0_11 = arith.constant 0 : index
    %10 = vector.load %arg9[%c0_10, %c0_11] : memref<832x128xbf16, #tpu.memory_space<vmem>>, vector<208x128xbf16>
    tpu.vector_store %arg9[%c0_10, %c0_11], %9 {strides = array<i32>} : memref<832x128xbf16, #tpu.memory_space<vmem>>, vector<208x128xbf16>,
    %c0_12 = arith.constant 0 : index
    %c208 = arith.constant 208 : index
    %c0_13 = arith.constant 0 : index
    %11 = vector.load %arg1[%c0_12, %c208, %c0_13] : memref<1x832x16xbf16, #tpu.memory_space<vmem>>, vector<1x208x16xbf16>
    %12 = vector.shape_cast %11 : vector<1x208x16xbf16> to vector<208x16xbf16>
    %cst_14 = arith.constant dense<0.000000e+00> : vector<208x128xf32>
    %13 = tpu.matmul %12, %0, %cst_14 {dimension_numbers = #tpu.dot_dimension_numbers<[1], [0], [0], [1], [0, 0, 1, 1], [], []>} : vector<208x16xbf16>, vector<16x128xbf16>, vector<208x128xf32> -> vector<208x128xf32>
    %14 = vector.broadcast %1 : vector<1x128xf32> to vector<208x128xf32>
    %15 = arith.addf %13, %14 : vector<208x128xf32>
    %16 = arith.truncf %15 : vector<208x128xf32> to vector<208x128xbf16>
    %c208_15 = arith.constant 208 : index
    %c0_16 = arith.constant 0 : index
    %17 = vector.load %arg9[%c208_15, %c0_16] : memref<832x128xbf16, #tpu.memory_space<vmem>>, vector<208x128xbf16>
    tpu.vector_store %arg9[%c208_15, %c0_16], %16 {strides = array<i32>} : memref<832x128xbf16, #tpu.memory_space<vmem>>, vector<208x128xbf16>,
    %c0_17 = arith.constant 0 : index
    %c416 = arith.constant 416 : index
    %c0_18 = arith.constant 0 : index
    %18 = vector.load %arg1[%c0_17, %c416, %c0_18] : memref<1x832x16xbf16, #tpu.memory_space<vmem>>, vector<1x208x16xbf16>
    %19 = vector.shape_cast %18 : vector<1x208x16xbf16> to vector<208x16xbf16>
    %cst_19 = arith.constant dense<0.000000e+00> : vector<208x128xf32>
    %20 = tpu.matmul %19, %0, %cst_19 {dimension_numbers = #tpu.dot_dimension_numbers<[1], [0], [0], [1], [0, 0, 1, 1], [], []>} : vector<208x16xbf16>, vector<16x128xbf16>, vector<208x128xf32> -> vector<208x128xf32>
    %21 = vector.broadcast %1 : vector<1x128xf32> to vector<208x128xf32>
    %22 = arith.addf %20, %21 : vector<208x128xf32>
    %23 = arith.truncf %22 : vector<208x128xf32> to vector<208x128xbf16>
    %c416_20 = arith.constant 416 : index
    %c0_21 = arith.constant 0 : index
    %24 = vector.load %arg9[%c416_20, %c0_21] : memref<832x128xbf16, #tpu.memory_space<vmem>>, vector<208x128xbf16>
    tpu.vector_store %arg9[%c416_20, %c0_21], %23 {strides = array<i32>} : memref<832x128xbf16, #tpu.memory_space<vmem>>, vector<208x128xbf16>,
    %c0_22 = arith.constant 0 : index
    %c624 = arith.constant 624 : index
    %c0_23 = arith.constant 0 : index
    %25 = vector.load %arg1[%c0_22, %c624, %c0_23] : memref<1x832x16xbf16, #tpu.memory_space<vmem>>, vector<1x208x16xbf16>
    %26 = vector.shape_cast %25 : vector<1x208x16xbf16> to vector<208x16xbf16>
    %cst_24 = arith.constant dense<0.000000e+00> : vector<208x128xf32>
    %27 = tpu.matmul %26, %0, %cst_24 {dimension_numbers = #tpu.dot_dimension_numbers<[1], [0], [0], [1], [0, 0, 1, 1], [], []>} : vector<208x16xbf16>, vector<16x128xbf16>, vector<208x128xf32> -> vector<208x128xf32>
    %28 = vector.broadcast %1 : vector<1x128xf32> to vector<208x128xf32>
    %29 = arith.addf %27, %28 : vector<208x128xf32>
    %30 = arith.truncf %29 : vector<208x128xf32> to vector<208x128xbf16>
    %c624_25 = arith.constant 624 : index
    %c0_26 = arith.constant 0 : index
    %31 = vector.load %arg9[%c624_25, %c0_26] : memref<832x128xbf16, #tpu.memory_space<vmem>>, vector<208x128xbf16>
    tpu.vector_store %arg9[%c624_25, %c0_26], %30 {strides = array<i32>} : memref<832x128xbf16, #tpu.memory_space<vmem>>, vector<208x128xbf16>,
    %c0_27 = arith.constant 0 : index
    %c0_28 = arith.constant 0 : index
    %32 = vector.load %arg9[%c0_27, %c0_28] : memref<832x128xbf16, #tpu.memory_space<vmem>>, vector<256x128xbf16>
    %c0_29 = arith.constant 0 : index
    %c0_30 = arith.constant 0 : index
    %c0_31 = arith.constant 0 : index
    %33 = vector.load %arg4[%c0_29, %c0_30, %c0_31] : memref<3x128x128xbf16, #tpu.memory_space<vmem>>, vector<1x128x128xbf16>
    %34 = vector.shape_cast %33 : vector<1x128x128xbf16> to vector<128x128xbf16>
    %cst_32 = arith.constant dense<0.000000e+00> : vector<256x128xf32>
    %35 = tpu.matmul %32, %34, %cst_32 {dimension_numbers = #tpu.dot_dimension_numbers<[1], [0], [0], [1], [0, 0, 1, 1], [], []>} : vector<256x128xbf16>, vector<128x128xbf16>, vector<256x128xf32> -> vector<256x128xf32>
    %c32 = arith.constant 32 : index
    %c0_33 = arith.constant 0 : index
    %36 = vector.load %arg9[%c32, %c0_33] : memref<832x128xbf16, #tpu.memory_space<vmem>>, vector<256x128xbf16>
    %c1 = arith.constant 1 : index
    %c0_34 = arith.constant 0 : index
    %c0_35 = arith.constant 0 : index
    %37 = vector.load %arg4[%c1, %c0_34, %c0_35] : memref<3x128x128xbf16, #tpu.memory_space<vmem>>, vector<1x128x128xbf16>
    %38 = vector.shape_cast %37 : vector<1x128x128xbf16> to vector<128x128xbf16>
    %cst_36 = arith.constant dense<0.000000e+00> : vector<256x128xf32>
    %39 = tpu.matmul %36, %38, %cst_36 {dimension_numbers = #tpu.dot_dimension_numbers<[1], [0], [0], [1], [0, 0, 1, 1], [], []>} : vector<256x128xbf16>, vector<128x128xbf16>, vector<256x128xf32> -> vector<256x128xf32>
    %40 = arith.addf %35, %39 : vector<256x128xf32>
    %c64 = arith.constant 64 : index
    %c0_37 = arith.constant 0 : index
    %41 = vector.load %arg9[%c64, %c0_37] : memref<832x128xbf16, #tpu.memory_space<vmem>>, vector<256x128xbf16>
    %c2 = arith.constant 2 : index
    %c0_38 = arith.constant 0 : index
    %c0_39 = arith.constant 0 : index
    %42 = vector.load %arg4[%c2, %c0_38, %c0_39] : memref<3x128x128xbf16, #tpu.memory_space<vmem>>, vector<1x128x128xbf16>
    %43 = vector.shape_cast %42 : vector<1x128x128xbf16> to vector<128x128xbf16>
    %cst_40 = arith.constant dense<0.000000e+00> : vector<256x128xf32>
    %44 = tpu.matmul %41, %43, %cst_40 {dimension_numbers = #tpu.dot_dimension_numbers<[1], [0], [0], [1], [0, 0, 1, 1], [], []>} : vector<256x128xbf16>, vector<128x128xbf16>, vector<256x128xf32> -> vector<256x128xf32>
    %45 = arith.addf %40, %44 : vector<256x128xf32>
    %46 = vector.broadcast %2 : vector<1x128xf32> to vector<256x128xf32>
    %47 = arith.addf %45, %46 : vector<256x128xf32>
    %c0_41 = arith.constant 0 : index
    %c0_42 = arith.constant 0 : index
    %48 = vector.load %arg10[%c0_41, %c0_42] : memref<768x128xf32, #tpu.memory_space<vmem>>, vector<256x128xf32>
    tpu.vector_store %arg10[%c0_41, %c0_42], %47 {strides = array<i32>} : memref<768x128xf32, #tpu.memory_space<vmem>>, vector<256x128xf32>,
    %c256 = arith.constant 256 : index
    %c0_43 = arith.constant 0 : index
    %49 = vector.load %arg9[%c256, %c0_43] : memref<832x128xbf16, #tpu.memory_space<vmem>>, vector<256x128xbf16>
    %c0_44 = arith.constant 0 : index
    %c0_45 = arith.constant 0 : index
    %c0_46 = arith.constant 0 : index
    %50 = vector.load %arg4[%c0_44, %c0_45, %c0_46] : memref<3x128x128xbf16, #tpu.memory_space<vmem>>, vector<1x128x128xbf16>
    %51 = vector.shape_cast %50 : vector<1x128x128xbf16> to vector<128x128xbf16>
    %cst_47 = arith.constant dense<0.000000e+00> : vector<256x128xf32>
    %52 = tpu.matmul %49, %51, %cst_47 {dimension_numbers = #tpu.dot_dimension_numbers<[1], [0], [0], [1], [0, 0, 1, 1], [], []>} : vector<256x128xbf16>, vector<128x128xbf16>, vector<256x128xf32> -> vector<256x128xf32>
    %c288 = arith.constant 288 : index
    %c0_48 = arith.constant 0 : index
    %53 = vector.load %arg9[%c288, %c0_48] : memref<832x128xbf16, #tpu.memory_space<vmem>>, vector<256x128xbf16>
    %c1_49 = arith.constant 1 : index
    %c0_50 = arith.constant 0 : index
    %c0_51 = arith.constant 0 : index
    %54 = vector.load %arg4[%c1_49, %c0_50, %c0_51] : memref<3x128x128xbf16, #tpu.memory_space<vmem>>, vector<1x128x128xbf16>
    %55 = vector.shape_cast %54 : vector<1x128x128xbf16> to vector<128x128xbf16>
    %cst_52 = arith.constant dense<0.000000e+00> : vector<256x128xf32>
    %56 = tpu.matmul %53, %55, %cst_52 {dimension_numbers = #tpu.dot_dimension_numbers<[1], [0], [0], [1], [0, 0, 1, 1], [], []>} : vector<256x128xbf16>, vector<128x128xbf16>, vector<256x128xf32> -> vector<256x128xf32>
    %57 = arith.addf %52, %56 : vector<256x128xf32>
    %c320 = arith.constant 320 : index
    %c0_53 = arith.constant 0 : index
    %58 = vector.load %arg9[%c320, %c0_53] : memref<832x128xbf16, #tpu.memory_space<vmem>>, vector<256x128xbf16>
    %c2_54 = arith.constant 2 : index
    %c0_55 = arith.constant 0 : index
    %c0_56 = arith.constant 0 : index
    %59 = vector.load %arg4[%c2_54, %c0_55, %c0_56] : memref<3x128x128xbf16, #tpu.memory_space<vmem>>, vector<1x128x128xbf16>
    %60 = vector.shape_cast %59 : vector<1x128x128xbf16> to vector<128x128xbf16>
    %cst_57 = arith.constant dense<0.000000e+00> : vector<256x128xf32>
    %61 = tpu.matmul %58, %60, %cst_57 {dimension_numbers = #tpu.dot_dimension_numbers<[1], [0], [0], [1], [0, 0, 1, 1], [], []>} : vector<256x128xbf16>, vector<128x128xbf16>, vector<256x128xf32> -> vector<256x128xf32>
    %62 = arith.addf %57, %61 : vector<256x128xf32>
    %63 = vector.broadcast %2 : vector<1x128xf32> to vector<256x128xf32>
    %64 = arith.addf %62, %63 : vector<256x128xf32>
    %c256_58 = arith.constant 256 : index
    %c0_59 = arith.constant 0 : index
    %65 = vector.load %arg10[%c256_58, %c0_59] : memref<768x128xf32, #tpu.memory_space<vmem>>, vector<256x128xf32>
    tpu.vector_store %arg10[%c256_58, %c0_59], %64 {strides = array<i32>} : memref<768x128xf32, #tpu.memory_space<vmem>>, vector<256x128xf32>,
    %c512 = arith.constant 512 : index
    %c0_60 = arith.constant 0 : index
    %66 = vector.load %arg9[%c512, %c0_60] : memref<832x128xbf16, #tpu.memory_space<vmem>>, vector<256x128xbf16>
    %c0_61 = arith.constant 0 : index
    %c0_62 = arith.constant 0 : index
    %c0_63 = arith.constant 0 : index
    %67 = vector.load %arg4[%c0_61, %c0_62, %c0_63] : memref<3x128x128xbf16, #tpu.memory_space<vmem>>, vector<1x128x128xbf16>
    %68 = vector.shape_cast %67 : vector<1x128x128xbf16> to vector<128x128xbf16>
    %cst_64 = arith.constant dense<0.000000e+00> : vector<256x128xf32>
    %69 = tpu.matmul %66, %68, %cst_64 {dimension_numbers = #tpu.dot_dimension_numbers<[1], [0], [0], [1], [0, 0, 1, 1], [], []>} : vector<256x128xbf16>, vector<128x128xbf16>, vector<256x128xf32> -> vector<256x128xf32>
    %c544 = arith.constant 544 : index
    %c0_65 = arith.constant 0 : index
    %70 = vector.load %arg9[%c544, %c0_65] : memref<832x128xbf16, #tpu.memory_space<vmem>>, vector<256x128xbf16>
    %c1_66 = arith.constant 1 : index
    %c0_67 = arith.constant 0 : index
    %c0_68 = arith.constant 0 : index
    %71 = vector.load %arg4[%c1_66, %c0_67, %c0_68] : memref<3x128x128xbf16, #tpu.memory_space<vmem>>, vector<1x128x128xbf16>
    %72 = vector.shape_cast %71 : vector<1x128x128xbf16> to vector<128x128xbf16>
    %cst_69 = arith.constant dense<0.000000e+00> : vector<256x128xf32>
    %73 = tpu.matmul %70, %72, %cst_69 {dimension_numbers = #tpu.dot_dimension_numbers<[1], [0], [0], [1], [0, 0, 1, 1], [], []>} : vector<256x128xbf16>, vector<128x128xbf16>, vector<256x128xf32> -> vector<256x128xf32>
    %74 = arith.addf %69, %73 : vector<256x128xf32>
    %c576 = arith.constant 576 : index
    %c0_70 = arith.constant 0 : index
    %75 = vector.load %arg9[%c576, %c0_70] : memref<832x128xbf16, #tpu.memory_space<vmem>>, vector<256x128xbf16>
    %c2_71 = arith.constant 2 : index
    %c0_72 = arith.constant 0 : index
    %c0_73 = arith.constant 0 : index
    %76 = vector.load %arg4[%c2_71, %c0_72, %c0_73] : memref<3x128x128xbf16, #tpu.memory_space<vmem>>, vector<1x128x128xbf16>
    %77 = vector.shape_cast %76 : vector<1x128x128xbf16> to vector<128x128xbf16>
    %cst_74 = arith.constant dense<0.000000e+00> : vector<256x128xf32>
    %78 = tpu.matmul %75, %77, %cst_74 {dimension_numbers = #tpu.dot_dimension_numbers<[1], [0], [0], [1], [0, 0, 1, 1], [], []>} : vector<256x128xbf16>, vector<128x128xbf16>, vector<256x128xf32> -> vector<256x128xf32>
    %79 = arith.addf %74, %78 : vector<256x128xf32>
    %80 = vector.broadcast %2 : vector<1x128xf32> to vector<256x128xf32>
    %81 = arith.addf %79, %80 : vector<256x128xf32>
    %c512_75 = arith.constant 512 : index
    %c0_76 = arith.constant 0 : index
    %82 = vector.load %arg10[%c512_75, %c0_76] : memref<768x128xf32, #tpu.memory_space<vmem>>, vector<256x128xf32>
    tpu.vector_store %arg10[%c512_75, %c0_76], %81 {strides = array<i32>} : memref<768x128xf32, #tpu.memory_space<vmem>>, vector<256x128xf32>,
    %cst_77 = arith.constant 0.000000e+00 : f32
    %83 = vector.broadcast %cst_77 : f32 to vector<1x128xf32>
    %c0_78 = arith.constant 0 : index
    %c0_79 = arith.constant 0 : index
    %84 = vector.load %arg10[%c0_78, %c0_79] : memref<768x128xf32, #tpu.memory_space<vmem>>, vector<104x128xf32>
    %c1_80 = arith.constant 1 : index
    %c0_81 = arith.constant 0 : index
    %85 = vector.load %arg10[%c1_80, %c0_81] : memref<768x128xf32, #tpu.memory_space<vmem>>, vector<104x128xf32>
    %86 = arith.maximumf %84, %85 : vector<104x128xf32>
    %c32_82 = arith.constant 32 : index
    %c0_83 = arith.constant 0 : index
    %87 = vector.load %arg10[%c32_82, %c0_83] : memref<768x128xf32, #tpu.memory_space<vmem>>, vector<104x128xf32>
    %c33 = arith.constant 33 : index
    %c0_84 = arith.constant 0 : index
    %88 = vector.load %arg10[%c33, %c0_84] : memref<768x128xf32, #tpu.memory_space<vmem>>, vector<104x128xf32>
    %89 = arith.maximumf %87, %88 : vector<104x128xf32>
    %90 = arith.maximumf %86, %89 : vector<104x128xf32>
    %c0_85 = arith.constant 0 : index
    %c0_86 = arith.constant 0 : index
    %91 = vector.load %arg6[%c0_85, %c0_86] : memref<728x128xf32, #tpu.memory_space<vmem>>, vector<104x128xf32>
    %92 = arith.mulf %90, %91 : vector<104x128xf32>
    %cst_87 = arith.constant dense<0.000000e+00> : vector<128xf32>
    %93 = vector.multi_reduction <add>, %92, %cst_87 [0] : vector<104x128xf32> to vector<128xf32>
    %94 = vector.shape_cast %93 : vector<128xf32> to vector<1x128xf32>
    %95 = arith.addf %83, %94 : vector<1x128xf32>
    %c104 = arith.constant 104 : index
    %c0_88 = arith.constant 0 : index
    %96 = vector.load %arg10[%c104, %c0_88] : memref<768x128xf32, #tpu.memory_space<vmem>>, vector<104x128xf32>
    %c105 = arith.constant 105 : index
    %c0_89 = arith.constant 0 : index
    %97 = vector.load %arg10[%c105, %c0_89] : memref<768x128xf32, #tpu.memory_space<vmem>>, vector<104x128xf32>
    %98 = arith.maximumf %96, %97 : vector<104x128xf32>
    %c136 = arith.constant 136 : index
    %c0_90 = arith.constant 0 : index
    %99 = vector.load %arg10[%c136, %c0_90] : memref<768x128xf32, #tpu.memory_space<vmem>>, vector<104x128xf32>
    %c137 = arith.constant 137 : index
    %c0_91 = arith.constant 0 : index
    %100 = vector.load %arg10[%c137, %c0_91] : memref<768x128xf32, #tpu.memory_space<vmem>>, vector<104x128xf32>
    %101 = arith.maximumf %99, %100 : vector<104x128xf32>
    %102 = arith.maximumf %98, %101 : vector<104x128xf32>
    %c104_92 = arith.constant 104 : index
    %c0_93 = arith.constant 0 : index
    %103 = vector.load %arg6[%c104_92, %c0_93] : memref<728x128xf32, #tpu.memory_space<vmem>>, vector<104x128xf32>
    %104 = arith.mulf %102, %103 : vector<104x128xf32>
    %cst_94 = arith.constant dense<0.000000e+00> : vector<128xf32>
    %105 = vector.multi_reduction <add>, %104, %cst_94 [0] : vector<104x128xf32> to vector<128xf32>
    %106 = vector.shape_cast %105 : vector<128xf32> to vector<1x128xf32>
    %107 = arith.addf %95, %106 : vector<1x128xf32>
    %c208_95 = arith.constant 208 : index
    %c0_96 = arith.constant 0 : index
    %108 = vector.load %arg10[%c208_95, %c0_96] : memref<768x128xf32, #tpu.memory_space<vmem>>, vector<104x128xf32>
    %c209 = arith.constant 209 : index
    %c0_97 = arith.constant 0 : index
    %109 = vector.load %arg10[%c209, %c0_97] : memref<768x128xf32, #tpu.memory_space<vmem>>, vector<104x128xf32>
    %110 = arith.maximumf %108, %109 : vector<104x128xf32>
    %c240 = arith.constant 240 : index
    %c0_98 = arith.constant 0 : index
    %111 = vector.load %arg10[%c240, %c0_98] : memref<768x128xf32, #tpu.memory_space<vmem>>, vector<104x128xf32>
    %c241 = arith.constant 241 : index
    %c0_99 = arith.constant 0 : index
    %112 = vector.load %arg10[%c241, %c0_99] : memref<768x128xf32, #tpu.memory_space<vmem>>, vector<104x128xf32>
    %113 = arith.maximumf %111, %112 : vector<104x128xf32>
    %114 = arith.maximumf %110, %113 : vector<104x128xf32>
    %c208_100 = arith.constant 208 : index
    %c0_101 = arith.constant 0 : index
    %115 = vector.load %arg6[%c208_100, %c0_101] : memref<728x128xf32, #tpu.memory_space<vmem>>, vector<104x128xf32>
    %116 = arith.mulf %114, %115 : vector<104x128xf32>
    %cst_102 = arith.constant dense<0.000000e+00> : vector<128xf32>
    %117 = vector.multi_reduction <add>, %116, %cst_102 [0] : vector<104x128xf32> to vector<128xf32>
    %118 = vector.shape_cast %117 : vector<128xf32> to vector<1x128xf32>
    %119 = arith.addf %107, %118 : vector<1x128xf32>
    %c312 = arith.constant 312 : index
    %c0_103 = arith.constant 0 : index
    %120 = vector.load %arg10[%c312, %c0_103] : memref<768x128xf32, #tpu.memory_space<vmem>>, vector<104x128xf32>
    %c313 = arith.constant 313 : index
    %c0_104 = arith.constant 0 : index
    %121 = vector.load %arg10[%c313, %c0_104] : memref<768x128xf32, #tpu.memory_space<vmem>>, vector<104x128xf32>
    %122 = arith.maximumf %120, %121 : vector<104x128xf32>
    %c344 = arith.constant 344 : index
    %c0_105 = arith.constant 0 : index
    %123 = vector.load %arg10[%c344, %c0_105] : memref<768x128xf32, #tpu.memory_space<vmem>>, vector<104x128xf32>
    %c345 = arith.constant 345 : index
    %c0_106 = arith.constant 0 : index
    %124 = vector.load %arg10[%c345, %c0_106] : memref<768x128xf32, #tpu.memory_space<vmem>>, vector<104x128xf32>
    %125 = arith.maximumf %123, %124 : vector<104x128xf32>
    %126 = arith.maximumf %122, %125 : vector<104x128xf32>
    %c312_107 = arith.constant 312 : index
    %c0_108 = arith.constant 0 : index
    %127 = vector.load %arg6[%c312_107, %c0_108] : memref<728x128xf32, #tpu.memory_space<vmem>>, vector<104x128xf32>
    %128 = arith.mulf %126, %127 : vector<104x128xf32>
    %cst_109 = arith.constant dense<0.000000e+00> : vector<128xf32>
    %129 = vector.multi_reduction <add>, %128, %cst_109 [0] : vector<104x128xf32> to vector<128xf32>
    %130 = vector.shape_cast %129 : vector<128xf32> to vector<1x128xf32>
    %131 = arith.addf %119, %130 : vector<1x128xf32>
    %c416_110 = arith.constant 416 : index
    %c0_111 = arith.constant 0 : index
    %132 = vector.load %arg10[%c416_110, %c0_111] : memref<768x128xf32, #tpu.memory_space<vmem>>, vector<104x128xf32>
    %c417 = arith.constant 417 : index
    %c0_112 = arith.constant 0 : index
    %133 = vector.load %arg10[%c417, %c0_112] : memref<768x128xf32, #tpu.memory_space<vmem>>, vector<104x128xf32>
    %134 = arith.maximumf %132, %133 : vector<104x128xf32>
    %c448 = arith.constant 448 : index
    %c0_113 = arith.constant 0 : index
    %135 = vector.load %arg10[%c448, %c0_113] : memref<768x128xf32, #tpu.memory_space<vmem>>, vector<104x128xf32>
    %c449 = arith.constant 449 : index
    %c0_114 = arith.constant 0 : index
    %136 = vector.load %arg10[%c449, %c0_114] : memref<768x128xf32, #tpu.memory_space<vmem>>, vector<104x128xf32>
    %137 = arith.maximumf %135, %136 : vector<104x128xf32>
    %138 = arith.maximumf %134, %137 : vector<104x128xf32>
    %c416_115 = arith.constant 416 : index
    %c0_116 = arith.constant 0 : index
    %139 = vector.load %arg6[%c416_115, %c0_116] : memref<728x128xf32, #tpu.memory_space<vmem>>, vector<104x128xf32>
    %140 = arith.mulf %138, %139 : vector<104x128xf32>
    %cst_117 = arith.constant dense<0.000000e+00> : vector<128xf32>
    %141 = vector.multi_reduction <add>, %140, %cst_117 [0] : vector<104x128xf32> to vector<128xf32>
    %142 = vector.shape_cast %141 : vector<128xf32> to vector<1x128xf32>
    %143 = arith.addf %131, %142 : vector<1x128xf32>
    %c520 = arith.constant 520 : index
    %c0_118 = arith.constant 0 : index
    %144 = vector.load %arg10[%c520, %c0_118] : memref<768x128xf32, #tpu.memory_space<vmem>>, vector<104x128xf32>
    %c521 = arith.constant 521 : index
    %c0_119 = arith.constant 0 : index
    %145 = vector.load %arg10[%c521, %c0_119] : memref<768x128xf32, #tpu.memory_space<vmem>>, vector<104x128xf32>
    %146 = arith.maximumf %144, %145 : vector<104x128xf32>
    %c552 = arith.constant 552 : index
    %c0_120 = arith.constant 0 : index
    %147 = vector.load %arg10[%c552, %c0_120] : memref<768x128xf32, #tpu.memory_space<vmem>>, vector<104x128xf32>
    %c553 = arith.constant 553 : index
    %c0_121 = arith.constant 0 : index
    %148 = vector.load %arg10[%c553, %c0_121] : memref<768x128xf32, #tpu.memory_space<vmem>>, vector<104x128xf32>
    %149 = arith.maximumf %147, %148 : vector<104x128xf32>
    %150 = arith.maximumf %146, %149 : vector<104x128xf32>
    %c520_122 = arith.constant 520 : index
    %c0_123 = arith.constant 0 : index
    %151 = vector.load %arg6[%c520_122, %c0_123] : memref<728x128xf32, #tpu.memory_space<vmem>>, vector<104x128xf32>
    %152 = arith.mulf %150, %151 : vector<104x128xf32>
    %cst_124 = arith.constant dense<0.000000e+00> : vector<128xf32>
    %153 = vector.multi_reduction <add>, %152, %cst_124 [0] : vector<104x128xf32> to vector<128xf32>
    %154 = vector.shape_cast %153 : vector<128xf32> to vector<1x128xf32>
    %155 = arith.addf %143, %154 : vector<1x128xf32>
    %c624_125 = arith.constant 624 : index
    %c0_126 = arith.constant 0 : index
    %156 = vector.load %arg10[%c624_125, %c0_126] : memref<768x128xf32, #tpu.memory_space<vmem>>, vector<104x128xf32>
    %c625 = arith.constant 625 : index
    %c0_127 = arith.constant 0 : index
    %157 = vector.load %arg10[%c625, %c0_127] : memref<768x128xf32, #tpu.memory_space<vmem>>, vector<104x128xf32>
    %158 = arith.maximumf %156, %157 : vector<104x128xf32>
    %c656 = arith.constant 656 : index
    %c0_128 = arith.constant 0 : index
    %159 = vector.load %arg10[%c656, %c0_128] : memref<768x128xf32, #tpu.memory_space<vmem>>, vector<104x128xf32>
    %c657 = arith.constant 657 : index
    %c0_129 = arith.constant 0 : index
    %160 = vector.load %arg10[%c657, %c0_129] : memref<768x128xf32, #tpu.memory_space<vmem>>, vector<104x128xf32>
    %161 = arith.maximumf %159, %160 : vector<104x128xf32>
    %162 = arith.maximumf %158, %161 : vector<104x128xf32>
    %c624_130 = arith.constant 624 : index
    %c0_131 = arith.constant 0 : index
    %163 = vector.load %arg6[%c624_130, %c0_131] : memref<728x128xf32, #tpu.memory_space<vmem>>, vector<104x128xf32>
    %164 = arith.mulf %162, %163 : vector<104x128xf32>
    %cst_132 = arith.constant dense<0.000000e+00> : vector<128xf32>
    %165 = vector.multi_reduction <add>, %164, %cst_132 [0] : vector<104x128xf32> to vector<128xf32>
    %166 = vector.shape_cast %165 : vector<128xf32> to vector<1x128xf32>
    %167 = arith.addf %155, %166 : vector<1x128xf32>
    %cst_133 = arith.constant dense<0.000000e+00> : vector<1xf32>
    %168 = vector.multi_reduction <add>, %167, %cst_133 [1] : vector<1x128xf32> to vector<1xf32>
    %169 = vector.shape_cast %168 : vector<1xf32> to vector<1x1xf32>
    %170 = arith.addf %169, %3 : vector<1x1xf32>
    %c0_134 = arith.constant 0 : index
    %c0_135 = arith.constant 0 : index
    %c0_136 = arith.constant 0 : index
    %171 = vector.load %arg8[%c0_134, %c0_135, %c0_136] : memref<1x1x1xf32, #tpu.memory_space<vmem>>, vector<1x1x1xf32>
    %172 = vector.shape_cast %171 : vector<1x1x1xf32> to vector<1x1xf32>
    %173 = vector.shape_cast %170 : vector<1x1xf32> to vector<1x1x1xf32>
    tpu.vector_store %arg8[%c0_134, %c0_135, %c0_136], %173 {strides = array<i32>} : memref<1x1x1xf32, #tpu.memory_space<vmem>>, vector<1x1x1xf32>,
    return
  }
  func.func @transform_0(%arg0: i32) -> (i32, i32, i32) {
    %c0_i32 = arith.constant 0 : i32
    %c0_i32_0 = arith.constant 0 : i32
    %c0_i32_1 = arith.constant 0 : i32
    return %arg0, %c0_i32, %c0_i32_0 : i32, i32, i32
  }
  func.func @transform_1(%arg0: i32) -> (i32, i32) {
    %c0_i32 = arith.constant 0 : i32
    %c0_i32_0 = arith.constant 0 : i32
    %c0_i32_1 = arith.constant 0 : i32
    return %c0_i32, %c0_i32_0 : i32, i32
  }
  func.func @transform_2(%arg0: i32) -> (i32, i32) {
    %c0_i32 = arith.constant 0 : i32
    %c0_i32_0 = arith.constant 0 : i32
    %c0_i32_1 = arith.constant 0 : i32
    return %c0_i32, %c0_i32_0 : i32, i32
  }
  func.func @transform_3(%arg0: i32) -> (i32, i32, i32) {
    %c0_i32 = arith.constant 0 : i32
    %c0_i32_0 = arith.constant 0 : i32
    %c0_i32_1 = arith.constant 0 : i32
    %c0_i32_2 = arith.constant 0 : i32
    return %c0_i32, %c0_i32_0, %c0_i32_1 : i32, i32, i32
  }
  func.func @transform_4(%arg0: i32) -> (i32, i32) {
    %c0_i32 = arith.constant 0 : i32
    %c0_i32_0 = arith.constant 0 : i32
    %c0_i32_1 = arith.constant 0 : i32
    return %c0_i32, %c0_i32_0 : i32, i32
  }
  func.func @transform_5(%arg0: i32) -> (i32, i32) {
    %c0_i32 = arith.constant 0 : i32
    %c0_i32_0 = arith.constant 0 : i32
    %c0_i32_1 = arith.constant 0 : i32
    return %c0_i32, %c0_i32_0 : i32, i32
  }
  func.func @transform_6(%arg0: i32) -> (i32, i32) {
    %c0_i32 = arith.constant 0 : i32
    %c0_i32_0 = arith.constant 0 : i32
    %c0_i32_1 = arith.constant 0 : i32
    return %c0_i32, %c0_i32_0 : i32, i32
  }
  func.func @transform_7(%arg0: i32) -> (i32, i32, i32) {
    %c0_i32 = arith.constant 0 : i32
    %c0_i32_0 = arith.constant 0 : i32
    %c0_i32_1 = arith.constant 0 : i32
    return %arg0, %c0_i32, %c0_i32_0 : i32, i32, i32
  }
}

</mosaic_0001>

<llo_original>
// kernel: net_forward_pallas.1
$region0: #{net_forward_pallas.1}
  #allocation0 [shape = 'u32[]', space=smem, size = 0x4, offset = 0x4, fixed_abs, tag = 'smem constant byte address 0x4 - core index']
  #allocation1 [shape = 'u32[144,128]{1,0:T(1,128)}', space=vmem, size = 0x12000, scoped, tag = 'internal scratch']
  #allocation2 [shape = 'bf16[832,128]{1,0:T(8,128)(2,1)}', space=vmem, size = 0x34000, scoped, tag = 'scratch operand']
  #allocation3 [shape = 'f32[768,128]{1,0:T(8,128)}', space=vmem, size = 0x60000, scoped, tag = 'scratch operand']
  #allocation4 [shape = 'f32[1,1]{1,0:T(1,128)S(1)}', space=vmem, size = 0x200, scoped, tag = 'scoped memory for net_forward_pallas.1']
  %s0 = inlined_call_operand.vmem [shape: bf16[2,832,16], index: 0, kind: input, shape index: {}]
  %s1 = inlined_call_operand.vmem [shape: bf16[16,128], index: 1, kind: input, shape index: {}]
  %s2 = inlined_call_operand.vmem [shape: f32[1,128], index: 2, kind: input, shape index: {}]
  %s3 = inlined_call_operand.vmem [shape: bf16[3,128,128], index: 3, kind: input, shape index: {}]
  %s4 = inlined_call_operand.vmem [shape: f32[1,128], index: 4, kind: input, shape index: {}]
  %s5 = inlined_call_operand.vmem [shape: f32[728,128], index: 5, kind: input, shape index: {}]
  %s6 = inlined_call_operand.<no memory space> [shape: f32[1,1], index: 6, kind: input, shape index: {}]
  %s7 = inlined_call_operand.vmem [shape: f32[2,1,1], index: 7, kind: output, shape index: {}]
  %s8 = sld [smem:[#allocation0]]
  $region61: #{net_forward_pallas.1} parent=0
    _
  %s10 = ssub.s32 1, %s8
  %s11 = scalar_select 0, %s10, %s8
  %v12 = vstv %s6
  %13 = vst [vmem:[#allocation4] sm:$0x1] %v12
  loop: start=0, step=1, limit=4
  $region2: #{net_forward_pallas.1} parent=0 // loop_pre_header
    _
  $region3: #{net_forward_pallas.1} parent=0 // loop_header
    %s15 = sphi 0, %s19
    %p16 = scmp.ge.s32.totalorder %s15, 4
    %s25 = sphi 0, %s27
    %s28 = sphi 0, %s25
    %s29 = sphi 0, %s28
    %s45 = sphi 0, %s29
    %s49 = sphi 0, %s49
    %s51 = sphi 0, %s49
    %s52 = sphi 0, %s51
    %s66 = sphi 0, %s52
    %s70 = sphi 0, %s70
    %s72 = sphi 0, %s70
    %s73 = sphi 0, %s72
    %s87 = sphi 0, %s73
    %s91 = sphi 0, %s91
    %s93 = sphi 0, %s91
    %s94 = sphi 0, %s93
    %s108 = sphi 0, %s94
    %s112 = sphi 0, %s112
    %s114 = sphi 0, %s112
    %s115 = sphi 0, %s114
    %s129 = sphi 0, %s115
    %s133 = sphi 0, %s133
    %s135 = sphi 0, %s133
    %s136 = sphi 0, %s135
    %s150 = sphi 0, %s136
    %s154 = sphi 0, %s154
    %s156 = sphi 0, %s154
    %s157 = sphi 0, %s156
    %s171 = sphi 0, %s157
    %s177 = sphi 0, %s179
    %s180 = sphi 0, %s177
    %s181 = sphi 0, %s180
    %s197 = sphi 0, %s181
  $region4: #{net_forward_pallas.1} parent=0 // loop_header_branch
    %18 = sbr.rel (%p16) target = $region8
  $region5: #{net_forward_pallas.1} parent=0 // loop_body
    %s20 = ssub.s32 %s15, 1
    %s21 = ssub.s32 %s15, 2
    %s22 = sadd.s32 %s15, 1
    %s23 = ssub.s32 %s15, %s22
    %p24 = scmp.eq.s32.totalorder %s23, 0
    %s26 = sadd.s32 %s25, 1
    %s27 = scalar_select %p24, %s25, %s26
    %p30 = pneg %p24
    %p31 = scmp.eq.s32.totalorder %s15, 1
    %p32 = por %p30, %p31
    %p33 = scmp.ne.s32.totalorder %s25, %s28
    %p34 = scmp.eq.s32.totalorder %s15, 0
    %p35 = por %p33, %p34
    %p36 = scmp.ne.s32.totalorder %s25, %s28
    %p37 = scmp.eq.s32.totalorder %s20, 1
    %p38 = por %p36, %p37
    %p39 = scmp.ne.s32.totalorder %s28, %s29
    %p40 = scmp.eq.s32.totalorder %s20, 0
    %p41 = por %p39, %p40
    %p42 = scmp.ne.s32.totalorder %s28, %s29
    %p43 = scmp.eq.s32.totalorder %s21, 1
    %p44 = por %p42, %p43
    %p46 = scmp.ne.s32.totalorder %s29, %s45
    %p47 = scmp.eq.s32.totalorder %s21, 0
    %p48 = por %p46, %p47
    %s50 = sadd.s32 %s49, 1
    %p53 = scmp.eq.s32.totalorder %s15, 1
    %p54 = scmp.ne.s32.totalorder %s49, %s51
    %p55 = scmp.eq.s32.totalorder %s15, 0
    %p56 = por %p54, %p55
    %p57 = scmp.ne.s32.totalorder %s49, %s51
    %p58 = scmp.eq.s32.totalorder %s20, 1
    %p59 = por %p57, %p58
    %p60 = scmp.ne.s32.totalorder %s51, %s52
    %p61 = scmp.eq.s32.totalorder %s20, 0
    %p62 = por %p60, %p61
    %p63 = scmp.ne.s32.totalorder %s51, %s52
    %p64 = scmp.eq.s32.totalorder %s21, 1
    %p65 = por %p63, %p64
    %p67 = scmp.ne.s32.totalorder %s52, %s66
    %p68 = scmp.eq.s32.totalorder %s21, 0
    %p69 = por %p67, %p68
    %s71 = sadd.s32 %s70, 1
    %p74 = scmp.eq.s32.totalorder %s15, 1
    %p75 = scmp.ne.s32.totalorder %s70, %s72
    %p76 = scmp.eq.s32.totalorder %s15, 0
    %p77 = por %p75, %p76
    %p78 = scmp.ne.s32.totalorder %s70, %s72
    %p79 = scmp.eq.s32.totalorder %s20, 1
    %p80 = por %p78, %p79
    %p81 = scmp.ne.s32.totalorder %s72, %s73
    %p82 = scmp.eq.s32.totalorder %s20, 0
    %p83 = por %p81, %p82
    %p84 = scmp.ne.s32.totalorder %s72, %s73
    %p85 = scmp.eq.s32.totalorder %s21, 1
    %p86 = por %p84, %p85
    %p88 = scmp.ne.s32.totalorder %s73, %s87
    %p89 = scmp.eq.s32.totalorder %s21, 0
    %p90 = por %p88, %p89
    %s92 = sadd.s32 %s91, 1
    %p95 = scmp.eq.s32.totalorder %s15, 1
    %p96 = scmp.ne.s32.totalorder %s91, %s93
    %p97 = scmp.eq.s32.totalorder %s15, 0
    %p98 = por %p96, %p97
    %p99 = scmp.ne.s32.totalorder %s91, %s93
    %p100 = scmp.eq.s32.totalorder %s20, 1
    %p101 = por %p99, %p100
    %p102 = scmp.ne.s32.totalorder %s93, %s94
    %p103 = scmp.eq.s32.totalorder %s20, 0
    %p104 = por %p102, %p103
    %p105 = scmp.ne.s32.totalorder %s93, %s94
    %p106 = scmp.eq.s32.totalorder %s21, 1
    %p107 = por %p105, %p106
    %p109 = scmp.ne.s32.totalorder %s94, %s108
    %p110 = scmp.eq.s32.totalorder %s21, 0
    %p111 = por %p109, %p110
    %s113 = sadd.s32 %s112, 1
    %p116 = scmp.eq.s32.totalorder %s15, 1
    %p117 = scmp.ne.s32.totalorder %s112, %s114
    %p118 = scmp.eq.s32.totalorder %s15, 0
    %p119 = por %p117, %p118
    %p120 = scmp.ne.s32.totalorder %s112, %s114
    %p121 = scmp.eq.s32.totalorder %s20, 1
    %p122 = por %p120, %p121
    %p123 = scmp.ne.s32.totalorder %s114, %s115
    %p124 = scmp.eq.s32.totalorder %s20, 0
    %p125 = por %p123, %p124
    %p126 = scmp.ne.s32.totalorder %s114, %s115
    %p127 = scmp.eq.s32.totalorder %s21, 1
    %p128 = por %p126, %p127
    %p130 = scmp.ne.s32.totalorder %s115, %s129
    %p131 = scmp.eq.s32.totalorder %s21, 0
    %p132 = por %p130, %p131
    %s134 = sadd.s32 %s133, 1
    %p137 = scmp.eq.s32.totalorder %s15, 1
    %p138 = scmp.ne.s32.totalorder %s133, %s135
    %p139 = scmp.eq.s32.totalorder %s15, 0
    %p140 = por %p138, %p139
    %p141 = scmp.ne.s32.totalorder %s133, %s135
    %p142 = scmp.eq.s32.totalorder %s20, 1
    %p143 = por %p141, %p142
    %p144 = scmp.ne.s32.totalorder %s135, %s136
    %p145 = scmp.eq.s32.totalorder %s20, 0
    %p146 = por %p144, %p145
    %p147 = scmp.ne.s32.totalorder %s135, %s136
    %p148 = scmp.eq.s32.totalorder %s21, 1
    %p149 = por %p147, %p148
    %p151 = scmp.ne.s32.totalorder %s136, %s150
    %p152 = scmp.eq.s32.totalorder %s21, 0
    %p153 = por %p151, %p152
    %s155 = sadd.s32 %s154, 1
    %p158 = scmp.eq.s32.totalorder %s15, 1
    %p159 = scmp.ne.s32.totalorder %s154, %s156
    %p160 = scmp.eq.s32.totalorder %s15, 0
    %p161 = por %p159, %p160
    %p162 = scmp.ne.s32.totalorder %s154, %s156
    %p163 = scmp.eq.s32.totalorder %s20, 1
    %p164 = por %p162, %p163
    %p165 = scmp.ne.s32.totalorder %s156, %s157
    %p166 = scmp.eq.s32.totalorder %s20, 0
    %p167 = por %p165, %p166
    %p168 = scmp.ne.s32.totalorder %s156, %s157
    %p169 = scmp.eq.s32.totalorder %s21, 1
    %p170 = por %p168, %p169
    %p172 = scmp.ne.s32.totalorder %s157, %s171
    %p173 = scmp.eq.s32.totalorder %s21, 0
    %p174 = por %p172, %p173
    %s175 = ssub.s32 %s15, %s22
    %p176 = scmp.eq.s32.totalorder %s175, 0
    %s178 = sadd.s32 %s177, 1
    %s179 = scalar_select %p176, %s177, %s178
    %p182 = pneg %p176
    %p183 = scmp.eq.s32.totalorder %s15, 1
    %p184 = por %p182, %p183
    %p185 = scmp.ne.s32.totalorder %s177, %s180
    %p186 = scmp.eq.s32.totalorder %s15, 0
    %p187 = por %p185, %p186
    %p188 = scmp.ne.s32.totalorder %s177, %s180
    %p189 = scmp.eq.s32.totalorder %s20, 1
    %p190 = por %p188, %p189
    %p191 = scmp.ne.s32.totalorder %s180, %s181
    %p192 = scmp.eq.s32.totalorder %s20, 0
    %p193 = por %p191, %p192
    %p194 = scmp.ne.s32.totalorder %s180, %s181
    %p195 = scmp.eq.s32.totalorder %s21, 1
    %p196 = por %p194, %p195
    %p198 = scmp.ne.s32.totalorder %s181, %s197
    %p199 = scmp.eq.s32.totalorder %s21, 0
    %p200 = por %p198, %p199
    %p201 = scmp.le.s32.totalorder 1, %s15
    %p202 = scmp.lt.s32.totalorder %s15, 3
    %p203 = pnand %p201, %p202
    %p204 = pneg %p203
    // Predicated region
    $region9: #{net_forward_pallas.1} parent=5 // pred_check
      _
    $region10: #{net_forward_pallas.1} parent=5 // pred_check_branch
      %206 = sbr.rel (%p203) target = $region12
    $region11: #{net_forward_pallas.1} parent=5 // pred_region
      %s207 = ssub.s32 %s15, 1
      // Predicated region
      $region13: #{net_forward_pallas.1} parent=11 // pred_check
        %p208 = pneg %p62
      $region14: #{net_forward_pallas.1} parent=11 // pred_check_branch
        %210 = sbr.rel (%p208) target = $region16
      $region15: #{net_forward_pallas.1} parent=11 // pred_region
        _
      $region16: #{net_forward_pallas.1} parent=11 // pred_fallthru
        _
      // Predicated region
      $region17: #{net_forward_pallas.1} parent=11 // pred_check
        %p211 = pneg %p83
      $region18: #{net_forward_pallas.1} parent=11 // pred_check_branch
        %213 = sbr.rel (%p211) target = $region20
      $region19: #{net_forward_pallas.1} parent=11 // pred_region
        _
      $region20: #{net_forward_pallas.1} parent=11 // pred_fallthru
        _
      // Predicated region
      $region21: #{net_forward_pallas.1} parent=11 // pred_check
        %p214 = pneg %p104
      $region22: #{net_forward_pallas.1} parent=11 // pred_check_branch
        %216 = sbr.rel (%p214) target = $region24
      $region23: #{net_forward_pallas.1} parent=11 // pred_region
        _
      $region24: #{net_forward_pallas.1} parent=11 // pred_fallthru
        _
      // Predicated region
      $region25: #{net_forward_pallas.1} parent=11 // pred_check
        %p217 = pneg %p125
      $region26: #{net_forward_pallas.1} parent=11 // pred_check_branch
        %219 = sbr.rel (%p217) target = $region28
      $region27: #{net_forward_pallas.1} parent=11 // pred_region
        _
      $region28: #{net_forward_pallas.1} parent=11 // pred_fallthru
        _
      // Predicated region
      $region29: #{net_forward_pallas.1} parent=11 // pred_check
        %p220 = pneg %p146
      $region30: #{net_forward_pallas.1} parent=11 // pred_check_branch
        %222 = sbr.rel (%p220) target = $region32
      $region31: #{net_forward_pallas.1} parent=11 // pred_region
        _
      $region32: #{net_forward_pallas.1} parent=11 // pred_fallthru
        _
      // Predicated region
      $region33: #{net_forward_pallas.1} parent=11 // pred_check
        %p223 = pneg %p167
      $region34: #{net_forward_pallas.1} parent=11 // pred_check_branch
        %225 = sbr.rel (%p223) target = $region36
      $region35: #{net_forward_pallas.1} parent=11 // pred_region
        _
      $region36: #{net_forward_pallas.1} parent=11 // pred_fallthru
        _
    $region12: #{net_forward_pallas.1} parent=5 // pred_fallthru
      _
    %p226 = scmp.lt.s32.totalorder %s15, 2
    // Predicated region
    $region37: #{net_forward_pallas.1} parent=5 // pred_check
      %p227 = pneg %p226
    $region38: #{net_forward_pallas.1} parent=5 // pred_check_branch
      %229 = sbr.rel (%p227) target = $region40
    $region39: #{net_forward_pallas.1} parent=5 // pred_region
      // Predicated region
      $region41: #{net_forward_pallas.1} parent=39 // pred_check
        %p230 = pneg %p35
      $region42: #{net_forward_pallas.1} parent=39 // pred_check_branch
        %232 = sbr.rel (%p230) target = $region44
      $region43: #{net_forward_pallas.1} parent=39 // pred_region
        %p233 = scmp.lt.s32.totalorder %s15, 1
        %s234 = scalar_select %p233, %s15, 1
        %s235 = smul.addr %s234, 104
        %s236 = smul.addr %s235, 4
        %s237 = scalar_lea.vmem %s0, %s236
      $region44: #{net_forward_pallas.1} parent=39 // pred_fallthru
        _
    $region40: #{net_forward_pallas.1} parent=5 // pred_fallthru
      _
    %p238 = scmp.le.s32.totalorder 1, %s15
    %p239 = scmp.lt.s32.totalorder %s15, 3
    %p240 = pnand %p238, %p239
    %p241 = pneg %p240
    // Predicated region
    $region45: #{net_forward_pallas.1} parent=5 // pred_check
      _
    $region46: #{net_forward_pallas.1} parent=5 // pred_check_branch
      %243 = sbr.rel (%p240) target = $region48
    $region47: #{net_forward_pallas.1} parent=5 // pred_region
      %s244 = ssub.s32 %s15, 1
      %p245 = scmp.lt.s32.totalorder %s20, 1
      %s246 = scalar_select %p245, %s20, 1
      %s247 = smul.addr %s246, 104
      %s248 = smul.addr %s247, 4
      %s249 = scalar_lea.vmem %s0, %s248
      %p250 = pneg %p41
      %p251 = pneg %p38
      %p252 = pneg %p62
      %p253 = pneg %p59
      %p254 = pneg %p83
      %p255 = pneg %p80
      %p256 = pneg %p104
      %p257 = pneg %p101
      %p258 = pneg %p125
      %p259 = pneg %p122
      %p260 = pneg %p146
      %p261 = pneg %p143
      %p262 = pneg %p167
      %p263 = pneg %p164
      %p264 = pneg %p193
      %p265 = pneg %p190
      %p266 = scmp.lt.s32.totalorder %s20, 1
      %s267 = scalar_select %p266, %s20, 1
      %s268 = scalar_lea.vmem %s7, %s267
      %p269 = scmp.lt.s32.totalorder %s20, 1
      %s270 = scalar_select %p269, %s20, 1
      %s271 = smul.addr %s270, 104
      %s272 = smul.addr %s271, 4
      %s273 = scalar_lea.vmem %s0, %s272
      %p274 = scmp.lt.s32.totalorder %s20, 1
      %s275 = scalar_select %p274, %s20, 1
      %s276 = scalar_lea.vmem %s7, %s275
      %v278 = vld [vmem:[%s1] sm:$0xf]
      %v279 = vld [vmem:[%s1 + $0x4] sm:$0xf]
      %v280 = vld [vmem:[%s2] sm:$0x1]
      %v281 = vld [vmem:[%s4] sm:$0x1]
      %v282 = vld [vmem:[#allocation4] sm:$0x1]
      %v283 = vld [vmem:[%s273] sm:$0xf]
      %v284 = vld [vmem:[%s273 + $0x4] sm:$0xf]
      %v285 = vld [vmem:[%s273 + $0x8] sm:$0xf]
      %v286 = vld [vmem:[%s273 + $0xc] sm:$0xf]
      %v287 = vld [vmem:[%s273 + $0x10] sm:$0xf]
      %v288 = vld [vmem:[%s273 + $0x14] sm:$0xf]
      %v289 = vld [vmem:[%s273 + $0x18] sm:$0xf]
      %v290 = vld [vmem:[%s273 + $0x1c] sm:$0xf]
      %v291 = vld [vmem:[%s273 + $0x20] sm:$0xf]
      %v292 = vld [vmem:[%s273 + $0x24] sm:$0xf]
      %v293 = vld [vmem:[%s273 + $0x28] sm:$0xf]
      %v294 = vld [vmem:[%s273 + $0x2c] sm:$0xf]
      %v295 = vld [vmem:[%s273 + $0x30] sm:$0xf]
      %v296 = vld [vmem:[%s273 + $0x34] sm:$0xf]
      %v297 = vld [vmem:[%s273 + $0x38] sm:$0xf]
      %v298 = vld [vmem:[%s273 + $0x3c] sm:$0xf]
      %v299 = vld [vmem:[%s273 + $0x40] sm:$0xf]
      %v300 = vld [vmem:[%s273 + $0x44] sm:$0xf]
      %v301 = vld [vmem:[%s273 + $0x48] sm:$0xf]
      %v302 = vld [vmem:[%s273 + $0x4c] sm:$0xf]
      %v303 = vld [vmem:[%s273 + $0x50] sm:$0xf]
      %v304 = vld [vmem:[%s273 + $0x54] sm:$0xf]
      %v305 = vld [vmem:[%s273 + $0x58] sm:$0xf]
      %v306 = vld [vmem:[%s273 + $0x5c] sm:$0xf]
      %v307 = vld [vmem:[%s273 + $0x60] sm:$0xf]
      %v308 = vld [vmem:[%s273 + $0x64] sm:$0xf]
      %v310 = vlaneseq
      %v311 = vshrl.u32 %v310, 7
      %v312 = vsub.s32 0, %v311
      %v313 = vrot.slane %v280, %v312
      %v341 = vunpack.c.l.b16 %v283
      %v342 = vunpack.c.l.b16 %v284
      %v343 = vunpack.c.l.b16 %v285
      %v344 = vunpack.c.l.b16 %v286
      %v345 = vunpack.c.l.b16 %v287
      %v346 = vunpack.c.l.b16 %v288
      %v347 = vunpack.c.l.b16 %v289
      %v348 = vunpack.c.l.b16 %v290
      %v349 = vunpack.c.l.b16 %v291
      %v350 = vunpack.c.l.b16 %v292
      %v351 = vunpack.c.l.b16 %v293
      %v352 = vunpack.c.l.b16 %v294
      %v353 = vunpack.c.l.b16 %v295
      %v354 = vunpack.c.l.b16 %v296
      %v355 = vunpack.c.l.b16 %v297
      %v356 = vunpack.c.l.b16 %v298
      %v357 = vunpack.c.l.b16 %v299
      %v358 = vunpack.c.l.b16 %v300
      %v359 = vunpack.c.l.b16 %v301
      %v360 = vunpack.c.l.b16 %v302
      %v361 = vunpack.c.l.b16 %v303
      %v362 = vunpack.c.l.b16 %v304
      %v363 = vunpack.c.l.b16 %v305
      %v364 = vunpack.c.l.b16 %v306
      %v365 = vunpack.c.l.b16 %v307
      %v366 = vunpack.c.l.b16 %v308
      %v367 = vpack.c.b16 %v342, %v341
      %v368 = vpack.c.b16 %v344, %v343
      %v369 = vpack.c.b16 %v346, %v345
      %v370 = vpack.c.b16 %v348, %v347
      %v371 = vpack.c.b16 %v350, %v349
      %v372 = vpack.c.b16 %v352, %v351
      %v373 = vpack.c.b16 %v354, %v353
      %v374 = vpack.c.b16 %v356, %v355
      %v375 = vpack.c.b16 %v358, %v357
      %v376 = vpack.c.b16 %v360, %v359
      %v377 = vpack.c.b16 %v362, %v361
      %v378 = vpack.c.b16 %v364, %v363
      %v379 = vpack.c.b16 %v366, %v365
      %v382 = vunpack.c.l.b16 %v278
      %v383 = vunpack.c.l.b16 %v279
      %v384 = vpack.c.b16 %v383, %v382
      %vm386 = vcmask 130048
      %v388 = vsel %vm386, %v367, 0
      %v391 = vsel %vm386, %v368, 0
      %v394 = vsel %vm386, %v369, 0
      %v397 = vsel %vm386, %v370, 0
      %v400 = vsel %vm386, %v371, 0
      %v403 = vsel %vm386, %v372, 0
      %v406 = vsel %vm386, %v373, 0
      %v409 = vsel %vm386, %v374, 0
      %v412 = vsel %vm386, %v375, 0
      %v415 = vsel %vm386, %v376, 0
      %v418 = vsel %vm386, %v377, 0
      %v421 = vsel %vm386, %v378, 0
      %v424 = vsel %vm386, %v379, 0
      %426 = vmatprep.subr.bf16.mxu0 0
      %427 = vmatpush1.bf16.msra.mxu0 0
      %428 = vmatprep.subr.bf16.mxu0 0
      %429 = vmatpush1.bf16.msra.mxu0 0
      %430 = vmatprep.subr.bf16.mxu0 0
      %431 = vmatpush1.bf16.msra.mxu0 0
      %432 = vmatprep.subr.bf16.mxu0 0
      %433 = vmatpush1.bf16.msra.mxu0 0
      %434 = vmatprep.subr.bf16.mxu0 0
      %435 = vmatpush1.bf16.msra.mxu0 0
      %436 = vmatprep.subr.bf16.mxu0 0
      %437 = vmatpush1.bf16.msra.mxu0 0
      %438 = vmatprep.subr.bf16.mxu0 0
      %439 = vmatpush1.bf16.msra.mxu0 0
      %440 = vmatprep.subr.bf16.mxu0 0
      %441 = vmatpush1.bf16.msra.mxu0 %v384
      %442 = vmatprep.subr.bf16.mxu0 0
      %443 = vmatpush2.bf16.msra.mxu0 0
      %444 = vmatprep.subr.bf16.mxu0 0
      %445 = vmatpush2.bf16.msra.mxu0 0
      %446 = vmatprep.subr.bf16.mxu0 0
      %447 = vmatpush2.bf16.msra.mxu0 0
      %448 = vmatprep.subr.bf16.mxu0 0
      %449 = vmatpush2.bf16.msra.mxu0 0
      %450 = vmatprep.subr.bf16.mxu0 0
      %451 = vmatpush2.bf16.msra.mxu0 0
      %452 = vmatprep.subr.bf16.mxu0 0
      %453 = vmatpush2.bf16.msra.mxu0 0
      %454 = vmatprep.subr.bf16.mxu0 0
      %455 = vmatpush2.bf16.msra.mxu0 0
      %456 = vmatprep.subr.bf16.mxu0 0
      %457 = vmatpush2.bf16.msra.mxu0 0
      %458 = vmatprep.mubr.bf16.mxu0 0
      %459 = vmatmul.mubr.bf16.gmra.mxu0 %v388
      %v460 = vpop.f32.mrf.mxu0
      %v461 = vadd.f32 %v313, %v460
      %v462 = vpop.f32.mrf.mxu0
      %v463 = vpop.f32.mrf.mxu0
      %v464 = vadd.f32 %v313, %v463
      %v465 = vpop.f32.mrf.mxu0
      %466 = vmatprep.mubr.bf16.mxu0 0
      %467 = vmatmul.mubr.bf16.gmra.mxu0 %v391
      %v468 = vpop.f32.mrf.mxu0
      %v469 = vadd.f32 %v313, %v468
      %v470 = vpop.f32.mrf.mxu0
      %v471 = vpop.f32.mrf.mxu0
      %v472 = vadd.f32 %v313, %v471
      %v473 = vpop.f32.mrf.mxu0
      %474 = vmatprep.mubr.bf16.mxu0 0
      %475 = vmatmul.mubr.bf16.gmra.mxu0 %v394
      %v476 = vpop.f32.mrf.mxu0
      %v477 = vadd.f32 %v313, %v476
      %v478 = vpop.f32.mrf.mxu0
      %v479 = vpop.f32.mrf.mxu0
      %v480 = vadd.f32 %v313, %v479
      %v481 = vpop.f32.mrf.mxu0
      %482 = vmatprep.mubr.bf16.mxu0 0
      %483 = vmatmul.mubr.bf16.gmra.mxu0 %v397
      %v484 = vpop.f32.mrf.mxu0
      %v485 = vadd.f32 %v313, %v484
      %v486 = vpop.f32.mrf.mxu0
      %v487 = vpop.f32.mrf.mxu0
      %v488 = vadd.f32 %v313, %v487
      %v489 = vpop.f32.mrf.mxu0
      %490 = vmatprep.mubr.bf16.mxu0 0
      %491 = vmatmul.mubr.bf16.gmra.mxu0 %v400
      %v492 = vpop.f32.mrf.mxu0
      %v493 = vadd.f32 %v313, %v492
      %v494 = vpop.f32.mrf.mxu0
      %v495 = vpop.f32.mrf.mxu0
      %v496 = vadd.f32 %v313, %v495
      %v497 = vpop.f32.mrf.mxu0
      %498 = vmatprep.mubr.bf16.mxu0 0
      %499 = vmatmul.mubr.bf16.gmra.mxu0 %v403
      %v500 = vpop.f32.mrf.mxu0
      %v501 = vadd.f32 %v313, %v500
      %v502 = vpop.f32.mrf.mxu0
      %v503 = vpop.f32.mrf.mxu0
      %v504 = vadd.f32 %v313, %v503
      %v505 = vpop.f32.mrf.mxu0
      %506 = vmatprep.mubr.bf16.mxu0 0
      %507 = vmatmul.mubr.bf16.gmra.mxu0 %v406
      %v508 = vpop.f32.mrf.mxu0
      %v509 = vadd.f32 %v313, %v508
      %v510 = vpop.f32.mrf.mxu0
      %v511 = vpop.f32.mrf.mxu0
      %v512 = vadd.f32 %v313, %v511
      %v513 = vpop.f32.mrf.mxu0
      %514 = vmatprep.mubr.bf16.mxu0 0
      %515 = vmatmul.mubr.bf16.gmra.mxu0 %v409
      %v516 = vpop.f32.mrf.mxu0
      %v517 = vadd.f32 %v313, %v516
      %v518 = vpop.f32.mrf.mxu0
      %v519 = vpop.f32.mrf.mxu0
      %v520 = vadd.f32 %v313, %v519
      %v521 = vpop.f32.mrf.mxu0
      %522 = vmatprep.mubr.bf16.mxu0 0
      %523 = vmatmul.mubr.bf16.gmra.mxu0 %v412
      %v524 = vpop.f32.mrf.mxu0
      %v525 = vadd.f32 %v313, %v524
      %v526 = vpop.f32.mrf.mxu0
      %v527 = vpop.f32.mrf.mxu0
      %v528 = vadd.f32 %v313, %v527
      %v529 = vpop.f32.mrf.mxu0
      %530 = vmatprep.mubr.bf16.mxu0 0
      %531 = vmatmul.mubr.bf16.gmra.mxu0 %v415
      %v532 = vpop.f32.mrf.mxu0
      %v533 = vadd.f32 %v313, %v532
      %v534 = vpop.f32.mrf.mxu0
      %v535 = vpop.f32.mrf.mxu0
      %v536 = vadd.f32 %v313, %v535
      %v537 = vpop.f32.mrf.mxu0
      %538 = vmatprep.mubr.bf16.mxu0 0
      %539 = vmatmul.mubr.bf16.gmra.mxu0 %v418
      %v540 = vpop.f32.mrf.mxu0
      %v541 = vadd.f32 %v313, %v540
      %v542 = vpop.f32.mrf.mxu0
      %v543 = vpop.f32.mrf.mxu0
      %v544 = vadd.f32 %v313, %v543
      %v545 = vpop.f32.mrf.mxu0
      %546 = vmatprep.mubr.bf16.mxu0 0
      %547 = vmatmul.mubr.bf16.gmra.mxu0 %v421
      %v548 = vpop.f32.mrf.mxu0
      %v549 = vadd.f32 %v313, %v548
      %v550 = vpop.f32.mrf.mxu0
      %v551 = vpop.f32.mrf.mxu0
      %v552 = vadd.f32 %v313, %v551
      %v553 = vpop.f32.mrf.mxu0
      %554 = vmatprep.mubr.bf16.mxu0 0
      %555 = vmatmul.mubr.bf16.gmra.mxu0 %v424
      %v556 = vpop.f32.mrf.mxu0
      %v557 = vadd.f32 %v313, %v556
      %v558 = vpop.f32.mrf.mxu0
      %v559 = vpop.f32.mrf.mxu0
      %v560 = vadd.f32 %v313, %v559
      %v561 = vpop.f32.mrf.mxu0
      %562 = vdwg.mxu0
      %v563 = vpack.c.bf16 %v464, %v461
      %v564 = vpack.c.bf16 %v472, %v469
      %v565 = vpack.c.bf16 %v480, %v477
      %v566 = vpack.c.bf16 %v488, %v485
      %v567 = vpack.c.bf16 %v496, %v493
      %v568 = vpack.c.bf16 %v504, %v501
      %v569 = vpack.c.bf16 %v512, %v509
      %v570 = vpack.c.bf16 %v520, %v517
      %v571 = vpack.c.bf16 %v528, %v525
      %v572 = vpack.c.bf16 %v536, %v533
      %v573 = vpack.c.bf16 %v544, %v541
      %v574 = vpack.c.bf16 %v552, %v549
      %v575 = vpack.c.bf16 %v560, %v557
      %v589 = vunpack.c.l.b16 %v563
      %v590 = vunpack.c.h.b16 %v563
      %v591 = vunpack.c.l.b16 %v564
      %v592 = vunpack.c.h.b16 %v564
      %v593 = vunpack.c.l.b16 %v565
      %v594 = vunpack.c.h.b16 %v565
      %v595 = vunpack.c.l.b16 %v566
      %v596 = vunpack.c.h.b16 %v566
      %v597 = vunpack.c.l.b16 %v567
      %v598 = vunpack.c.h.b16 %v567
      %v599 = vunpack.c.l.b16 %v568
      %v600 = vunpack.c.h.b16 %v568
      %v601 = vunpack.c.l.b16 %v569
      %v602 = vunpack.c.h.b16 %v569
      %v603 = vunpack.c.l.b16 %v570
      %v604 = vunpack.c.h.b16 %v570
      %v605 = vunpack.c.l.b16 %v571
      %v606 = vunpack.c.h.b16 %v571
      %v607 = vunpack.c.l.b16 %v572
      %v608 = vunpack.c.h.b16 %v572
      %v609 = vunpack.c.l.b16 %v573
      %v610 = vunpack.c.h.b16 %v573
      %v611 = vunpack.c.l.b16 %v574
      %v612 = vunpack.c.h.b16 %v574
      %v613 = vunpack.c.l.b16 %v575
      %v614 = vunpack.c.h.b16 %v575
      %v615 = vpack.c.b16 %v589, %v589
      %v616 = vpack.c.b16 %v590, %v590
      %v617 = vpack.c.b16 %v591, %v591
      %v618 = vpack.c.b16 %v592, %v592
      %v619 = vpack.c.b16 %v593, %v593
      %v620 = vpack.c.b16 %v594, %v594
      %v621 = vpack.c.b16 %v595, %v595
      %v622 = vpack.c.b16 %v596, %v596
      %v623 = vpack.c.b16 %v597, %v597
      %v624 = vpack.c.b16 %v598, %v598
      %v625 = vpack.c.b16 %v599, %v599
      %v626 = vpack.c.b16 %v600, %v600
      %v627 = vpack.c.b16 %v601, %v601
      %v628 = vpack.c.b16 %v602, %v602
      %v629 = vpack.c.b16 %v603, %v603
      %v630 = vpack.c.b16 %v604, %v604
      %v631 = vpack.c.b16 %v605, %v605
      %v632 = vpack.c.b16 %v606, %v606
      %v633 = vpack.c.b16 %v607, %v607
      %v634 = vpack.c.b16 %v608, %v608
      %v635 = vpack.c.b16 %v609, %v609
      %v636 = vpack.c.b16 %v610, %v610
      %v637 = vpack.c.b16 %v611, %v611
      %v638 = vpack.c.b16 %v612, %v612
      %v639 = vpack.c.b16 %v613, %v613
      %v640 = vpack.c.b16 %v614, %v614
      %667 = vst [vmem:[#allocation2] sm:$0xf] %v615
      %668 = vst [vmem:[#allocation2 + $0x4] sm:$0xf] %v616
      %669 = vst [vmem:[#allocation2 + $0x8] sm:$0xf] %v617
      %670 = vst [vmem:[#allocation2 + $0xc] sm:$0xf] %v618
      %671 = vst [vmem:[#allocation2 + $0x10] sm:$0xf] %v619
      %672 = vst [vmem:[#allocation2 + $0x14] sm:$0xf] %v620
      %673 = vst [vmem:[#allocation2 + $0x18] sm:$0xf] %v621
      %674 = vst [vmem:[#allocation2 + $0x1c] sm:$0xf] %v622
      %675 = vst [vmem:[#allocation2 + $0x20] sm:$0xf] %v623
      %676 = vst [vmem:[#allocation2 + $0x24] sm:$0xf] %v624
      %677 = vst [vmem:[#allocation2 + $0x28] sm:$0xf] %v625
      %678 = vst [vmem:[#allocation2 + $0x2c] sm:$0xf] %v626
      %679 = vst [vmem:[#allocation2 + $0x30] sm:$0xf] %v627
      %680 = vst [vmem:[#allocation2 + $0x34] sm:$0xf] %v628
      %681 = vst [vmem:[#allocation2 + $0x38] sm:$0xf] %v629
      %682 = vst [vmem:[#allocation2 + $0x3c] sm:$0xf] %v630
      %683 = vst [vmem:[#allocation2 + $0x40] sm:$0xf] %v631
      %684 = vst [vmem:[#allocation2 + $0x44] sm:$0xf] %v632
      %685 = vst [vmem:[#allocation2 + $0x48] sm:$0xf] %v633
      %686 = vst [vmem:[#allocation2 + $0x4c] sm:$0xf] %v634
      %687 = vst [vmem:[#allocation2 + $0x50] sm:$0xf] %v635
      %688 = vst [vmem:[#allocation2 + $0x54] sm:$0xf] %v636
      %689 = vst [vmem:[#allocation2 + $0x58] sm:$0xf] %v637
      %690 = vst [vmem:[#allocation2 + $0x5c] sm:$0xf] %v638
      %691 = vst [vmem:[#allocation2 + $0x60] sm:$0xf] %v639
      %692 = vst [vmem:[#allocation2 + $0x64] sm:$0xf] %v640
      %v693 = vld [vmem:[%s273 + $0x68] sm:$0xf]
      %v694 = vld [vmem:[%s273 + $0x6c] sm:$0xf]
      %v695 = vld [vmem:[%s273 + $0x70] sm:$0xf]
      %v696 = vld [vmem:[%s273 + $0x74] sm:$0xf]
      %v697 = vld [vmem:[%s273 + $0x78] sm:$0xf]
      %v698 = vld [vmem:[%s273 + $0x7c] sm:$0xf]
      %v699 = vld [vmem:[%s273 + $0x80] sm:$0xf]
      %v700 = vld [vmem:[%s273 + $0x84] sm:$0xf]
      %v701 = vld [vmem:[%s273 + $0x88] sm:$0xf]
      %v702 = vld [vmem:[%s273 + $0x8c] sm:$0xf]
      %v703 = vld [vmem:[%s273 + $0x90] sm:$0xf]
      %v704 = vld [vmem:[%s273 + $0x94] sm:$0xf]
      %v705 = vld [vmem:[%s273 + $0x98] sm:$0xf]
      %v706 = vld [vmem:[%s273 + $0x9c] sm:$0xf]
      %v707 = vld [vmem:[%s273 + $0xa0] sm:$0xf]
      %v708 = vld [vmem:[%s273 + $0xa4] sm:$0xf]
      %v709 = vld [vmem:[%s273 + $0xa8] sm:$0xf]
      %v710 = vld [vmem:[%s273 + $0xac] sm:$0xf]
      %v711 = vld [vmem:[%s273 + $0xb0] sm:$0xf]
      %v712 = vld [vmem:[%s273 + $0xb4] sm:$0xf]
      %v713 = vld [vmem:[%s273 + $0xb8] sm:$0xf]
      %v714 = vld [vmem:[%s273 + $0xbc] sm:$0xf]
      %v715 = vld [vmem:[%s273 + $0xc0] sm:$0xf]
      %v716 = vld [vmem:[%s273 + $0xc4] sm:$0xf]
      %v717 = vld [vmem:[%s273 + $0xc8] sm:$0xf]
      %v718 = vld [vmem:[%s273 + $0xcc] sm:$0xf]
      %v745 = vunpack.c.l.b16 %v693
      %v746 = vunpack.c.l.b16 %v694
      %v747 = vunpack.c.l.b16 %v695
      %v748 = vunpack.c.l.b16 %v696
      %v749 = vunpack.c.l.b16 %v697
      %v750 = vunpack.c.l.b16 %v698
      %v751 = vunpack.c.l.b16 %v699
      %v752 = vunpack.c.l.b16 %v700
      %v753 = vunpack.c.l.b16 %v701
      %v754 = vunpack.c.l.b16 %v702
      %v755 = vunpack.c.l.b16 %v703
      %v756 = vunpack.c.l.b16 %v704
      %v757 = vunpack.c.l.b16 %v705
      %v758 = vunpack.c.l.b16 %v706
      %v759 = vunpack.c.l.b16 %v707
      %v760 = vunpack.c.l.b16 %v708
      %v761 = vunpack.c.l.b16 %v709
      %v762 = vunpack.c.l.b16 %v710
      %v763 = vunpack.c.l.b16 %v711
      %v764 = vunpack.c.l.b16 %v712
      %v765 = vunpack.c.l.b16 %v713
      %v766 = vunpack.c.l.b16 %v714
      %v767 = vunpack.c.l.b16 %v715
      %v768 = vunpack.c.l.b16 %v716
      %v769 = vunpack.c.l.b16 %v717
      %v770 = vunpack.c.l.b16 %v718
      %v771 = vpack.c.b16 %v746, %v745
      %v772 = vpack.c.b16 %v748, %v747
      %v773 = vpack.c.b16 %v750, %v749
      %v774 = vpack.c.b16 %v752, %v751
      %v775 = vpack.c.b16 %v754, %v753
      %v776 = vpack.c.b16 %v756, %v755
      %v777 = vpack.c.b16 %v758, %v757
      %v778 = vpack.c.b16 %v760, %v759
      %v779 = vpack.c.b16 %v762, %v761
      %v780 = vpack.c.b16 %v764, %v763
      %v781 = vpack.c.b16 %v766, %v765
      %v782 = vpack.c.b16 %v768, %v767
      %v783 = vpack.c.b16 %v770, %v769
      %v785 = vsel %vm386, %v771, 0
      %v788 = vsel %vm386, %v772, 0
      %v791 = vsel %vm386, %v773, 0
      %v794 = vsel %vm386, %v774, 0
      %v797 = vsel %vm386, %v775, 0
      %v800 = vsel %vm386, %v776, 0
      %v803 = vsel %vm386, %v777, 0
      %v806 = vsel %vm386, %v778, 0
      %v809 = vsel %vm386, %v779, 0
      %v812 = vsel %vm386, %v780, 0
      %v815 = vsel %vm386, %v781, 0
      %v818 = vsel %vm386, %v782, 0
      %v821 = vsel %vm386, %v783, 0
      %823 = vmatprep.subr.bf16.mxu0 0
      %824 = vmatpush1.bf16.msra.mxu0 0
      %825 = vmatprep.subr.bf16.mxu0 0
      %826 = vmatpush1.bf16.msra.mxu0 0
      %827 = vmatprep.subr.bf16.mxu0 0
      %828 = vmatpush1.bf16.msra.mxu0 0
      %829 = vmatprep.subr.bf16.mxu0 0
      %830 = vmatpush1.bf16.msra.mxu0 0
      %831 = vmatprep.subr.bf16.mxu0 0
      %832 = vmatpush1.bf16.msra.mxu0 0
      %833 = vmatprep.subr.bf16.mxu0 0
      %834 = vmatpush1.bf16.msra.mxu0 0
      %835 = vmatprep.subr.bf16.mxu0 0
      %836 = vmatpush1.bf16.msra.mxu0 0
      %837 = vmatprep.subr.bf16.mxu0 0
      %838 = vmatpush1.bf16.msra.mxu0 %v384
      %839 = vmatprep.subr.bf16.mxu0 0
      %840 = vmatpush2.bf16.msra.mxu0 0
      %841 = vmatprep.subr.bf16.mxu0 0
      %842 = vmatpush2.bf16.msra.mxu0 0
      %843 = vmatprep.subr.bf16.mxu0 0
      %844 = vmatpush2.bf16.msra.mxu0 0
      %845 = vmatprep.subr.bf16.mxu0 0
      %846 = vmatpush2.bf16.msra.mxu0 0
      %847 = vmatprep.subr.bf16.mxu0 0
      %848 = vmatpush2.bf16.msra.mxu0 0
      %849 = vmatprep.subr.bf16.mxu0 0
      %850 = vmatpush2.bf16.msra.mxu0 0
      %851 = vmatprep.subr.bf16.mxu0 0
      %852 = vmatpush2.bf16.msra.mxu0 0
      %853 = vmatprep.subr.bf16.mxu0 0
      %854 = vmatpush2.bf16.msra.mxu0 0
      %855 = vmatprep.mubr.bf16.mxu0 0
      %856 = vmatmul.mubr.bf16.gmra.mxu0 %v785
      %v857 = vpop.f32.mrf.mxu0
      %v858 = vadd.f32 %v313, %v857
      %v859 = vpop.f32.mrf.mxu0
      %v860 = vpop.f32.mrf.mxu0
      %v861 = vadd.f32 %v313, %v860
      %v862 = vpop.f32.mrf.mxu0
      %863 = vmatprep.mubr.bf16.mxu0 0
      %864 = vmatmul.mubr.bf16.gmra.mxu0 %v788
      %v865 = vpop.f32.mrf.mxu0
      %v866 = vadd.f32 %v313, %v865
      %v867 = vpop.f32.mrf.mxu0
      %v868 = vpop.f32.mrf.mxu0
      %v869 = vadd.f32 %v313, %v868
      %v870 = vpop.f32.mrf.mxu0
      %871 = vmatprep.mubr.bf16.mxu0 0
      %872 = vmatmul.mubr.bf16.gmra.mxu0 %v791
      %v873 = vpop.f32.mrf.mxu0
      %v874 = vadd.f32 %v313, %v873
      %v875 = vpop.f32.mrf.mxu0
      %v876 = vpop.f32.mrf.mxu0
      %v877 = vadd.f32 %v313, %v876
      %v878 = vpop.f32.mrf.mxu0
      %879 = vmatprep.mubr.bf16.mxu0 0
      %880 = vmatmul.mubr.bf16.gmra.mxu0 %v794
      %v881 = vpop.f32.mrf.mxu0
      %v882 = vadd.f32 %v313, %v881
      %v883 = vpop.f32.mrf.mxu0
      %v884 = vpop.f32.mrf.mxu0
      %v885 = vadd.f32 %v313, %v884
      %v886 = vpop.f32.mrf.mxu0
      %887 = vmatprep.mubr.bf16.mxu0 0
      %888 = vmatmul.mubr.bf16.gmra.mxu0 %v797
      %v889 = vpop.f32.mrf.mxu0
      %v890 = vadd.f32 %v313, %v889
      %v891 = vpop.f32.mrf.mxu0
      %v892 = vpop.f32.mrf.mxu0
      %v893 = vadd.f32 %v313, %v892
      %v894 = vpop.f32.mrf.mxu0
      %895 = vmatprep.mubr.bf16.mxu0 0
      %896 = vmatmul.mubr.bf16.gmra.mxu0 %v800
      %v897 = vpop.f32.mrf.mxu0
      %v898 = vadd.f32 %v313, %v897
      %v899 = vpop.f32.mrf.mxu0
      %v900 = vpop.f32.mrf.mxu0
      %v901 = vadd.f32 %v313, %v900
      %v902 = vpop.f32.mrf.mxu0
      %903 = vmatprep.mubr.bf16.mxu0 0
      %904 = vmatmul.mubr.bf16.gmra.mxu0 %v803
      %v905 = vpop.f32.mrf.mxu0
      %v906 = vadd.f32 %v313, %v905
      %v907 = vpop.f32.mrf.mxu0
      %v908 = vpop.f32.mrf.mxu0
      %v909 = vadd.f32 %v313, %v908
      %v910 = vpop.f32.mrf.mxu0
      %911 = vmatprep.mubr.bf16.mxu0 0
      %912 = vmatmul.mubr.bf16.gmra.mxu0 %v806
      %v913 = vpop.f32.mrf.mxu0
      %v914 = vadd.f32 %v313, %v913
      %v915 = vpop.f32.mrf.mxu0
      %v916 = vpop.f32.mrf.mxu0
      %v917 = vadd.f32 %v313, %v916
      %v918 = vpop.f32.mrf.mxu0
      %919 = vmatprep.mubr.bf16.mxu0 0
      %920 = vmatmul.mubr.bf16.gmra.mxu0 %v809
      %v921 = vpop.f32.mrf.mxu0
      %v922 = vadd.f32 %v313, %v921
      %v923 = vpop.f32.mrf.mxu0
      %v924 = vpop.f32.mrf.mxu0
      %v925 = vadd.f32 %v313, %v924
      %v926 = vpop.f32.mrf.mxu0
      %927 = vmatprep.mubr.bf16.mxu0 0
      %928 = vmatmul.mubr.bf16.gmra.mxu0 %v812
      %v929 = vpop.f32.mrf.mxu0
      %v930 = vadd.f32 %v313, %v929
      %v931 = vpop.f32.mrf.mxu0
      %v932 = vpop.f32.mrf.mxu0
      %v933 = vadd.f32 %v313, %v932
      %v934 = vpop.f32.mrf.mxu0
      %935 = vmatprep.mubr.bf16.mxu0 0
      %936 = vmatmul.mubr.bf16.gmra.mxu0 %v815
      %v937 = vpop.f32.mrf.mxu0
      %v938 = vadd.f32 %v313, %v937
      %v939 = vpop.f32.mrf.mxu0
      %v940 = vpop.f32.mrf.mxu0
      %v941 = vadd.f32 %v313, %v940
      %v942 = vpop.f32.mrf.mxu0
      %943 = vmatprep.mubr.bf16.mxu0 0
      %944 = vmatmul.mubr.bf16.gmra.mxu0 %v818
      %v945 = vpop.f32.mrf.mxu0
      %v946 = vadd.f32 %v313, %v945
      %v947 = vpop.f32.mrf.mxu0
      %v948 = vpop.f32.mrf.mxu0
      %v949 = vadd.f32 %v313, %v948
      %v950 = vpop.f32.mrf.mxu0
      %951 = vmatprep.mubr.bf16.mxu0 0
      %952 = vmatmul.mubr.bf16.gmra.mxu0 %v821
      %v953 = vpop.f32.mrf.mxu0
      %v954 = vadd.f32 %v313, %v953
      %v955 = vpop.f32.mrf.mxu0
      %v956 = vpop.f32.mrf.mxu0
      %v957 = vadd.f32 %v313, %v956
      %v958 = vpop.f32.mrf.mxu0
      %959 = vdwg.mxu0
      %v960 = vpack.c.bf16 %v861, %v858
      %v961 = vpack.c.bf16 %v869, %v866
      %v962 = vpack.c.bf16 %v877, %v874
      %v963 = vpack.c.bf16 %v885, %v882
      %v964 = vpack.c.bf16 %v893, %v890
      %v965 = vpack.c.bf16 %v901, %v898
      %v966 = vpack.c.bf16 %v909, %v906
      %v967 = vpack.c.bf16 %v917, %v914
      %v968 = vpack.c.bf16 %v925, %v922
      %v969 = vpack.c.bf16 %v933, %v930
      %v970 = vpack.c.bf16 %v941, %v938
      %v971 = vpack.c.bf16 %v949, %v946
      %v972 = vpack.c.bf16 %v957, %v954
      %v986 = vunpack.c.l.b16 %v960
      %v987 = vunpack.c.h.b16 %v960
      %v988 = vunpack.c.l.b16 %v961
      %v989 = vunpack.c.h.b16 %v961
      %v990 = vunpack.c.l.b16 %v962
      %v991 = vunpack.c.h.b16 %v962
      %v992 = vunpack.c.l.b16 %v963
      %v993 = vunpack.c.h.b16 %v963
      %v994 = vunpack.c.l.b16 %v964
      %v995 = vunpack.c.h.b16 %v964
      %v996 = vunpack.c.l.b16 %v965
      %v997 = vunpack.c.h.b16 %v965
      %v998 = vunpack.c.l.b16 %v966
      %v999 = vunpack.c.h.b16 %v966
      %v1000 = vunpack.c.l.b16 %v967
      %v1001 = vunpack.c.h.b16 %v967
      %v1002 = vunpack.c.l.b16 %v968
      %v1003 = vunpack.c.h.b16 %v968
      %v1004 = vunpack.c.l.b16 %v969
      %v1005 = vunpack.c.h.b16 %v969
      %v1006 = vunpack.c.l.b16 %v970
      %v1007 = vunpack.c.h.b16 %v970
      %v1008 = vunpack.c.l.b16 %v971
      %v1009 = vunpack.c.h.b16 %v971
      %v1010 = vunpack.c.l.b16 %v972
      %v1011 = vunpack.c.h.b16 %v972
      %v1012 = vpack.c.b16 %v986, %v986
      %v1013 = vpack.c.b16 %v987, %v987
      %v1014 = vpack.c.b16 %v988, %v988
      %v1015 = vpack.c.b16 %v989, %v989
      %v1016 = vpack.c.b16 %v990, %v990
      %v1017 = vpack.c.b16 %v991, %v991
      %v1018 = vpack.c.b16 %v992, %v992
      %v1019 = vpack.c.b16 %v993, %v993
      %v1020 = vpack.c.b16 %v994, %v994
      %v1021 = vpack.c.b16 %v995, %v995
      %v1022 = vpack.c.b16 %v996, %v996
      %v1023 = vpack.c.b16 %v997, %v997
      %v1024 = vpack.c.b16 %v998, %v998
      %v1025 = vpack.c.b16 %v999, %v999
      %v1026 = vpack.c.b16 %v1000, %v1000
      %v1027 = vpack.c.b16 %v1001, %v1001
      %v1028 = vpack.c.b16 %v1002, %v1002
      %v1029 = vpack.c.b16 %v1003, %v1003
      %v1030 = vpack.c.b16 %v1004, %v1004
      %v1031 = vpack.c.b16 %v1005, %v1005
      %v1032 = vpack.c.b16 %v1006, %v1006
      %v1033 = vpack.c.b16 %v1007, %v1007
      %v1034 = vpack.c.b16 %v1008, %v1008
      %v1035 = vpack.c.b16 %v1009, %v1009
      %v1036 = vpack.c.b16 %v1010, %v1010
      %v1037 = vpack.c.b16 %v1011, %v1011
      %1064 = vst [vmem:[#allocation2 + $0x68] sm:$0xf] %v1012
      %1065 = vst [vmem:[#allocation2 + $0x6c] sm:$0xf] %v1013
      %1066 = vst [vmem:[#allocation2 + $0x70] sm:$0xf] %v1014
      %1067 = vst [vmem:[#allocation2 + $0x74] sm:$0xf] %v1015
      %1068 = vst [vmem:[#allocation2 + $0x78] sm:$0xf] %v1016
      %1069 = vst [vmem:[#allocation2 + $0x7c] sm:$0xf] %v1017
      %1070 = vst [vmem:[#allocation2 + $0x80] sm:$0xf] %v1018
      %1071 = vst [vmem:[#allocation2 + $0x84] sm:$0xf] %v1019
      %1072 = vst [vmem:[#allocation2 + $0x88] sm:$0xf] %v1020
      %1073 = vst [vmem:[#allocation2 + $0x8c] sm:$0xf] %v1021
      %1074 = vst [vmem:[#allocation2 + $0x90] sm:$0xf] %v1022
      %1075 = vst [vmem:[#allocation2 + $0x94] sm:$0xf] %v1023
      %1076 = vst [vmem:[#allocation2 + $0x98] sm:$0xf] %v1024
      %1077 = vst [vmem:[#allocation2 + $0x9c] sm:$0xf] %v1025
      %1078 = vst [vmem:[#allocation2 + $0xa0] sm:$0xf] %v1026
      %1079 = vst [vmem:[#allocation2 + $0xa4] sm:$0xf] %v1027
      %1080 = vst [vmem:[#allocation2 + $0xa8] sm:$0xf] %v1028
      %1081 = vst [vmem:[#allocation2 + $0xac] sm:$0xf] %v1029
      %1082 = vst [vmem:[#allocation2 + $0xb0] sm:$0xf] %v1030
      %1083 = vst [vmem:[#allocation2 + $0xb4] sm:$0xf] %v1031
      %1084 = vst [vmem:[#allocation2 + $0xb8] sm:$0xf] %v1032
      %1085 = vst [vmem:[#allocation2 + $0xbc] sm:$0xf] %v1033
      %1086 = vst [vmem:[#allocation2 + $0xc0] sm:$0xf] %v1034
      %1087 = vst [vmem:[#allocation2 + $0xc4] sm:$0xf] %v1035
      %1088 = vst [vmem:[#allocation2 + $0xc8] sm:$0xf] %v1036
      %1089 = vst [vmem:[#allocation2 + $0xcc] sm:$0xf] %v1037
      %v1090 = vld [vmem:[%s273 + $0xd0] sm:$0xf]
      %v1091 = vld [vmem:[%s273 + $0xd4] sm:$0xf]
      %v1092 = vld [vmem:[%s273 + $0xd8] sm:$0xf]
      %v1093 = vld [vmem:[%s273 + $0xdc] sm:$0xf]
      %v1094 = vld [vmem:[%s273 + $0xe0] sm:$0xf]
      %v1095 = vld [vmem:[%s273 + $0xe4] sm:$0xf]
      %v1096 = vld [vmem:[%s273 + $0xe8] sm:$0xf]
      %v1097 = vld [vmem:[%s273 + $0xec] sm:$0xf]
      %v1098 = vld [vmem:[%s273 + $0xf0] sm:$0xf]
      %v1099 = vld [vmem:[%s273 + $0xf4] sm:$0xf]
      %v1100 = vld [vmem:[%s273 + $0xf8] sm:$0xf]
      %v1101 = vld [vmem:[%s273 + $0xfc] sm:$0xf]
      %v1102 = vld [vmem:[%s273 + $0x100] sm:$0xf]
      %v1103 = vld [vmem:[%s273 + $0x104] sm:$0xf]
      %v1104 = vld [vmem:[%s273 + $0x108] sm:$0xf]
      %v1105 = vld [vmem:[%s273 + $0x10c] sm:$0xf]
      %v1106 = vld [vmem:[%s273 + $0x110] sm:$0xf]
      %v1107 = vld [vmem:[%s273 + $0x114] sm:$0xf]
      %v1108 = vld [vmem:[%s273 + $0x118] sm:$0xf]
      %v1109 = vld [vmem:[%s273 + $0x11c] sm:$0xf]
      %v1110 = vld [vmem:[%s273 + $0x120] sm:$0xf]
      %v1111 = vld [vmem:[%s273 + $0x124] sm:$0xf]
      %v1112 = vld [vmem:[%s273 + $0x128] sm:$0xf]
      %v1113 = vld [vmem:[%s273 + $0x12c] sm:$0xf]
      %v1114 = vld [vmem:[%s273 + $0x130] sm:$0xf]
      %v1115 = vld [vmem:[%s273 + $0x134] sm:$0xf]
      %v1142 = vunpack.c.l.b16 %v1090
      %v1143 = vunpack.c.l.b16 %v1091
      %v1144 = vunpack.c.l.b16 %v1092
      %v1145 = vunpack.c.l.b16 %v1093
      %v1146 = vunpack.c.l.b16 %v1094
      %v1147 = vunpack.c.l.b16 %v1095
      %v1148 = vunpack.c.l.b16 %v1096
      %v1149 = vunpack.c.l.b16 %v1097
      %v1150 = vunpack.c.l.b16 %v1098
      %v1151 = vunpack.c.l.b16 %v1099
      %v1152 = vunpack.c.l.b16 %v1100
      %v1153 = vunpack.c.l.b16 %v1101
      %v1154 = vunpack.c.l.b16 %v1102
      %v1155 = vunpack.c.l.b16 %v1103
      %v1156 = vunpack.c.l.b16 %v1104
      %v1157 = vunpack.c.l.b16 %v1105
      %v1158 = vunpack.c.l.b16 %v1106
      %v1159 = vunpack.c.l.b16 %v1107
      %v1160 = vunpack.c.l.b16 %v1108
      %v1161 = vunpack.c.l.b16 %v1109
      %v1162 = vunpack.c.l.b16 %v1110
      %v1163 = vunpack.c.l.b16 %v1111
      %v1164 = vunpack.c.l.b16 %v1112
      %v1165 = vunpack.c.l.b16 %v1113
      %v1166 = vunpack.c.l.b16 %v1114
      %v1167 = vunpack.c.l.b16 %v1115
      %v1168 = vpack.c.b16 %v1143, %v1142
      %v1169 = vpack.c.b16 %v1145, %v1144
      %v1170 = vpack.c.b16 %v1147, %v1146
      %v1171 = vpack.c.b16 %v1149, %v1148
      %v1172 = vpack.c.b16 %v1151, %v1150
      %v1173 = vpack.c.b16 %v1153, %v1152
      %v1174 = vpack.c.b16 %v1155, %v1154
      %v1175 = vpack.c.b16 %v1157, %v1156
      %v1176 = vpack.c.b16 %v1159, %v1158
      %v1177 = vpack.c.b16 %v1161, %v1160
      %v1178 = vpack.c.b16 %v1163, %v1162
      %v1179 = vpack.c.b16 %v1165, %v1164
      %v1180 = vpack.c.b16 %v1167, %v1166
      %v1182 = vsel %vm386, %v1168, 0
      %v1185 = vsel %vm386, %v1169, 0
      %v1188 = vsel %vm386, %v1170, 0
      %v1191 = vsel %vm386, %v1171, 0
      %v1194 = vsel %vm386, %v1172, 0
      %v1197 = vsel %vm386, %v1173, 0
      %v1200 = vsel %vm386, %v1174, 0
      %v1203 = vsel %vm386, %v1175, 0
      %v1206 = vsel %vm386, %v1176, 0
      %v1209 = vsel %vm386, %v1177, 0
      %v1212 = vsel %vm386, %v1178, 0
      %v1215 = vsel %vm386, %v1179, 0
      %v1218 = vsel %vm386, %v1180, 0
      %1220 = vmatprep.subr.bf16.mxu0 0
      %1221 = vmatpush1.bf16.msra.mxu0 0
      %1222 = vmatprep.subr.bf16.mxu0 0
      %1223 = vmatpush1.bf16.msra.mxu0 0
      %1224 = vmatprep.subr.bf16.mxu0 0
      %1225 = vmatpush1.bf16.msra.mxu0 0
      %1226 = vmatprep.subr.bf16.mxu0 0
      %1227 = vmatpush1.bf16.msra.mxu0 0
      %1228 = vmatprep.subr.bf16.mxu0 0
      %1229 = vmatpush1.bf16.msra.mxu0 0
      %1230 = vmatprep.subr.bf16.mxu0 0
      %1231 = vmatpush1.bf16.msra.mxu0 0
      %1232 = vmatprep.subr.bf16.mxu0 0
      %1233 = vmatpush1.bf16.msra.mxu0 0
      %1234 = vmatprep.subr.bf16.mxu0 0
      %1235 = vmatpush1.bf16.msra.mxu0 %v384
      %1236 = vmatprep.subr.bf16.mxu0 0
      %1237 = vmatpush2.bf16.msra.mxu0 0
      %1238 = vmatprep.subr.bf16.mxu0 0
      %1239 = vmatpush2.bf16.msra.mxu0 0
      %1240 = vmatprep.subr.bf16.mxu0 0
      %1241 = vmatpush2.bf16.msra.mxu0 0
      %1242 = vmatprep.subr.bf16.mxu0 0
      %1243 = vmatpush2.bf16.msra.mxu0 0
      %1244 = vmatprep.subr.bf16.mxu0 0
      %1245 = vmatpush2.bf16.msra.mxu0 0
      %1246 = vmatprep.subr.bf16.mxu0 0
      %1247 = vmatpush2.bf16.msra.mxu0 0
      %1248 = vmatprep.subr.bf16.mxu0 0
      %1249 = vmatpush2.bf16.msra.mxu0 0
      %1250 = vmatprep.subr.bf16.mxu0 0
      %1251 = vmatpush2.bf16.msra.mxu0 0
      %1252 = vmatprep.mubr.bf16.mxu0 0
      %1253 = vmatmul.mubr.bf16.gmra.mxu0 %v1182
      %v1254 = vpop.f32.mrf.mxu0
      %v1255 = vadd.f32 %v313, %v1254
      %v1256 = vpop.f32.mrf.mxu0
      %v1257 = vpop.f32.mrf.mxu0
      %v1258 = vadd.f32 %v313, %v1257
      %v1259 = vpop.f32.mrf.mxu0
      %1260 = vmatprep.mubr.bf16.mxu0 0
      %1261 = vmatmul.mubr.bf16.gmra.mxu0 %v1185
      %v1262 = vpop.f32.mrf.mxu0
      %v1263 = vadd.f32 %v313, %v1262
      %v1264 = vpop.f32.mrf.mxu0
      %v1265 = vpop.f32.mrf.mxu0
      %v1266 = vadd.f32 %v313, %v1265
      %v1267 = vpop.f32.mrf.mxu0
      %1268 = vmatprep.mubr.bf16.mxu0 0
      %1269 = vmatmul.mubr.bf16.gmra.mxu0 %v1188
      %v1270 = vpop.f32.mrf.mxu0
      %v1271 = vadd.f32 %v313, %v1270
      %v1272 = vpop.f32.mrf.mxu0
      %v1273 = vpop.f32.mrf.mxu0
      %v1274 = vadd.f32 %v313, %v1273
      %v1275 = vpop.f32.mrf.mxu0
      %1276 = vmatprep.mubr.bf16.mxu0 0
      %1277 = vmatmul.mubr.bf16.gmra.mxu0 %v1191
      %v1278 = vpop.f32.mrf.mxu0
      %v1279 = vadd.f32 %v313, %v1278
      %v1280 = vpop.f32.mrf.mxu0
      %v1281 = vpop.f32.mrf.mxu0
      %v1282 = vadd.f32 %v313, %v1281
      %v1283 = vpop.f32.mrf.mxu0
      %1284 = vmatprep.mubr.bf16.mxu0 0
      %1285 = vmatmul.mubr.bf16.gmra.mxu0 %v1194
      %v1286 = vpop.f32.mrf.mxu0
      %v1287 = vadd.f32 %v313, %v1286
      %v1288 = vpop.f32.mrf.mxu0
      %v1289 = vpop.f32.mrf.mxu0
      %v1290 = vadd.f32 %v313, %v1289
      %v1291 = vpop.f32.mrf.mxu0
      %1292 = vmatprep.mubr.bf16.mxu0 0
      %1293 = vmatmul.mubr.bf16.gmra.mxu0 %v1197
      %v1294 = vpop.f32.mrf.mxu0
      %v1295 = vadd.f32 %v313, %v1294
      %v1296 = vpop.f32.mrf.mxu0
      %v1297 = vpop.f32.mrf.mxu0
      %v1298 = vadd.f32 %v313, %v1297
      %v1299 = vpop.f32.mrf.mxu0
      %1300 = vmatprep.mubr.bf16.mxu0 0
      %1301 = vmatmul.mubr.bf16.gmra.mxu0 %v1200
      %v1302 = vpop.f32.mrf.mxu0
      %v1303 = vadd.f32 %v313, %v1302
      %v1304 = vpop.f32.mrf.mxu0
      %v1305 = vpop.f32.mrf.mxu0
      %v1306 = vadd.f32 %v313, %v1305
      %v1307 = vpop.f32.mrf.mxu0
      %1308 = vmatprep.mubr.bf16.mxu0 0
      %1309 = vmatmul.mubr.bf16.gmra.mxu0 %v1203
      %v1310 = vpop.f32.mrf.mxu0
      %v1311 = vadd.f32 %v313, %v1310
      %v1312 = vpop.f32.mrf.mxu0
      %v1313 = vpop.f32.mrf.mxu0
      %v1314 = vadd.f32 %v313, %v1313
      %v1315 = vpop.f32.mrf.mxu0
      %1316 = vmatprep.mubr.bf16.mxu0 0
      %1317 = vmatmul.mubr.bf16.gmra.mxu0 %v1206
      %v1318 = vpop.f32.mrf.mxu0
      %v1319 = vadd.f32 %v313, %v1318
      %v1320 = vpop.f32.mrf.mxu0
      %v1321 = vpop.f32.mrf.mxu0
      %v1322 = vadd.f32 %v313, %v1321
      %v1323 = vpop.f32.mrf.mxu0
      %1324 = vmatprep.mubr.bf16.mxu0 0
      %1325 = vmatmul.mubr.bf16.gmra.mxu0 %v1209
      %v1326 = vpop.f32.mrf.mxu0
      %v1327 = vadd.f32 %v313, %v1326
      %v1328 = vpop.f32.mrf.mxu0
      %v1329 = vpop.f32.mrf.mxu0
      %v1330 = vadd.f32 %v313, %v1329
      %v1331 = vpop.f32.mrf.mxu0
      %1332 = vmatprep.mubr.bf16.mxu0 0
      %1333 = vmatmul.mubr.bf16.gmra.mxu0 %v1212
      %v1334 = vpop.f32.mrf.mxu0
      %v1335 = vadd.f32 %v313, %v1334
      %v1336 = vpop.f32.mrf.mxu0
      %v1337 = vpop.f32.mrf.mxu0
      %v1338 = vadd.f32 %v313, %v1337
      %v1339 = vpop.f32.mrf.mxu0
      %1340 = vmatprep.mubr.bf16.mxu0 0
      %1341 = vmatmul.mubr.bf16.gmra.mxu0 %v1215
      %v1342 = vpop.f32.mrf.mxu0
      %v1343 = vadd.f32 %v313, %v1342
      %v1344 = vpop.f32.mrf.mxu0
      %v1345 = vpop.f32.mrf.mxu0
      %v1346 = vadd.f32 %v313, %v1345
      %v1347 = vpop.f32.mrf.mxu0
      %1348 = vmatprep.mubr.bf16.mxu0 0
      %1349 = vmatmul.mubr.bf16.gmra.mxu0 %v1218
      %v1350 = vpop.f32.mrf.mxu0
      %v1351 = vadd.f32 %v313, %v1350
      %v1352 = vpop.f32.mrf.mxu0
      %v1353 = vpop.f32.mrf.mxu0
      %v1354 = vadd.f32 %v313, %v1353
      %v1355 = vpop.f32.mrf.mxu0
      %1356 = vdwg.mxu0
      %v1357 = vpack.c.bf16 %v1258, %v1255
      %v1358 = vpack.c.bf16 %v1266, %v1263
      %v1359 = vpack.c.bf16 %v1274, %v1271
      %v1360 = vpack.c.bf16 %v1282, %v1279
      %v1361 = vpack.c.bf16 %v1290, %v1287
      %v1362 = vpack.c.bf16 %v1298, %v1295
      %v1363 = vpack.c.bf16 %v1306, %v1303
      %v1364 = vpack.c.bf16 %v1314, %v1311
      %v1365 = vpack.c.bf16 %v1322, %v1319
      %v1366 = vpack.c.bf16 %v1330, %v1327
      %v1367 = vpack.c.bf16 %v1338, %v1335
      %v1368 = vpack.c.bf16 %v1346, %v1343
      %v1369 = vpack.c.bf16 %v1354, %v1351
      %v1383 = vunpack.c.l.b16 %v1357
      %v1384 = vunpack.c.h.b16 %v1357
      %v1385 = vunpack.c.l.b16 %v1358
      %v1386 = vunpack.c.h.b16 %v1358
      %v1387 = vunpack.c.l.b16 %v1359
      %v1388 = vunpack.c.h.b16 %v1359
      %v1389 = vunpack.c.l.b16 %v1360
      %v1390 = vunpack.c.h.b16 %v1360
      %v1391 = vunpack.c.l.b16 %v1361
      %v1392 = vunpack.c.h.b16 %v1361
      %v1393 = vunpack.c.l.b16 %v1362
      %v1394 = vunpack.c.h.b16 %v1362
      %v1395 = vunpack.c.l.b16 %v1363
      %v1396 = vunpack.c.h.b16 %v1363
      %v1397 = vunpack.c.l.b16 %v1364
      %v1398 = vunpack.c.h.b16 %v1364
      %v1399 = vunpack.c.l.b16 %v1365
      %v1400 = vunpack.c.h.b16 %v1365
      %v1401 = vunpack.c.l.b16 %v1366
      %v1402 = vunpack.c.h.b16 %v1366
      %v1403 = vunpack.c.l.b16 %v1367
      %v1404 = vunpack.c.h.b16 %v1367
      %v1405 = vunpack.c.l.b16 %v1368
      %v1406 = vunpack.c.h.b16 %v1368
      %v1407 = vunpack.c.l.b16 %v1369
      %v1408 = vunpack.c.h.b16 %v1369
      %v1409 = vpack.c.b16 %v1383, %v1383
      %v1410 = vpack.c.b16 %v1384, %v1384
      %v1411 = vpack.c.b16 %v1385, %v1385
      %v1412 = vpack.c.b16 %v1386, %v1386
      %v1413 = vpack.c.b16 %v1387, %v1387
      %v1414 = vpack.c.b16 %v1388, %v1388
      %v1415 = vpack.c.b16 %v1389, %v1389
      %v1416 = vpack.c.b16 %v1390, %v1390
      %v1417 = vpack.c.b16 %v1391, %v1391
      %v1418 = vpack.c.b16 %v1392, %v1392
      %v1419 = vpack.c.b16 %v1393, %v1393
      %v1420 = vpack.c.b16 %v1394, %v1394
      %v1421 = vpack.c.b16 %v1395, %v1395
      %v1422 = vpack.c.b16 %v1396, %v1396
      %v1423 = vpack.c.b16 %v1397, %v1397
      %v1424 = vpack.c.b16 %v1398, %v1398
      %v1425 = vpack.c.b16 %v1399, %v1399
      %v1426 = vpack.c.b16 %v1400, %v1400
      %v1427 = vpack.c.b16 %v1401, %v1401
      %v1428 = vpack.c.b16 %v1402, %v1402
      %v1429 = vpack.c.b16 %v1403, %v1403
      %v1430 = vpack.c.b16 %v1404, %v1404
      %v1431 = vpack.c.b16 %v1405, %v1405
      %v1432 = vpack.c.b16 %v1406, %v1406
      %v1433 = vpack.c.b16 %v1407, %v1407
      %v1434 = vpack.c.b16 %v1408, %v1408
      %1461 = vst [vmem:[#allocation2 + $0xd0] sm:$0xf] %v1409
      %1462 = vst [vmem:[#allocation2 + $0xd4] sm:$0xf] %v1410
      %1463 = vst [vmem:[#allocation2 + $0xd8] sm:$0xf] %v1411
      %1464 = vst [vmem:[#allocation2 + $0xdc] sm:$0xf] %v1412
      %1465 = vst [vmem:[#allocation2 + $0xe0] sm:$0xf] %v1413
      %1466 = vst [vmem:[#allocation2 + $0xe4] sm:$0xf] %v1414
      %1467 = vst [vmem:[#allocation2 + $0xe8] sm:$0xf] %v1415
      %1468 = vst [vmem:[#allocation2 + $0xec] sm:$0xf] %v1416
      %1469 = vst [vmem:[#allocation2 + $0xf0] sm:$0xf] %v1417
      %1470 = vst [vmem:[#allocation2 + $0xf4] sm:$0xf] %v1418
      %1471 = vst [vmem:[#allocation2 + $0xf8] sm:$0xf] %v1419
      %1472 = vst [vmem:[#allocation2 + $0xfc] sm:$0xf] %v1420
      %1473 = vst [vmem:[#allocation2 + $0x100] sm:$0xf] %v1421
      %1474 = vst [vmem:[#allocation2 + $0x104] sm:$0xf] %v1422
      %1475 = vst [vmem:[#allocation2 + $0x108] sm:$0xf] %v1423
      %1476 = vst [vmem:[#allocation2 + $0x10c] sm:$0xf] %v1424
      %1477 = vst [vmem:[#allocation2 + $0x110] sm:$0xf] %v1425
      %1478 = vst [vmem:[#allocation2 + $0x114] sm:$0xf] %v1426
      %1479 = vst [vmem:[#allocation2 + $0x118] sm:$0xf] %v1427
      %1480 = vst [vmem:[#allocation2 + $0x11c] sm:$0xf] %v1428
      %1481 = vst [vmem:[#allocation2 + $0x120] sm:$0xf] %v1429
      %1482 = vst [vmem:[#allocation2 + $0x124] sm:$0xf] %v1430
      %1483 = vst [vmem:[#allocation2 + $0x128] sm:$0xf] %v1431
      %1484 = vst [vmem:[#allocation2 + $0x12c] sm:$0xf] %v1432
      %1485 = vst [vmem:[#allocation2 + $0x130] sm:$0xf] %v1433
      %1486 = vst [vmem:[#allocation2 + $0x134] sm:$0xf] %v1434
      %v1487 = vld [vmem:[%s273 + $0x138] sm:$0xf]
      %v1488 = vld [vmem:[%s273 + $0x13c] sm:$0xf]
      %v1489 = vld [vmem:[%s273 + $0x140] sm:$0xf]
      %v1490 = vld [vmem:[%s273 + $0x144] sm:$0xf]
      %v1491 = vld [vmem:[%s273 + $0x148] sm:$0xf]
      %v1492 = vld [vmem:[%s273 + $0x14c] sm:$0xf]
      %v1493 = vld [vmem:[%s273 + $0x150] sm:$0xf]
      %v1494 = vld [vmem:[%s273 + $0x154] sm:$0xf]
      %v1495 = vld [vmem:[%s273 + $0x158] sm:$0xf]
      %v1496 = vld [vmem:[%s273 + $0x15c] sm:$0xf]
      %v1497 = vld [vmem:[%s273 + $0x160] sm:$0xf]
      %v1498 = vld [vmem:[%s273 + $0x164] sm:$0xf]
      %v1499 = vld [vmem:[%s273 + $0x168] sm:$0xf]
      %v1500 = vld [vmem:[%s273 + $0x16c] sm:$0xf]
      %v1501 = vld [vmem:[%s273 + $0x170] sm:$0xf]
      %v1502 = vld [vmem:[%s273 + $0x174] sm:$0xf]
      %v1503 = vld [vmem:[%s273 + $0x178] sm:$0xf]
      %v1504 = vld [vmem:[%s273 + $0x17c] sm:$0xf]
      %v1505 = vld [vmem:[%s273 + $0x180] sm:$0xf]
      %v1506 = vld [vmem:[%s273 + $0x184] sm:$0xf]
      %v1507 = vld [vmem:[%s273 + $0x188] sm:$0xf]
      %v1508 = vld [vmem:[%s273 + $0x18c] sm:$0xf]
      %v1509 = vld [vmem:[%s273 + $0x190] sm:$0xf]
      %v1510 = vld [vmem:[%s273 + $0x194] sm:$0xf]
      %v1511 = vld [vmem:[%s273 + $0x198] sm:$0xf]
      %v1512 = vld [vmem:[%s273 + $0x19c] sm:$0xf]
      %v1539 = vunpack.c.l.b16 %v1487
      %v1540 = vunpack.c.l.b16 %v1488
      %v1541 = vunpack.c.l.b16 %v1489
      %v1542 = vunpack.c.l.b16 %v1490
      %v1543 = vunpack.c.l.b16 %v1491
      %v1544 = vunpack.c.l.b16 %v1492
      %v1545 = vunpack.c.l.b16 %v1493
      %v1546 = vunpack.c.l.b16 %v1494
      %v1547 = vunpack.c.l.b16 %v1495
      %v1548 = vunpack.c.l.b16 %v1496
      %v1549 = vunpack.c.l.b16 %v1497
      %v1550 = vunpack.c.l.b16 %v1498
      %v1551 = vunpack.c.l.b16 %v1499
      %v1552 = vunpack.c.l.b16 %v1500
      %v1553 = vunpack.c.l.b16 %v1501
      %v1554 = vunpack.c.l.b16 %v1502
      %v1555 = vunpack.c.l.b16 %v1503
      %v1556 = vunpack.c.l.b16 %v1504
      %v1557 = vunpack.c.l.b16 %v1505
      %v1558 = vunpack.c.l.b16 %v1506
      %v1559 = vunpack.c.l.b16 %v1507
      %v1560 = vunpack.c.l.b16 %v1508
      %v1561 = vunpack.c.l.b16 %v1509
      %v1562 = vunpack.c.l.b16 %v1510
      %v1563 = vunpack.c.l.b16 %v1511
      %v1564 = vunpack.c.l.b16 %v1512
      %v1565 = vpack.c.b16 %v1540, %v1539
      %v1566 = vpack.c.b16 %v1542, %v1541
      %v1567 = vpack.c.b16 %v1544, %v1543
      %v1568 = vpack.c.b16 %v1546, %v1545
      %v1569 = vpack.c.b16 %v1548, %v1547
      %v1570 = vpack.c.b16 %v1550, %v1549
      %v1571 = vpack.c.b16 %v1552, %v1551
      %v1572 = vpack.c.b16 %v1554, %v1553
      %v1573 = vpack.c.b16 %v1556, %v1555
      %v1574 = vpack.c.b16 %v1558, %v1557
      %v1575 = vpack.c.b16 %v1560, %v1559
      %v1576 = vpack.c.b16 %v1562, %v1561
      %v1577 = vpack.c.b16 %v1564, %v1563
      %v1579 = vsel %vm386, %v1565, 0
      %v1582 = vsel %vm386, %v1566, 0
      %v1585 = vsel %vm386, %v1567, 0
      %v1588 = vsel %vm386, %v1568, 0
      %v1591 = vsel %vm386, %v1569, 0
      %v1594 = vsel %vm386, %v1570, 0
      %v1597 = vsel %vm386, %v1571, 0
      %v1600 = vsel %vm386, %v1572, 0
      %v1603 = vsel %vm386, %v1573, 0
      %v1606 = vsel %vm386, %v1574, 0
      %v1609 = vsel %vm386, %v1575, 0
      %v1612 = vsel %vm386, %v1576, 0
      %v1615 = vsel %vm386, %v1577, 0
      %1617 = vmatprep.subr.bf16.mxu0 0
      %1618 = vmatpush1.bf16.msra.mxu0 0
      %1619 = vmatprep.subr.bf16.mxu0 0
      %1620 = vmatpush1.bf16.msra.mxu0 0
      %1621 = vmatprep.subr.bf16.mxu0 0
      %1622 = vmatpush1.bf16.msra.mxu0 0
      %1623 = vmatprep.subr.bf16.mxu0 0
      %1624 = vmatpush1.bf16.msra.mxu0 0
      %1625 = vmatprep.subr.bf16.mxu0 0
      %1626 = vmatpush1.bf16.msra.mxu0 0
      %1627 = vmatprep.subr.bf16.mxu0 0
      %1628 = vmatpush1.bf16.msra.mxu0 0
      %1629 = vmatprep.subr.bf16.mxu0 0
      %1630 = vmatpush1.bf16.msra.mxu0 0
      %1631 = vmatprep.subr.bf16.mxu0 0
      %1632 = vmatpush1.bf16.msra.mxu0 %v384
      %1633 = vmatprep.subr.bf16.mxu0 0
      %1634 = vmatpush2.bf16.msra.mxu0 0
      %1635 = vmatprep.subr.bf16.mxu0 0
      %1636 = vmatpush2.bf16.msra.mxu0 0
      %1637 = vmatprep.subr.bf16.mxu0 0
      %1638 = vmatpush2.bf16.msra.mxu0 0
      %1639 = vmatprep.subr.bf16.mxu0 0
      %1640 = vmatpush2.bf16.msra.mxu0 0
      %1641 = vmatprep.subr.bf16.mxu0 0
      %1642 = vmatpush2.bf16.msra.mxu0 0
      %1643 = vmatprep.subr.bf16.mxu0 0
      %1644 = vmatpush2.bf16.msra.mxu0 0
      %1645 = vmatprep.subr.bf16.mxu0 0
      %1646 = vmatpush2.bf16.msra.mxu0 0
      %1647 = vmatprep.subr.bf16.mxu0 0
      %1648 = vmatpush2.bf16.msra.mxu0 0
      %1649 = vmatprep.mubr.bf16.mxu0 0
      %1650 = vmatmul.mubr.bf16.gmra.mxu0 %v1579
      %v1651 = vpop.f32.mrf.mxu0
      %v1652 = vadd.f32 %v313, %v1651
      %v1653 = vpop.f32.mrf.mxu0
      %v1654 = vpop.f32.mrf.mxu0
      %v1655 = vadd.f32 %v313, %v1654
      %v1656 = vpop.f32.mrf.mxu0
      %1657 = vmatprep.mubr.bf16.mxu0 0
      %1658 = vmatmul.mubr.bf16.gmra.mxu0 %v1582
      %v1659 = vpop.f32.mrf.mxu0
      %v1660 = vadd.f32 %v313, %v1659
      %v1661 = vpop.f32.mrf.mxu0
      %v1662 = vpop.f32.mrf.mxu0
      %v1663 = vadd.f32 %v313, %v1662
      %v1664 = vpop.f32.mrf.mxu0
      %1665 = vmatprep.mubr.bf16.mxu0 0
      %1666 = vmatmul.mubr.bf16.gmra.mxu0 %v1585
      %v1667 = vpop.f32.mrf.mxu0
      %v1668 = vadd.f32 %v313, %v1667
      %v1669 = vpop.f32.mrf.mxu0
      %v1670 = vpop.f32.mrf.mxu0
      %v1671 = vadd.f32 %v313, %v1670
      %v1672 = vpop.f32.mrf.mxu0
      %1673 = vmatprep.mubr.bf16.mxu0 0
      %1674 = vmatmul.mubr.bf16.gmra.mxu0 %v1588
      %v1675 = vpop.f32.mrf.mxu0
      %v1676 = vadd.f32 %v313, %v1675
      %v1677 = vpop.f32.mrf.mxu0
      %v1678 = vpop.f32.mrf.mxu0
      %v1679 = vadd.f32 %v313, %v1678
      %v1680 = vpop.f32.mrf.mxu0
      %1681 = vmatprep.mubr.bf16.mxu0 0
      %1682 = vmatmul.mubr.bf16.gmra.mxu0 %v1591
      %v1683 = vpop.f32.mrf.mxu0
      %v1684 = vadd.f32 %v313, %v1683
      %v1685 = vpop.f32.mrf.mxu0
      %v1686 = vpop.f32.mrf.mxu0
      %v1687 = vadd.f32 %v313, %v1686
      %v1688 = vpop.f32.mrf.mxu0
      %1689 = vmatprep.mubr.bf16.mxu0 0
      %1690 = vmatmul.mubr.bf16.gmra.mxu0 %v1594
      %v1691 = vpop.f32.mrf.mxu0
      %v1692 = vadd.f32 %v313, %v1691
      %v1693 = vpop.f32.mrf.mxu0
      %v1694 = vpop.f32.mrf.mxu0
      %v1695 = vadd.f32 %v313, %v1694
      %v1696 = vpop.f32.mrf.mxu0
      %1697 = vmatprep.mubr.bf16.mxu0 0
      %1698 = vmatmul.mubr.bf16.gmra.mxu0 %v1597
      %v1699 = vpop.f32.mrf.mxu0
      %v1700 = vadd.f32 %v313, %v1699
      %v1701 = vpop.f32.mrf.mxu0
      %v1702 = vpop.f32.mrf.mxu0
      %v1703 = vadd.f32 %v313, %v1702
      %v1704 = vpop.f32.mrf.mxu0
      %1705 = vmatprep.mubr.bf16.mxu0 0
      %1706 = vmatmul.mubr.bf16.gmra.mxu0 %v1600
      %v1707 = vpop.f32.mrf.mxu0
      %v1708 = vadd.f32 %v313, %v1707
      %v1709 = vpop.f32.mrf.mxu0
      %v1710 = vpop.f32.mrf.mxu0
      %v1711 = vadd.f32 %v313, %v1710
      %v1712 = vpop.f32.mrf.mxu0
      %1713 = vmatprep.mubr.bf16.mxu0 0
      %1714 = vmatmul.mubr.bf16.gmra.mxu0 %v1603
      %v1715 = vpop.f32.mrf.mxu0
      %v1716 = vadd.f32 %v313, %v1715
      %v1717 = vpop.f32.mrf.mxu0
      %v1718 = vpop.f32.mrf.mxu0
      %v1719 = vadd.f32 %v313, %v1718
      %v1720 = vpop.f32.mrf.mxu0
      %1721 = vmatprep.mubr.bf16.mxu0 0
      %1722 = vmatmul.mubr.bf16.gmra.mxu0 %v1606
      %v1723 = vpop.f32.mrf.mxu0
      %v1724 = vadd.f32 %v313, %v1723
      %v1725 = vpop.f32.mrf.mxu0
      %v1726 = vpop.f32.mrf.mxu0
      %v1727 = vadd.f32 %v313, %v1726
      %v1728 = vpop.f32.mrf.mxu0
      %1729 = vmatprep.mubr.bf16.mxu0 0
      %1730 = vmatmul.mubr.bf16.gmra.mxu0 %v1609
      %v1731 = vpop.f32.mrf.mxu0
      %v1732 = vadd.f32 %v313, %v1731
      %v1733 = vpop.f32.mrf.mxu0
      %v1734 = vpop.f32.mrf.mxu0
      %v1735 = vadd.f32 %v313, %v1734
      %v1736 = vpop.f32.mrf.mxu0
      %1737 = vmatprep.mubr.bf16.mxu0 0
      %1738 = vmatmul.mubr.bf16.gmra.mxu0 %v1612
      %v1739 = vpop.f32.mrf.mxu0
      %v1740 = vadd.f32 %v313, %v1739
      %v1741 = vpop.f32.mrf.mxu0
      %v1742 = vpop.f32.mrf.mxu0
      %v1743 = vadd.f32 %v313, %v1742
      %v1744 = vpop.f32.mrf.mxu0
      %1745 = vmatprep.mubr.bf16.mxu0 0
      %1746 = vmatmul.mubr.bf16.gmra.mxu0 %v1615
      %v1747 = vpop.f32.mrf.mxu0
      %v1748 = vadd.f32 %v313, %v1747
      %v1749 = vpop.f32.mrf.mxu0
      %v1750 = vpop.f32.mrf.mxu0
      %v1751 = vadd.f32 %v313, %v1750
      %v1752 = vpop.f32.mrf.mxu0
      %1753 = vdwg.mxu0
      %v1754 = vpack.c.bf16 %v1655, %v1652
      %v1755 = vpack.c.bf16 %v1663, %v1660
      %v1756 = vpack.c.bf16 %v1671, %v1668
      %v1757 = vpack.c.bf16 %v1679, %v1676
      %v1758 = vpack.c.bf16 %v1687, %v1684
      %v1759 = vpack.c.bf16 %v1695, %v1692
      %v1760 = vpack.c.bf16 %v1703, %v1700
      %v1761 = vpack.c.bf16 %v1711, %v1708
      %v1762 = vpack.c.bf16 %v1719, %v1716
      %v1763 = vpack.c.bf16 %v1727, %v1724
      %v1764 = vpack.c.bf16 %v1735, %v1732
      %v1765 = vpack.c.bf16 %v1743, %v1740
      %v1766 = vpack.c.bf16 %v1751, %v1748
      %v1780 = vunpack.c.l.b16 %v1754
      %v1781 = vunpack.c.h.b16 %v1754
      %v1782 = vunpack.c.l.b16 %v1755
      %v1783 = vunpack.c.h.b16 %v1755
      %v1784 = vunpack.c.l.b16 %v1756
      %v1785 = vunpack.c.h.b16 %v1756
      %v1786 = vunpack.c.l.b16 %v1757
      %v1787 = vunpack.c.h.b16 %v1757
      %v1788 = vunpack.c.l.b16 %v1758
      %v1789 = vunpack.c.h.b16 %v1758
      %v1790 = vunpack.c.l.b16 %v1759
      %v1791 = vunpack.c.h.b16 %v1759
      %v1792 = vunpack.c.l.b16 %v1760
      %v1793 = vunpack.c.h.b16 %v1760
      %v1794 = vunpack.c.l.b16 %v1761
      %v1795 = vunpack.c.h.b16 %v1761
      %v1796 = vunpack.c.l.b16 %v1762
      %v1797 = vunpack.c.h.b16 %v1762
      %v1798 = vunpack.c.l.b16 %v1763
      %v1799 = vunpack.c.h.b16 %v1763
      %v1800 = vunpack.c.l.b16 %v1764
      %v1801 = vunpack.c.h.b16 %v1764
      %v1802 = vunpack.c.l.b16 %v1765
      %v1803 = vunpack.c.h.b16 %v1765
      %v1804 = vunpack.c.l.b16 %v1766
      %v1805 = vunpack.c.h.b16 %v1766
      %v1806 = vpack.c.b16 %v1780, %v1780
      %v1807 = vpack.c.b16 %v1781, %v1781
      %v1808 = vpack.c.b16 %v1782, %v1782
      %v1809 = vpack.c.b16 %v1783, %v1783
      %v1810 = vpack.c.b16 %v1784, %v1784
      %v1811 = vpack.c.b16 %v1785, %v1785
      %v1812 = vpack.c.b16 %v1786, %v1786
      %v1813 = vpack.c.b16 %v1787, %v1787
      %v1814 = vpack.c.b16 %v1788, %v1788
      %v1815 = vpack.c.b16 %v1789, %v1789
      %v1816 = vpack.c.b16 %v1790, %v1790
      %v1817 = vpack.c.b16 %v1791, %v1791
      %v1818 = vpack.c.b16 %v1792, %v1792
      %v1819 = vpack.c.b16 %v1793, %v1793
      %v1820 = vpack.c.b16 %v1794, %v1794
      %v1821 = vpack.c.b16 %v1795, %v1795
      %v1822 = vpack.c.b16 %v1796, %v1796
      %v1823 = vpack.c.b16 %v1797, %v1797
      %v1824 = vpack.c.b16 %v1798, %v1798
      %v1825 = vpack.c.b16 %v1799, %v1799
      %v1826 = vpack.c.b16 %v1800, %v1800
      %v1827 = vpack.c.b16 %v1801, %v1801
      %v1828 = vpack.c.b16 %v1802, %v1802
      %v1829 = vpack.c.b16 %v1803, %v1803
      %v1830 = vpack.c.b16 %v1804, %v1804
      %v1831 = vpack.c.b16 %v1805, %v1805
      %1858 = vst [vmem:[#allocation2 + $0x138] sm:$0xf] %v1806
      %1859 = vst [vmem:[#allocation2 + $0x13c] sm:$0xf] %v1807
      %1860 = vst [vmem:[#allocation2 + $0x140] sm:$0xf] %v1808
      %1861 = vst [vmem:[#allocation2 + $0x144] sm:$0xf] %v1809
      %1862 = vst [vmem:[#allocation2 + $0x148] sm:$0xf] %v1810
      %1863 = vst [vmem:[#allocation2 + $0x14c] sm:$0xf] %v1811
      %1864 = vst [vmem:[#allocation2 + $0x150] sm:$0xf] %v1812
      %1865 = vst [vmem:[#allocation2 + $0x154] sm:$0xf] %v1813
      %1866 = vst [vmem:[#allocation2 + $0x158] sm:$0xf] %v1814
      %1867 = vst [vmem:[#allocation2 + $0x15c] sm:$0xf] %v1815
      %1868 = vst [vmem:[#allocation2 + $0x160] sm:$0xf] %v1816
      %1869 = vst [vmem:[#allocation2 + $0x164] sm:$0xf] %v1817
      %1870 = vst [vmem:[#allocation2 + $0x168] sm:$0xf] %v1818
      %1871 = vst [vmem:[#allocation2 + $0x16c] sm:$0xf] %v1819
      %1872 = vst [vmem:[#allocation2 + $0x170] sm:$0xf] %v1820
      %1873 = vst [vmem:[#allocation2 + $0x174] sm:$0xf] %v1821
      %1874 = vst [vmem:[#allocation2 + $0x178] sm:$0xf] %v1822
      %1875 = vst [vmem:[#allocation2 + $0x17c] sm:$0xf] %v1823
      %1876 = vst [vmem:[#allocation2 + $0x180] sm:$0xf] %v1824
      %1877 = vst [vmem:[#allocation2 + $0x184] sm:$0xf] %v1825
      %1878 = vst [vmem:[#allocation2 + $0x188] sm:$0xf] %v1826
      %1879 = vst [vmem:[#allocation2 + $0x18c] sm:$0xf] %v1827
      %1880 = vst [vmem:[#allocation2 + $0x190] sm:$0xf] %v1828
      %1881 = vst [vmem:[#allocation2 + $0x194] sm:$0xf] %v1829
      %1882 = vst [vmem:[#allocation2 + $0x198] sm:$0xf] %v1830
      %1883 = vst [vmem:[#allocation2 + $0x19c] sm:$0xf] %v1831
      %v1884 = vld [vmem:[#allocation2] sm:$0xf]
      %v1885 = vld [vmem:[#allocation2 + $0x4] sm:$0xf]
      %v1886 = vld [vmem:[#allocation2 + $0x8] sm:$0xf]
      %v1887 = vld [vmem:[#allocation2 + $0xc] sm:$0xf]
      %v1888 = vld [vmem:[#allocation2 + $0x10] sm:$0xf]
      %v1889 = vld [vmem:[#allocation2 + $0x14] sm:$0xf]
      %v1890 = vld [vmem:[#allocation2 + $0x18] sm:$0xf]
      %v1891 = vld [vmem:[#allocation2 + $0x1c] sm:$0xf]
      %v1892 = vld [vmem:[#allocation2 + $0x20] sm:$0xf]
      %v1893 = vld [vmem:[#allocation2 + $0x24] sm:$0xf]
      %v1894 = vld [vmem:[#allocation2 + $0x28] sm:$0xf]
      %v1895 = vld [vmem:[#allocation2 + $0x2c] sm:$0xf]
      %v1896 = vld [vmem:[#allocation2 + $0x30] sm:$0xf]
      %v1897 = vld [vmem:[#allocation2 + $0x34] sm:$0xf]
      %v1898 = vld [vmem:[#allocation2 + $0x38] sm:$0xf]
      %v1899 = vld [vmem:[#allocation2 + $0x3c] sm:$0xf]
      %v1900 = vld [vmem:[#allocation2 + $0x40] sm:$0xf]
      %v1901 = vld [vmem:[#allocation2 + $0x44] sm:$0xf]
      %v1902 = vld [vmem:[#allocation2 + $0x48] sm:$0xf]
      %v1903 = vld [vmem:[#allocation2 + $0x4c] sm:$0xf]
      %v1904 = vld [vmem:[#allocation2 + $0x50] sm:$0xf]
      %v1905 = vld [vmem:[#allocation2 + $0x54] sm:$0xf]
      %v1906 = vld [vmem:[#allocation2 + $0x58] sm:$0xf]
      %v1907 = vld [vmem:[#allocation2 + $0x5c] sm:$0xf]
      %v1908 = vld [vmem:[#allocation2 + $0x60] sm:$0xf]
      %v1909 = vld [vmem:[#allocation2 + $0x64] sm:$0xf]
      %v1910 = vld [vmem:[#allocation2 + $0x68] sm:$0xf]
      %v1911 = vld [vmem:[#allocation2 + $0x6c] sm:$0xf]
      %v1912 = vld [vmem:[#allocation2 + $0x70] sm:$0xf]
      %v1913 = vld [vmem:[#allocation2 + $0x74] sm:$0xf]
      %v1914 = vld [vmem:[#allocation2 + $0x78] sm:$0xf]
      %v1915 = vld [vmem:[#allocation2 + $0x7c] sm:$0xf]
      %v1916 = vld [vmem:[%s3] sm:$0xf]
      %v1917 = vld [vmem:[%s3 + $0x4] sm:$0xf]
      %v1918 = vld [vmem:[%s3 + $0x8] sm:$0xf]
      %v1919 = vld [vmem:[%s3 + $0xc] sm:$0xf]
      %v1920 = vld [vmem:[%s3 + $0x10] sm:$0xf]
      %v1921 = vld [vmem:[%s3 + $0x14] sm:$0xf]
      %v1922 = vld [vmem:[%s3 + $0x18] sm:$0xf]
      %v1923 = vld [vmem:[%s3 + $0x1c] sm:$0xf]
      %v1924 = vld [vmem:[%s3 + $0x20] sm:$0xf]
      %v1925 = vld [vmem:[%s3 + $0x24] sm:$0xf]
      %v1926 = vld [vmem:[%s3 + $0x28] sm:$0xf]
      %v1927 = vld [vmem:[%s3 + $0x2c] sm:$0xf]
      %v1928 = vld [vmem:[%s3 + $0x30] sm:$0xf]
      %v1929 = vld [vmem:[%s3 + $0x34] sm:$0xf]
      %v1930 = vld [vmem:[%s3 + $0x38] sm:$0xf]
      %v1931 = vld [vmem:[%s3 + $0x3c] sm:$0xf]
      %v1932 = vld [vmem:[#allocation2 + $0x80] sm:$0xf]
      %v1933 = vld [vmem:[#allocation2 + $0x84] sm:$0xf]
      %v1934 = vld [vmem:[#allocation2 + $0x88] sm:$0xf]
      %v1935 = vld [vmem:[#allocation2 + $0x8c] sm:$0xf]
      %s1936 = scalar_lea.vmem %s3, 64
      %v1937 = vld [vmem:[%s1936] sm:$0xf]
      %v1938 = vld [vmem:[%s1936 + $0x4] sm:$0xf]
      %v1939 = vld [vmem:[%s1936 + $0x8] sm:$0xf]
      %v1940 = vld [vmem:[%s1936 + $0xc] sm:$0xf]
      %v1941 = vld [vmem:[%s1936 + $0x10] sm:$0xf]
      %v1942 = vld [vmem:[%s1936 + $0x14] sm:$0xf]
      %v1943 = vld [vmem:[%s1936 + $0x18] sm:$0xf]
      %v1944 = vld [vmem:[%s1936 + $0x1c] sm:$0xf]
      %v1945 = vld [vmem:[%s1936 + $0x20] sm:$0xf]
      %v1946 = vld [vmem:[%s1936 + $0x24] sm:$0xf]
      %v1947 = vld [vmem:[%s1936 + $0x28] sm:$0xf]
      %v1948 = vld [vmem:[%s1936 + $0x2c] sm:$0xf]
      %v1949 = vld [vmem:[%s1936 + $0x30] sm:$0xf]
      %v1950 = vld [vmem:[%s1936 + $0x34] sm:$0xf]
      %v1951 = vld [vmem:[%s1936 + $0x38] sm:$0xf]
      %v1952 = vld [vmem:[%s1936 + $0x3c] sm:$0xf]
      %v1985 = vunpack.c.l.b16 %v1888
      %v1986 = vunpack.c.l.b16 %v1889
      %v1987 = vunpack.c.l.b16 %v1890
      %v1988 = vunpack.c.l.b16 %v1891
      %v1989 = vunpack.c.l.b16 %v1892
      %v1990 = vunpack.c.l.b16 %v1893
      %v1991 = vunpack.c.l.b16 %v1894
      %v1992 = vunpack.c.l.b16 %v1895
      %v1993 = vunpack.c.l.b16 %v1896
      %v1994 = vunpack.c.l.b16 %v1897
      %v1995 = vunpack.c.l.b16 %v1898
      %v1996 = vunpack.c.l.b16 %v1899
      %v1997 = vunpack.c.l.b16 %v1900
      %v1998 = vunpack.c.l.b16 %v1901
      %v1999 = vunpack.c.l.b16 %v1902
      %v2000 = vunpack.c.l.b16 %v1903
      %v2001 = vunpack.c.l.b16 %v1904
      %v2002 = vunpack.c.l.b16 %v1905
      %v2003 = vunpack.c.l.b16 %v1906
      %v2004 = vunpack.c.l.b16 %v1907
      %v2005 = vunpack.c.l.b16 %v1908
      %v2006 = vunpack.c.l.b16 %v1909
      %v2007 = vunpack.c.l.b16 %v1910
      %v2008 = vunpack.c.l.b16 %v1911
      %v2009 = vunpack.c.l.b16 %v1912
      %v2010 = vunpack.c.l.b16 %v1913
      %v2011 = vunpack.c.l.b16 %v1914
      %v2012 = vunpack.c.l.b16 %v1915
      %v2013 = vunpack.c.l.b16 %v1932
      %v2014 = vunpack.c.l.b16 %v1933
      %v2015 = vunpack.c.l.b16 %v1934
      %v2016 = vunpack.c.l.b16 %v1935
      %v2017 = vpack.c.b16 %v1986, %v1985
      %v2018 = vpack.c.b16 %v1988, %v1987
      %v2019 = vpack.c.b16 %v1990, %v1989
      %v2020 = vpack.c.b16 %v1992, %v1991
      %v2021 = vpack.c.b16 %v1994, %v1993
      %v2022 = vpack.c.b16 %v1996, %v1995
      %v2023 = vpack.c.b16 %v1998, %v1997
      %v2024 = vpack.c.b16 %v2000, %v1999
      %v2025 = vpack.c.b16 %v2002, %v2001
      %v2026 = vpack.c.b16 %v2004, %v2003
      %v2027 = vpack.c.b16 %v2006, %v2005
      %v2028 = vpack.c.b16 %v2008, %v2007
      %v2029 = vpack.c.b16 %v2010, %v2009
      %v2030 = vpack.c.b16 %v2012, %v2011
      %v2031 = vpack.c.b16 %v2014, %v2013
      %v2032 = vpack.c.b16 %v2016, %v2015
      %v2065 = vunpack.c.l.b16 %v1937
      %v2066 = vunpack.c.l.b16 %v1938
      %v2067 = vunpack.c.l.b16 %v1939
      %v2068 = vunpack.c.l.b16 %v1940
      %v2069 = vunpack.c.l.b16 %v1941
      %v2070 = vunpack.c.l.b16 %v1942
      %v2071 = vunpack.c.l.b16 %v1943
      %v2072 = vunpack.c.l.b16 %v1944
      %v2073 = vunpack.c.l.b16 %v1945
      %v2074 = vunpack.c.l.b16 %v1946
      %v2075 = vunpack.c.l.b16 %v1947
      %v2076 = vunpack.c.l.b16 %v1948
      %v2077 = vunpack.c.l.b16 %v1949
      %v2078 = vunpack.c.l.b16 %v1950
      %v2079 = vunpack.c.l.b16 %v1951
      %v2080 = vunpack.c.l.b16 %v1952
      %v2081 = vpack.c.b16 %v2066, %v2065
      %v2082 = vpack.c.b16 %v2068, %v2067
      %v2083 = vpack.c.b16 %v2070, %v2069
      %v2084 = vpack.c.b16 %v2072, %v2071
      %v2085 = vpack.c.b16 %v2074, %v2073
      %v2086 = vpack.c.b16 %v2076, %v2075
      %v2087 = vpack.c.b16 %v2078, %v2077
      %v2088 = vpack.c.b16 %v2080, %v2079
      %2097 = vmatprep.subr.bf16.mxu0 0
      %2098 = vmatpush1.bf16.msra.mxu0 %v2088
      %2099 = vmatprep.subr.bf16.mxu0 0
      %2100 = vmatpush1.bf16.msra.mxu0 %v2087
      %2101 = vmatprep.subr.bf16.mxu0 0
      %2102 = vmatpush1.bf16.msra.mxu0 %v2086
      %2103 = vmatprep.subr.bf16.mxu0 0
      %2104 = vmatpush1.bf16.msra.mxu0 %v2085
      %2105 = vmatprep.subr.bf16.mxu0 0
      %2106 = vmatpush1.bf16.msra.mxu0 %v2084
      %2107 = vmatprep.subr.bf16.mxu0 0
      %2108 = vmatpush1.bf16.msra.mxu0 %v2083
      %2109 = vmatprep.subr.bf16.mxu0 0
      %2110 = vmatpush1.bf16.msra.mxu0 %v2082
      %2111 = vmatprep.subr.bf16.mxu0 0
      %2112 = vmatpush1.bf16.msra.mxu0 %v2081
      %2113 = vmatprep.subr.bf16.mxu0 0
      %2114 = vmatpush2.bf16.msra.mxu0 0
      %2115 = vmatprep.subr.bf16.mxu0 0
      %2116 = vmatpush2.bf16.msra.mxu0 0
      %2117 = vmatprep.subr.bf16.mxu0 0
      %2118 = vmatpush2.bf16.msra.mxu0 0
      %2119 = vmatprep.subr.bf16.mxu0 0
      %2120 = vmatpush2.bf16.msra.mxu0 0
      %2121 = vmatprep.subr.bf16.mxu0 0
      %2122 = vmatpush2.bf16.msra.mxu0 0
      %2123 = vmatprep.subr.bf16.mxu0 0
      %2124 = vmatpush2.bf16.msra.mxu0 0
      %2125 = vmatprep.subr.bf16.mxu0 0
      %2126 = vmatpush2.bf16.msra.mxu0 0
      %2127 = vmatprep.subr.bf16.mxu0 0
      %2128 = vmatpush2.bf16.msra.mxu0 0
      %2129 = vmatprep.mubr.bf16.mxu0 0
      %2130 = vmatmul.mubr.bf16.gmra.mxu0 %v2017
      %v2131 = vpop.f32.mrf.mxu0
      %v2132 = vadd.f32 0.0, %v2131
      %v2133 = vpop.f32.mrf.mxu0
      %v2134 = vpop.f32.mrf.mxu0
      %v2135 = vadd.f32 0.0, %v2134
      %v2136 = vpop.f32.mrf.mxu0
      %2137 = vmatprep.mubr.bf16.mxu0 0
      %2138 = vmatmul.mubr.bf16.gmra.mxu0 %v2018
      %v2139 = vpop.f32.mrf.mxu0
      %v2140 = vadd.f32 0.0, %v2139
      %v2141 = vpop.f32.mrf.mxu0
      %v2142 = vpop.f32.mrf.mxu0
      %v2143 = vadd.f32 0.0, %v2142
      %v2144 = vpop.f32.mrf.mxu0
      %2145 = vmatprep.mubr.bf16.mxu0 0
      %2146 = vmatmul.mubr.bf16.gmra.mxu0 %v2019
      %v2147 = vpop.f32.mrf.mxu0
      %v2148 = vadd.f32 0.0, %v2147
      %v2149 = vpop.f32.mrf.mxu0
      %v2150 = vpop.f32.mrf.mxu0
      %v2151 = vadd.f32 0.0, %v2150
      %v2152 = vpop.f32.mrf.mxu0
      %2153 = vmatprep.mubr.bf16.mxu0 0
      %2154 = vmatmul.mubr.bf16.gmra.mxu0 %v2020
      %v2155 = vpop.f32.mrf.mxu0
      %v2156 = vadd.f32 0.0, %v2155
      %v2157 = vpop.f32.mrf.mxu0
      %v2158 = vpop.f32.mrf.mxu0
      %v2159 = vadd.f32 0.0, %v2158
      %v2160 = vpop.f32.mrf.mxu0
      %2161 = vmatprep.mubr.bf16.mxu0 0
      %2162 = vmatmul.mubr.bf16.gmra.mxu0 %v2021
      %v2163 = vpop.f32.mrf.mxu0
      %v2164 = vadd.f32 0.0, %v2163
      %v2165 = vpop.f32.mrf.mxu0
      %v2166 = vpop.f32.mrf.mxu0
      %v2167 = vadd.f32 0.0, %v2166
      %v2168 = vpop.f32.mrf.mxu0
      %2169 = vmatprep.mubr.bf16.mxu0 0
      %2170 = vmatmul.mubr.bf16.gmra.mxu0 %v2022
      %v2171 = vpop.f32.mrf.mxu0
      %v2172 = vadd.f32 0.0, %v2171
      %v2173 = vpop.f32.mrf.mxu0
      %v2174 = vpop.f32.mrf.mxu0
      %v2175 = vadd.f32 0.0, %v2174
      %v2176 = vpop.f32.mrf.mxu0
      %2177 = vmatprep.mubr.bf16.mxu0 0
      %2178 = vmatmul.mubr.bf16.gmra.mxu0 %v2023
      %v2179 = vpop.f32.mrf.mxu0
      %v2180 = vadd.f32 0.0, %v2179
      %v2181 = vpop.f32.mrf.mxu0
      %v2182 = vpop.f32.mrf.mxu0
      %v2183 = vadd.f32 0.0, %v2182
      %v2184 = vpop.f32.mrf.mxu0
      %2185 = vmatprep.mubr.bf16.mxu0 0
      %2186 = vmatmul.mubr.bf16.gmra.mxu0 %v2024
      %v2187 = vpop.f32.mrf.mxu0
      %v2188 = vadd.f32 0.0, %v2187
      %v2189 = vpop.f32.mrf.mxu0
      %v2190 = vpop.f32.mrf.mxu0
      %v2191 = vadd.f32 0.0, %v2190
      %v2192 = vpop.f32.mrf.mxu0
      %2193 = vmatprep.mubr.bf16.mxu0 0
      %2194 = vmatmul.mubr.bf16.gmra.mxu0 %v2025
      %v2195 = vpop.f32.mrf.mxu0
      %v2196 = vadd.f32 0.0, %v2195
      %v2197 = vpop.f32.mrf.mxu0
      %v2198 = vpop.f32.mrf.mxu0
      %v2199 = vadd.f32 0.0, %v2198
      %v2200 = vpop.f32.mrf.mxu0
      %2201 = vmatprep.mubr.bf16.mxu0 0
      %2202 = vmatmul.mubr.bf16.gmra.mxu0 %v2026
      %v2203 = vpop.f32.mrf.mxu0
      %v2204 = vadd.f32 0.0, %v2203
      %v2205 = vpop.f32.mrf.mxu0
      %v2206 = vpop.f32.mrf.mxu0
      %v2207 = vadd.f32 0.0, %v2206
      %v2208 = vpop.f32.mrf.mxu0
      %2209 = vmatprep.mubr.bf16.mxu0 0
      %2210 = vmatmul.mubr.bf16.gmra.mxu0 %v2027
      %v2211 = vpop.f32.mrf.mxu0
      %v2212 = vadd.f32 0.0, %v2211
      %v2213 = vpop.f32.mrf.mxu0
      %v2214 = vpop.f32.mrf.mxu0
      %v2215 = vadd.f32 0.0, %v2214
      %v2216 = vpop.f32.mrf.mxu0
      %2217 = vmatprep.mubr.bf16.mxu0 0
      %2218 = vmatmul.mubr.bf16.gmra.mxu0 %v2028
      %v2219 = vpop.f32.mrf.mxu0
      %v2220 = vadd.f32 0.0, %v2219
      %v2221 = vpop.f32.mrf.mxu0
      %v2222 = vpop.f32.mrf.mxu0
      %v2223 = vadd.f32 0.0, %v2222
      %v2224 = vpop.f32.mrf.mxu0
      %2225 = vmatprep.mubr.bf16.mxu0 0
      %2226 = vmatmul.mubr.bf16.gmra.mxu0 %v2029
      %v2227 = vpop.f32.mrf.mxu0
      %v2228 = vadd.f32 0.0, %v2227
      %v2229 = vpop.f32.mrf.mxu0
      %v2230 = vpop.f32.mrf.mxu0
      %v2231 = vadd.f32 0.0, %v2230
      %v2232 = vpop.f32.mrf.mxu0
      %2233 = vmatprep.mubr.bf16.mxu0 0
      %2234 = vmatmul.mubr.bf16.gmra.mxu0 %v2030
      %v2235 = vpop.f32.mrf.mxu0
      %v2236 = vadd.f32 0.0, %v2235
      %v2237 = vpop.f32.mrf.mxu0
      %v2238 = vpop.f32.mrf.mxu0
      %v2239 = vadd.f32 0.0, %v2238
      %v2240 = vpop.f32.mrf.mxu0
      %2241 = vmatprep.mubr.bf16.mxu0 0
      %2242 = vmatmul.mubr.bf16.gmra.mxu0 %v2031
      %v2243 = vpop.f32.mrf.mxu0
      %v2244 = vadd.f32 0.0, %v2243
      %v2245 = vpop.f32.mrf.mxu0
      %v2246 = vpop.f32.mrf.mxu0
      %v2247 = vadd.f32 0.0, %v2246
      %v2248 = vpop.f32.mrf.mxu0
      %2249 = vmatprep.mubr.bf16.mxu0 0
      %2250 = vmatmul.mubr.bf16.gmra.mxu0 %v2032
      %v2251 = vpop.f32.mrf.mxu0
      %v2252 = vadd.f32 0.0, %v2251
      %v2253 = vpop.f32.mrf.mxu0
      %v2254 = vpop.f32.mrf.mxu0
      %v2255 = vadd.f32 0.0, %v2254
      %v2256 = vpop.f32.mrf.mxu0
      %2257 = vdwg.mxu0
      %v2262 = vunpack.c.l.b16 %v1884
      %v2263 = vunpack.c.l.b16 %v1885
      %v2264 = vunpack.c.l.b16 %v1886
      %v2265 = vunpack.c.l.b16 %v1887
      %v2266 = vpack.c.b16 %v2263, %v2262
      %v2267 = vpack.c.b16 %v2265, %v2264
      %v2286 = vunpack.c.l.b16 %v1916
      %v2287 = vunpack.c.l.b16 %v1917
      %v2288 = vunpack.c.l.b16 %v1918
      %v2289 = vunpack.c.l.b16 %v1919
      %v2290 = vunpack.c.l.b16 %v1920
      %v2291 = vunpack.c.l.b16 %v1921
      %v2292 = vunpack.c.l.b16 %v1922
      %v2293 = vunpack.c.l.b16 %v1923
      %v2294 = vunpack.c.l.b16 %v1924
      %v2295 = vunpack.c.l.b16 %v1925
      %v2296 = vunpack.c.l.b16 %v1926
      %v2297 = vunpack.c.l.b16 %v1927
      %v2298 = vunpack.c.l.b16 %v1928
      %v2299 = vunpack.c.l.b16 %v1929
      %v2300 = vunpack.c.l.b16 %v1930
      %v2301 = vunpack.c.l.b16 %v1931
      %v2302 = vpack.c.b16 %v2287, %v2286
      %v2303 = vpack.c.b16 %v2289, %v2288
      %v2304 = vpack.c.b16 %v2291, %v2290
      %v2305 = vpack.c.b16 %v2293, %v2292
      %v2306 = vpack.c.b16 %v2295, %v2294
      %v2307 = vpack.c.b16 %v2297, %v2296
      %v2308 = vpack.c.b16 %v2299, %v2298
      %v2309 = vpack.c.b16 %v2301, %v2300
      %2318 = vmatprep.subr.bf16.mxu0 0
      %2319 = vmatpush1.bf16.msra.mxu0 %v2309
      %2320 = vmatprep.subr.bf16.mxu0 0
      %2321 = vmatpush1.bf16.msra.mxu0 %v2308
      %2322 = vmatprep.subr.bf16.mxu0 0
      %2323 = vmatpush1.bf16.msra.mxu0 %v2307
      %2324 = vmatprep.subr.bf16.mxu0 0
      %2325 = vmatpush1.bf16.msra.mxu0 %v2306
      %2326 = vmatprep.subr.bf16.mxu0 0
      %2327 = vmatpush1.bf16.msra.mxu0 %v2305
      %2328 = vmatprep.subr.bf16.mxu0 0
      %2329 = vmatpush1.bf16.msra.mxu0 %v2304
      %2330 = vmatprep.subr.bf16.mxu0 0
      %2331 = vmatpush1.bf16.msra.mxu0 %v2303
      %2332 = vmatprep.subr.bf16.mxu0 0
      %2333 = vmatpush1.bf16.msra.mxu0 %v2302
      %2334 = vmatprep.subr.bf16.mxu0 0
      %2335 = vmatpush2.bf16.msra.mxu0 0
      %2336 = vmatprep.subr.bf16.mxu0 0
      %2337 = vmatpush2.bf16.msra.mxu0 0
      %2338 = vmatprep.subr.bf16.mxu0 0
      %2339 = vmatpush2.bf16.msra.mxu0 0
      %2340 = vmatprep.subr.bf16.mxu0 0
      %2341 = vmatpush2.bf16.msra.mxu0 0
      %2342 = vmatprep.subr.bf16.mxu0 0
      %2343 = vmatpush2.bf16.msra.mxu0 0
      %2344 = vmatprep.subr.bf16.mxu0 0
      %2345 = vmatpush2.bf16.msra.mxu0 0
      %2346 = vmatprep.subr.bf16.mxu0 0
      %2347 = vmatpush2.bf16.msra.mxu0 0
      %2348 = vmatprep.subr.bf16.mxu0 0
      %2349 = vmatpush2.bf16.msra.mxu0 0
      %2350 = vmatprep.mubr.bf16.mxu0 0
      %2351 = vmatmul.mubr.bf16.gmra.mxu0 %v2266
      %v2352 = vpop.f32.mrf.mxu0
      %v2353 = vadd.f32 %v2132, %v2352
      %v2354 = vpop.f32.mrf.mxu0
      %v2355 = vpop.f32.mrf.mxu0
      %v2356 = vadd.f32 %v2135, %v2355
      %v2357 = vpop.f32.mrf.mxu0
      %2358 = vmatprep.mubr.bf16.mxu0 0
      %2359 = vmatmul.mubr.bf16.gmra.mxu0 %v2267
      %v2360 = vpop.f32.mrf.mxu0
      %v2361 = vadd.f32 %v2140, %v2360
      %v2362 = vpop.f32.mrf.mxu0
      %v2363 = vpop.f32.mrf.mxu0
      %v2364 = vadd.f32 %v2143, %v2363
      %v2365 = vpop.f32.mrf.mxu0
      %2366 = vmatprep.mubr.bf16.mxu0 0
      %2367 = vmatmul.mubr.bf16.gmra.mxu0 %v2017
      %v2368 = vpop.f32.mrf.mxu0
      %v2369 = vadd.f32 %v2148, %v2368
      %v2370 = vpop.f32.mrf.mxu0
      %v2371 = vpop.f32.mrf.mxu0
      %v2372 = vadd.f32 %v2151, %v2371
      %v2373 = vpop.f32.mrf.mxu0
      %2374 = vmatprep.mubr.bf16.mxu0 0
      %2375 = vmatmul.mubr.bf16.gmra.mxu0 %v2018
      %v2376 = vpop.f32.mrf.mxu0
      %v2377 = vadd.f32 %v2156, %v2376
      %v2378 = vpop.f32.mrf.mxu0
      %v2379 = vpop.f32.mrf.mxu0
      %v2380 = vadd.f32 %v2159, %v2379
      %v2381 = vpop.f32.mrf.mxu0
      %2382 = vmatprep.mubr.bf16.mxu0 0
      %2383 = vmatmul.mubr.bf16.gmra.mxu0 %v2019
      %v2384 = vpop.f32.mrf.mxu0
      %v2385 = vadd.f32 %v2164, %v2384
      %v2386 = vpop.f32.mrf.mxu0
      %v2387 = vpop.f32.mrf.mxu0
      %v2388 = vadd.f32 %v2167, %v2387
      %v2389 = vpop.f32.mrf.mxu0
      %2390 = vmatprep.mubr.bf16.mxu0 0
      %2391 = vmatmul.mubr.bf16.gmra.mxu0 %v2020
      %v2392 = vpop.f32.mrf.mxu0
      %v2393 = vadd.f32 %v2172, %v2392
      %v2394 = vpop.f32.mrf.mxu0
      %v2395 = vpop.f32.mrf.mxu0
      %v2396 = vadd.f32 %v2175, %v2395
      %v2397 = vpop.f32.mrf.mxu0
      %2398 = vmatprep.mubr.bf16.mxu0 0
      %2399 = vmatmul.mubr.bf16.gmra.mxu0 %v2021
      %v2400 = vpop.f32.mrf.mxu0
      %v2401 = vadd.f32 %v2180, %v2400
      %v2402 = vpop.f32.mrf.mxu0
      %v2403 = vpop.f32.mrf.mxu0
      %v2404 = vadd.f32 %v2183, %v2403
      %v2405 = vpop.f32.mrf.mxu0
      %2406 = vmatprep.mubr.bf16.mxu0 0
      %2407 = vmatmul.mubr.bf16.gmra.mxu0 %v2022
      %v2408 = vpop.f32.mrf.mxu0
      %v2409 = vadd.f32 %v2188, %v2408
      %v2410 = vpop.f32.mrf.mxu0
      %v2411 = vpop.f32.mrf.mxu0
      %v2412 = vadd.f32 %v2191, %v2411
      %v2413 = vpop.f32.mrf.mxu0
      %2414 = vmatprep.mubr.bf16.mxu0 0
      %2415 = vmatmul.mubr.bf16.gmra.mxu0 %v2023
      %v2416 = vpop.f32.mrf.mxu0
      %v2417 = vadd.f32 %v2196, %v2416
      %v2418 = vpop.f32.mrf.mxu0
      %v2419 = vpop.f32.mrf.mxu0
      %v2420 = vadd.f32 %v2199, %v2419
      %v2421 = vpop.f32.mrf.mxu0
      %2422 = vmatprep.mubr.bf16.mxu0 0
      %2423 = vmatmul.mubr.bf16.gmra.mxu0 %v2024
      %v2424 = vpop.f32.mrf.mxu0
      %v2425 = vadd.f32 %v2204, %v2424
      %v2426 = vpop.f32.mrf.mxu0
      %v2427 = vpop.f32.mrf.mxu0
      %v2428 = vadd.f32 %v2207, %v2427
      %v2429 = vpop.f32.mrf.mxu0
      %2430 = vmatprep.mubr.bf16.mxu0 0
      %2431 = vmatmul.mubr.bf16.gmra.mxu0 %v2025
      %v2432 = vpop.f32.mrf.mxu0
      %v2433 = vadd.f32 %v2212, %v2432
      %v2434 = vpop.f32.mrf.mxu0
      %v2435 = vpop.f32.mrf.mxu0
      %v2436 = vadd.f32 %v2215, %v2435
      %v2437 = vpop.f32.mrf.mxu0
      %2438 = vmatprep.mubr.bf16.mxu0 0
      %2439 = vmatmul.mubr.bf16.gmra.mxu0 %v2026
      %v2440 = vpop.f32.mrf.mxu0
      %v2441 = vadd.f32 %v2220, %v2440
      %v2442 = vpop.f32.mrf.mxu0
      %v2443 = vpop.f32.mrf.mxu0
      %v2444 = vadd.f32 %v2223, %v2443
      %v2445 = vpop.f32.mrf.mxu0
      %2446 = vmatprep.mubr.bf16.mxu0 0
      %2447 = vmatmul.mubr.bf16.gmra.mxu0 %v2027
      %v2448 = vpop.f32.mrf.mxu0
      %v2449 = vadd.f32 %v2228, %v2448
      %v2450 = vpop.f32.mrf.mxu0
      %v2451 = vpop.f32.mrf.mxu0
      %v2452 = vadd.f32 %v2231, %v2451
      %v2453 = vpop.f32.mrf.mxu0
      %2454 = vmatprep.mubr.bf16.mxu0 0
      %2455 = vmatmul.mubr.bf16.gmra.mxu0 %v2028
      %v2456 = vpop.f32.mrf.mxu0
      %v2457 = vadd.f32 %v2236, %v2456
      %v2458 = vpop.f32.mrf.mxu0
      %v2459 = vpop.f32.mrf.mxu0
      %v2460 = vadd.f32 %v2239, %v2459
      %v2461 = vpop.f32.mrf.mxu0
      %2462 = vmatprep.mubr.bf16.mxu0 0
      %2463 = vmatmul.mubr.bf16.gmra.mxu0 %v2029
      %v2464 = vpop.f32.mrf.mxu0
      %v2465 = vadd.f32 %v2244, %v2464
      %v2466 = vpop.f32.mrf.mxu0
      %v2467 = vpop.f32.mrf.mxu0
      %v2468 = vadd.f32 %v2247, %v2467
      %v2469 = vpop.f32.mrf.mxu0
      %2470 = vmatprep.mubr.bf16.mxu0 0
      %2471 = vmatmul.mubr.bf16.gmra.mxu0 %v2030
      %v2472 = vpop.f32.mrf.mxu0
      %v2473 = vadd.f32 %v2252, %v2472
      %v2474 = vpop.f32.mrf.mxu0
      %v2475 = vpop.f32.mrf.mxu0
      %v2476 = vadd.f32 %v2255, %v2475
      %v2477 = vpop.f32.mrf.mxu0
      %2478 = vdwg.mxu0
      %v2479 = vld [vmem:[#allocation2 + $0x20] sm:$0xf]
      %v2480 = vld [vmem:[#allocation2 + $0x24] sm:$0xf]
      %v2481 = vld [vmem:[#allocation2 + $0x28] sm:$0xf]
      %v2482 = vld [vmem:[#allocation2 + $0x2c] sm:$0xf]
      %v2483 = vld [vmem:[#allocation2 + $0x30] sm:$0xf]
      %v2484 = vld [vmem:[#allocation2 + $0x34] sm:$0xf]
      %v2485 = vld [vmem:[#allocation2 + $0x38] sm:$0xf]
      %v2486 = vld [vmem:[#allocation2 + $0x3c] sm:$0xf]
      %v2487 = vld [vmem:[#allocation2 + $0x40] sm:$0xf]
      %v2488 = vld [vmem:[#allocation2 + $0x44] sm:$0xf]
      %v2489 = vld [vmem:[#allocation2 + $0x48] sm:$0xf]
      %v2490 = vld [vmem:[#allocation2 + $0x4c] sm:$0xf]
      %v2491 = vld [vmem:[#allocation2 + $0x50] sm:$0xf]
      %v2492 = vld [vmem:[#allocation2 + $0x54] sm:$0xf]
      %v2493 = vld [vmem:[#allocation2 + $0x58] sm:$0xf]
      %v2494 = vld [vmem:[#allocation2 + $0x5c] sm:$0xf]
      %v2495 = vld [vmem:[#allocation2 + $0x60] sm:$0xf]
      %v2496 = vld [vmem:[#allocation2 + $0x64] sm:$0xf]
      %v2497 = vld [vmem:[#allocation2 + $0x68] sm:$0xf]
      %v2498 = vld [vmem:[#allocation2 + $0x6c] sm:$0xf]
      %v2499 = vld [vmem:[#allocation2 + $0x70] sm:$0xf]
      %v2500 = vld [vmem:[#allocation2 + $0x74] sm:$0xf]
      %v2501 = vld [vmem:[#allocation2 + $0x78] sm:$0xf]
      %v2502 = vld [vmem:[#allocation2 + $0x7c] sm:$0xf]
      %v2503 = vld [vmem:[#allocation2 + $0x80] sm:$0xf]
      %v2504 = vld [vmem:[#allocation2 + $0x84] sm:$0xf]
      %v2505 = vld [vmem:[#allocation2 + $0x88] sm:$0xf]
      %v2506 = vld [vmem:[#allocation2 + $0x8c] sm:$0xf]
      %v2507 = vld [vmem:[#allocation2 + $0x90] sm:$0xf]
      %v2508 = vld [vmem:[#allocation2 + $0x94] sm:$0xf]
      %v2509 = vld [vmem:[#allocation2 + $0x98] sm:$0xf]
      %v2510 = vld [vmem:[#allocation2 + $0x9c] sm:$0xf]
      %s2511 = scalar_lea.vmem %s3, 128
      %v2512 = vld [vmem:[%s2511] sm:$0xf]
      %v2513 = vld [vmem:[%s2511 + $0x4] sm:$0xf]
      %v2514 = vld [vmem:[%s2511 + $0x8] sm:$0xf]
      %v2515 = vld [vmem:[%s2511 + $0xc] sm:$0xf]
      %v2516 = vld [vmem:[%s2511 + $0x10] sm:$0xf]
      %v2517 = vld [vmem:[%s2511 + $0x14] sm:$0xf]
      %v2518 = vld [vmem:[%s2511 + $0x18] sm:$0xf]
      %v2519 = vld [vmem:[%s2511 + $0x1c] sm:$0xf]
      %v2520 = vld [vmem:[%s2511 + $0x20] sm:$0xf]
      %v2521 = vld [vmem:[%s2511 + $0x24] sm:$0xf]
      %v2522 = vld [vmem:[%s2511 + $0x28] sm:$0xf]
      %v2523 = vld [vmem:[%s2511 + $0x2c] sm:$0xf]
      %v2524 = vld [vmem:[%s2511 + $0x30] sm:$0xf]
      %v2525 = vld [vmem:[%s2511 + $0x34] sm:$0xf]
      %v2526 = vld [vmem:[%s2511 + $0x38] sm:$0xf]
      %v2527 = vld [vmem:[%s2511 + $0x3c] sm:$0xf]
      %v2560 = vunpack.c.l.b16 %v2479
      %v2561 = vunpack.c.l.b16 %v2480
      %v2562 = vunpack.c.l.b16 %v2481
      %v2563 = vunpack.c.l.b16 %v2482
      %v2564 = vunpack.c.l.b16 %v2483
      %v2565 = vunpack.c.l.b16 %v2484
      %v2566 = vunpack.c.l.b16 %v2485
      %v2567 = vunpack.c.l.b16 %v2486
      %v2568 = vunpack.c.l.b16 %v2487
      %v2569 = vunpack.c.l.b16 %v2488
      %v2570 = vunpack.c.l.b16 %v2489
      %v2571 = vunpack.c.l.b16 %v2490
      %v2572 = vunpack.c.l.b16 %v2491
      %v2573 = vunpack.c.l.b16 %v2492
      %v2574 = vunpack.c.l.b16 %v2493
      %v2575 = vunpack.c.l.b16 %v2494
      %v2576 = vunpack.c.l.b16 %v2495
      %v2577 = vunpack.c.l.b16 %v2496
      %v2578 = vunpack.c.l.b16 %v2497
      %v2579 = vunpack.c.l.b16 %v2498
      %v2580 = vunpack.c.l.b16 %v2499
      %v2581 = vunpack.c.l.b16 %v2500
      %v2582 = vunpack.c.l.b16 %v2501
      %v2583 = vunpack.c.l.b16 %v2502
      %v2584 = vunpack.c.l.b16 %v2503
      %v2585 = vunpack.c.l.b16 %v2504
      %v2586 = vunpack.c.l.b16 %v2505
      %v2587 = vunpack.c.l.b16 %v2506
      %v2588 = vunpack.c.l.b16 %v2507
      %v2589 = vunpack.c.l.b16 %v2508
      %v2590 = vunpack.c.l.b16 %v2509
      %v2591 = vunpack.c.l.b16 %v2510
      %v2592 = vpack.c.b16 %v2561, %v2560
      %v2593 = vpack.c.b16 %v2563, %v2562
      %v2594 = vpack.c.b16 %v2565, %v2564
      %v2595 = vpack.c.b16 %v2567, %v2566
      %v2596 = vpack.c.b16 %v2569, %v2568
      %v2597 = vpack.c.b16 %v2571, %v2570
      %v2598 = vpack.c.b16 %v2573, %v2572
      %v2599 = vpack.c.b16 %v2575, %v2574
      %v2600 = vpack.c.b16 %v2577, %v2576
      %v2601 = vpack.c.b16 %v2579, %v2578
      %v2602 = vpack.c.b16 %v2581, %v2580
      %v2603 = vpack.c.b16 %v2583, %v2582
      %v2604 = vpack.c.b16 %v2585, %v2584
      %v2605 = vpack.c.b16 %v2587, %v2586
      %v2606 = vpack.c.b16 %v2589, %v2588
      %v2607 = vpack.c.b16 %v2591, %v2590
      %v2640 = vunpack.c.l.b16 %v2512
      %v2641 = vunpack.c.l.b16 %v2513
      %v2642 = vunpack.c.l.b16 %v2514
      %v2643 = vunpack.c.l.b16 %v2515
      %v2644 = vunpack.c.l.b16 %v2516
      %v2645 = vunpack.c.l.b16 %v2517
      %v2646 = vunpack.c.l.b16 %v2518
      %v2647 = vunpack.c.l.b16 %v2519
      %v2648 = vunpack.c.l.b16 %v2520
      %v2649 = vunpack.c.l.b16 %v2521
      %v2650 = vunpack.c.l.b16 %v2522
      %v2651 = vunpack.c.l.b16 %v2523
      %v2652 = vunpack.c.l.b16 %v2524
      %v2653 = vunpack.c.l.b16 %v2525
      %v2654 = vunpack.c.l.b16 %v2526
      %v2655 = vunpack.c.l.b16 %v2527
      %v2656 = vpack.c.b16 %v2641, %v2640
      %v2657 = vpack.c.b16 %v2643, %v2642
      %v2658 = vpack.c.b16 %v2645, %v2644
      %v2659 = vpack.c.b16 %v2647, %v2646
      %v2660 = vpack.c.b16 %v2649, %v2648
      %v2661 = vpack.c.b16 %v2651, %v2650
      %v2662 = vpack.c.b16 %v2653, %v2652
      %v2663 = vpack.c.b16 %v2655, %v2654
      %2672 = vmatprep.subr.bf16.mxu0 0
      %2673 = vmatpush1.bf16.msra.mxu0 %v2663
      %2674 = vmatprep.subr.bf16.mxu0 0
      %2675 = vmatpush1.bf16.msra.mxu0 %v2662
      %2676 = vmatprep.subr.bf16.mxu0 0
      %2677 = vmatpush1.bf16.msra.mxu0 %v2661
      %2678 = vmatprep.subr.bf16.mxu0 0
      %2679 = vmatpush1.bf16.msra.mxu0 %v2660
      %2680 = vmatprep.subr.bf16.mxu0 0
      %2681 = vmatpush1.bf16.msra.mxu0 %v2659
      %2682 = vmatprep.subr.bf16.mxu0 0
      %2683 = vmatpush1.bf16.msra.mxu0 %v2658
      %2684 = vmatprep.subr.bf16.mxu0 0
      %2685 = vmatpush1.bf16.msra.mxu0 %v2657
      %2686 = vmatprep.subr.bf16.mxu0 0
      %2687 = vmatpush1.bf16.msra.mxu0 %v2656
      %2688 = vmatprep.subr.bf16.mxu0 0
      %2689 = vmatpush2.bf16.msra.mxu0 0
      %2690 = vmatprep.subr.bf16.mxu0 0
      %2691 = vmatpush2.bf16.msra.mxu0 0
      %2692 = vmatprep.subr.bf16.mxu0 0
      %2693 = vmatpush2.bf16.msra.mxu0 0
      %2694 = vmatprep.subr.bf16.mxu0 0
      %2695 = vmatpush2.bf16.msra.mxu0 0
      %2696 = vmatprep.subr.bf16.mxu0 0
      %2697 = vmatpush2.bf16.msra.mxu0 0
      %2698 = vmatprep.subr.bf16.mxu0 0
      %2699 = vmatpush2.bf16.msra.mxu0 0
      %2700 = vmatprep.subr.bf16.mxu0 0
      %2701 = vmatpush2.bf16.msra.mxu0 0
      %2702 = vmatprep.subr.bf16.mxu0 0
      %2703 = vmatpush2.bf16.msra.mxu0 0
      %2704 = vmatprep.mubr.bf16.mxu0 0
      %2705 = vmatmul.mubr.bf16.gmra.mxu0 %v2592
      %v2706 = vpop.f32.mrf.mxu0
      %v2707 = vadd.f32 0.0, %v2706
      %v2708 = vpop.f32.mrf.mxu0
      %v2709 = vpop.f32.mrf.mxu0
      %v2710 = vadd.f32 0.0, %v2709
      %v2711 = vpop.f32.mrf.mxu0
      %2712 = vmatprep.mubr.bf16.mxu0 0
      %2713 = vmatmul.mubr.bf16.gmra.mxu0 %v2593
      %v2714 = vpop.f32.mrf.mxu0
      %v2715 = vadd.f32 0.0, %v2714
      %v2716 = vpop.f32.mrf.mxu0
      %v2717 = vpop.f32.mrf.mxu0
      %v2718 = vadd.f32 0.0, %v2717
      %v2719 = vpop.f32.mrf.mxu0
      %2720 = vmatprep.mubr.bf16.mxu0 0
      %2721 = vmatmul.mubr.bf16.gmra.mxu0 %v2594
      %v2722 = vpop.f32.mrf.mxu0
      %v2723 = vadd.f32 0.0, %v2722
      %v2724 = vpop.f32.mrf.mxu0
      %v2725 = vpop.f32.mrf.mxu0
      %v2726 = vadd.f32 0.0, %v2725
      %v2727 = vpop.f32.mrf.mxu0
      %2728 = vmatprep.mubr.bf16.mxu0 0
      %2729 = vmatmul.mubr.bf16.gmra.mxu0 %v2595
      %v2730 = vpop.f32.mrf.mxu0
      %v2731 = vadd.f32 0.0, %v2730
      %v2732 = vpop.f32.mrf.mxu0
      %v2733 = vpop.f32.mrf.mxu0
      %v2734 = vadd.f32 0.0, %v2733
      %v2735 = vpop.f32.mrf.mxu0
      %2736 = vmatprep.mubr.bf16.mxu0 0
      %2737 = vmatmul.mubr.bf16.gmra.mxu0 %v2596
      %v2738 = vpop.f32.mrf.mxu0
      %v2739 = vadd.f32 0.0, %v2738
      %v2740 = vpop.f32.mrf.mxu0
      %v2741 = vpop.f32.mrf.mxu0
      %v2742 = vadd.f32 0.0, %v2741
      %v2743 = vpop.f32.mrf.mxu0
      %2744 = vmatprep.mubr.bf16.mxu0 0
      %2745 = vmatmul.mubr.bf16.gmra.mxu0 %v2597
      %v2746 = vpop.f32.mrf.mxu0
      %v2747 = vadd.f32 0.0, %v2746
      %v2748 = vpop.f32.mrf.mxu0
      %v2749 = vpop.f32.mrf.mxu0
      %v2750 = vadd.f32 0.0, %v2749
      %v2751 = vpop.f32.mrf.mxu0
      %2752 = vmatprep.mubr.bf16.mxu0 0
      %2753 = vmatmul.mubr.bf16.gmra.mxu0 %v2598
      %v2754 = vpop.f32.mrf.mxu0
      %v2755 = vadd.f32 0.0, %v2754
      %v2756 = vpop.f32.mrf.mxu0
      %v2757 = vpop.f32.mrf.mxu0
      %v2758 = vadd.f32 0.0, %v2757
      %v2759 = vpop.f32.mrf.mxu0
      %2760 = vmatprep.mubr.bf16.mxu0 0
      %2761 = vmatmul.mubr.bf16.gmra.mxu0 %v2599
      %v2762 = vpop.f32.mrf.mxu0
      %v2763 = vadd.f32 0.0, %v2762
      %v2764 = vpop.f32.mrf.mxu0
      %v2765 = vpop.f32.mrf.mxu0
      %v2766 = vadd.f32 0.0, %v2765
      %v2767 = vpop.f32.mrf.mxu0
      %2768 = vmatprep.mubr.bf16.mxu0 0
      %2769 = vmatmul.mubr.bf16.gmra.mxu0 %v2600
      %v2770 = vpop.f32.mrf.mxu0
      %v2771 = vadd.f32 0.0, %v2770
      %v2772 = vpop.f32.mrf.mxu0
      %v2773 = vpop.f32.mrf.mxu0
      %v2774 = vadd.f32 0.0, %v2773
      %v2775 = vpop.f32.mrf.mxu0
      %2776 = vmatprep.mubr.bf16.mxu0 0
      %2777 = vmatmul.mubr.bf16.gmra.mxu0 %v2601
      %v2778 = vpop.f32.mrf.mxu0
      %v2779 = vadd.f32 0.0, %v2778
      %v2780 = vpop.f32.mrf.mxu0
      %v2781 = vpop.f32.mrf.mxu0
      %v2782 = vadd.f32 0.0, %v2781
      %v2783 = vpop.f32.mrf.mxu0
      %2784 = vmatprep.mubr.bf16.mxu0 0
      %2785 = vmatmul.mubr.bf16.gmra.mxu0 %v2602
      %v2786 = vpop.f32.mrf.mxu0
      %v2787 = vadd.f32 0.0, %v2786
      %v2788 = vpop.f32.mrf.mxu0
      %v2789 = vpop.f32.mrf.mxu0
      %v2790 = vadd.f32 0.0, %v2789
      %v2791 = vpop.f32.mrf.mxu0
      %2792 = vmatprep.mubr.bf16.mxu0 0
      %2793 = vmatmul.mubr.bf16.gmra.mxu0 %v2603
      %v2794 = vpop.f32.mrf.mxu0
      %v2795 = vadd.f32 0.0, %v2794
      %v2796 = vpop.f32.mrf.mxu0
      %v2797 = vpop.f32.mrf.mxu0
      %v2798 = vadd.f32 0.0, %v2797
      %v2799 = vpop.f32.mrf.mxu0
      %2800 = vmatprep.mubr.bf16.mxu0 0
      %2801 = vmatmul.mubr.bf16.gmra.mxu0 %v2604
      %v2802 = vpop.f32.mrf.mxu0
      %v2803 = vadd.f32 0.0, %v2802
      %v2804 = vpop.f32.mrf.mxu0
      %v2805 = vpop.f32.mrf.mxu0
      %v2806 = vadd.f32 0.0, %v2805
      %v2807 = vpop.f32.mrf.mxu0
      %2808 = vmatprep.mubr.bf16.mxu0 0
      %2809 = vmatmul.mubr.bf16.gmra.mxu0 %v2605
      %v2810 = vpop.f32.mrf.mxu0
      %v2811 = vadd.f32 0.0, %v2810
      %v2812 = vpop.f32.mrf.mxu0
      %v2813 = vpop.f32.mrf.mxu0
      %v2814 = vadd.f32 0.0, %v2813
      %v2815 = vpop.f32.mrf.mxu0
      %2816 = vmatprep.mubr.bf16.mxu0 0
      %2817 = vmatmul.mubr.bf16.gmra.mxu0 %v2606
      %v2818 = vpop.f32.mrf.mxu0
      %v2819 = vadd.f32 0.0, %v2818
      %v2820 = vpop.f32.mrf.mxu0
      %v2821 = vpop.f32.mrf.mxu0
      %v2822 = vadd.f32 0.0, %v2821
      %v2823 = vpop.f32.mrf.mxu0
      %2824 = vmatprep.mubr.bf16.mxu0 0
      %2825 = vmatmul.mubr.bf16.gmra.mxu0 %v2607
      %v2826 = vpop.f32.mrf.mxu0
      %v2827 = vadd.f32 0.0, %v2826
      %v2828 = vpop.f32.mrf.mxu0
      %v2829 = vpop.f32.mrf.mxu0
      %v2830 = vadd.f32 0.0, %v2829
      %v2831 = vpop.f32.mrf.mxu0
      %2832 = vdwg.mxu0
      %v2833 = vadd.f32 %v2353, %v2707
      %v2834 = vadd.f32 %v2356, %v2710
      %v2835 = vadd.f32 %v2361, %v2715
      %v2836 = vadd.f32 %v2364, %v2718
      %v2837 = vadd.f32 %v2369, %v2723
      %v2838 = vadd.f32 %v2372, %v2726
      %v2839 = vadd.f32 %v2377, %v2731
      %v2840 = vadd.f32 %v2380, %v2734
      %v2841 = vadd.f32 %v2385, %v2739
      %v2842 = vadd.f32 %v2388, %v2742
      %v2843 = vadd.f32 %v2393, %v2747
      %v2844 = vadd.f32 %v2396, %v2750
      %v2845 = vadd.f32 %v2401, %v2755
      %v2846 = vadd.f32 %v2404, %v2758
      %v2847 = vadd.f32 %v2409, %v2763
      %v2848 = vadd.f32 %v2412, %v2766
      %v2849 = vadd.f32 %v2417, %v2771
      %v2850 = vadd.f32 %v2420, %v2774
      %v2851 = vadd.f32 %v2425, %v2779
      %v2852 = vadd.f32 %v2428, %v2782
      %v2853 = vadd.f32 %v2433, %v2787
      %v2854 = vadd.f32 %v2436, %v2790
      %v2855 = vadd.f32 %v2441, %v2795
      %v2856 = vadd.f32 %v2444, %v2798
      %v2857 = vadd.f32 %v2449, %v2803
      %v2858 = vadd.f32 %v2452, %v2806
      %v2859 = vadd.f32 %v2457, %v2811
      %v2860 = vadd.f32 %v2460, %v2814
      %v2861 = vadd.f32 %v2465, %v2819
      %v2862 = vadd.f32 %v2468, %v2822
      %v2863 = vadd.f32 %v2473, %v2827
      %v2864 = vadd.f32 %v2476, %v2830
      %v2866 = vlaneseq
      %v2867 = vshrl.u32 %v2866, 7
      %v2868 = vsub.s32 0, %v2867
      %v2869 = vrot.slane %v281, %v2868
      %v2871 = vadd.f32 %v2833, %v2869
      %v2872 = vadd.f32 %v2834, %v2869
      %v2873 = vadd.f32 %v2835, %v2869
      %v2874 = vadd.f32 %v2836, %v2869
      %v2875 = vadd.f32 %v2837, %v2869
      %v2876 = vadd.f32 %v2838, %v2869
      %v2877 = vadd.f32 %v2839, %v2869
      %v2878 = vadd.f32 %v2840, %v2869
      %v2879 = vadd.f32 %v2841, %v2869
      %v2880 = vadd.f32 %v2842, %v2869
      %v2881 = vadd.f32 %v2843, %v2869
      %v2882 = vadd.f32 %v2844, %v2869
      %v2883 = vadd.f32 %v2845, %v2869
      %v2884 = vadd.f32 %v2846, %v2869
      %v2885 = vadd.f32 %v2847, %v2869
      %v2886 = vadd.f32 %v2848, %v2869
      %v2887 = vadd.f32 %v2849, %v2869
      %v2888 = vadd.f32 %v2850, %v2869
      %v2889 = vadd.f32 %v2851, %v2869
      %v2890 = vadd.f32 %v2852, %v2869
      %v2891 = vadd.f32 %v2853, %v2869
      %v2892 = vadd.f32 %v2854, %v2869
      %v2893 = vadd.f32 %v2855, %v2869
      %v2894 = vadd.f32 %v2856, %v2869
      %v2895 = vadd.f32 %v2857, %v2869
      %v2896 = vadd.f32 %v2858, %v2869
      %v2897 = vadd.f32 %v2859, %v2869
      %v2898 = vadd.f32 %v2860, %v2869
      %v2899 = vadd.f32 %v2861, %v2869
      %v2900 = vadd.f32 %v2862, %v2869
      %v2901 = vadd.f32 %v2863, %v2869
      %v2902 = vadd.f32 %v2864, %v2869
      %2903 = vst [vmem:[#allocation3] sm:$0xff] %v2871
      %2904 = vst [vmem:[#allocation3 + $0x8] sm:$0xff] %v2872
      %2905 = vst [vmem:[#allocation3 + $0x10] sm:$0xff] %v2873
      %2906 = vst [vmem:[#allocation3 + $0x18] sm:$0xff] %v2874
      %2907 = vst [vmem:[#allocation3 + $0x20] sm:$0xff] %v2875
      %2908 = vst [vmem:[#allocation3 + $0x28] sm:$0xff] %v2876
      %2909 = vst [vmem:[#allocation3 + $0x30] sm:$0xff] %v2877
      %2910 = vst [vmem:[#allocation3 + $0x38] sm:$0xff] %v2878
      %2911 = vst [vmem:[#allocation3 + $0x40] sm:$0xff] %v2879
      %2912 = vst [vmem:[#allocation3 + $0x48] sm:$0xff] %v2880
      %2913 = vst [vmem:[#allocation3 + $0x50] sm:$0xff] %v2881
      %2914 = vst [vmem:[#allocation3 + $0x58] sm:$0xff] %v2882
      %2915 = vst [vmem:[#allocation3 + $0x60] sm:$0xff] %v2883
      %2916 = vst [vmem:[#allocation3 + $0x68] sm:$0xff] %v2884
      %2917 = vst [vmem:[#allocation3 + $0x70] sm:$0xff] %v2885
      %2918 = vst [vmem:[#allocation3 + $0x78] sm:$0xff] %v2886
      %2919 = vst [vmem:[#allocation3 + $0x80] sm:$0xff] %v2887
      %2920 = vst [vmem:[#allocation3 + $0x88] sm:$0xff] %v2888
      %2921 = vst [vmem:[#allocation3 + $0x90] sm:$0xff] %v2889
      %2922 = vst [vmem:[#allocation3 + $0x98] sm:$0xff] %v2890
      %2923 = vst [vmem:[#allocation3 + $0xa0] sm:$0xff] %v2891
      %2924 = vst [vmem:[#allocation3 + $0xa8] sm:$0xff] %v2892
      %2925 = vst [vmem:[#allocation3 + $0xb0] sm:$0xff] %v2893
      %2926 = vst [vmem:[#allocation3 + $0xb8] sm:$0xff] %v2894
      %2927 = vst [vmem:[#allocation3 + $0xc0] sm:$0xff] %v2895
      %2928 = vst [vmem:[#allocation3 + $0xc8] sm:$0xff] %v2896
      %2929 = vst [vmem:[#allocation3 + $0xd0] sm:$0xff] %v2897
      %2930 = vst [vmem:[#allocation3 + $0xd8] sm:$0xff] %v2898
      %2931 = vst [vmem:[#allocation3 + $0xe0] sm:$0xff] %v2899
      %2932 = vst [vmem:[#allocation3 + $0xe8] sm:$0xff] %v2900
      %2933 = vst [vmem:[#allocation3 + $0xf0] sm:$0xff] %v2901
      %2934 = vst [vmem:[#allocation3 + $0xf8] sm:$0xff] %v2902
      %v2935 = vld [vmem:[#allocation2 + $0x80] sm:$0xf]
      %v2936 = vld [vmem:[#allocation2 + $0x84] sm:$0xf]
      %v2937 = vld [vmem:[#allocation2 + $0x88] sm:$0xf]
      %v2938 = vld [vmem:[#allocation2 + $0x8c] sm:$0xf]
      %v2939 = vld [vmem:[#allocation2 + $0x90] sm:$0xf]
      %v2940 = vld [vmem:[#allocation2 + $0x94] sm:$0xf]
      %v2941 = vld [vmem:[#allocation2 + $0x98] sm:$0xf]
      %v2942 = vld [vmem:[#allocation2 + $0x9c] sm:$0xf]
      %v2943 = vld [vmem:[#allocation2 + $0xa0] sm:$0xf]
      %v2944 = vld [vmem:[#allocation2 + $0xa4] sm:$0xf]
      %v2945 = vld [vmem:[#allocation2 + $0xa8] sm:$0xf]
      %v2946 = vld [vmem:[#allocation2 + $0xac] sm:$0xf]
      %v2947 = vld [vmem:[#allocation2 + $0xb0] sm:$0xf]
      %v2948 = vld [vmem:[#allocation2 + $0xb4] sm:$0xf]
      %v2949 = vld [vmem:[#allocation2 + $0xb8] sm:$0xf]
      %v2950 = vld [vmem:[#allocation2 + $0xbc] sm:$0xf]
      %v2951 = vld [vmem:[#allocation2 + $0xc0] sm:$0xf]
      %v2952 = vld [vmem:[#allocation2 + $0xc4] sm:$0xf]
      %v2953 = vld [vmem:[#allocation2 + $0xc8] sm:$0xf]
      %v2954 = vld [vmem:[#allocation2 + $0xcc] sm:$0xf]
      %v2955 = vld [vmem:[#allocation2 + $0xd0] sm:$0xf]
      %v2956 = vld [vmem:[#allocation2 + $0xd4] sm:$0xf]
      %v2957 = vld [vmem:[#allocation2 + $0xd8] sm:$0xf]
      %v2958 = vld [vmem:[#allocation2 + $0xdc] sm:$0xf]
      %v2959 = vld [vmem:[#allocation2 + $0xe0] sm:$0xf]
      %v2960 = vld [vmem:[#allocation2 + $0xe4] sm:$0xf]
      %v2961 = vld [vmem:[#allocation2 + $0xe8] sm:$0xf]
      %v2962 = vld [vmem:[#allocation2 + $0xec] sm:$0xf]
      %v2963 = vld [vmem:[#allocation2 + $0xf0] sm:$0xf]
      %v2964 = vld [vmem:[#allocation2 + $0xf4] sm:$0xf]
      %v2965 = vld [vmem:[#allocation2 + $0xf8] sm:$0xf]
      %v2966 = vld [vmem:[#allocation2 + $0xfc] sm:$0xf]
      %v2967 = vld [vmem:[%s3] sm:$0xf]
      %v2968 = vld [vmem:[%s3 + $0x4] sm:$0xf]
      %v2969 = vld [vmem:[%s3 + $0x8] sm:$0xf]
      %v2970 = vld [vmem:[%s3 + $0xc] sm:$0xf]
      %v2971 = vld [vmem:[%s3 + $0x10] sm:$0xf]
      %v2972 = vld [vmem:[%s3 + $0x14] sm:$0xf]
      %v2973 = vld [vmem:[%s3 + $0x18] sm:$0xf]
      %v2974 = vld [vmem:[%s3 + $0x1c] sm:$0xf]
      %v2975 = vld [vmem:[%s3 + $0x20] sm:$0xf]
      %v2976 = vld [vmem:[%s3 + $0x24] sm:$0xf]
      %v2977 = vld [vmem:[%s3 + $0x28] sm:$0xf]
      %v2978 = vld [vmem:[%s3 + $0x2c] sm:$0xf]
      %v2979 = vld [vmem:[%s3 + $0x30] sm:$0xf]
      %v2980 = vld [vmem:[%s3 + $0x34] sm:$0xf]
      %v2981 = vld [vmem:[%s3 + $0x38] sm:$0xf]
      %v2982 = vld [vmem:[%s3 + $0x3c] sm:$0xf]
      %v2983 = vld [vmem:[#allocation2 + $0x100] sm:$0xf]
      %v2984 = vld [vmem:[#allocation2 + $0x104] sm:$0xf]
      %v2985 = vld [vmem:[#allocation2 + $0x108] sm:$0xf]
      %v2986 = vld [vmem:[#allocation2 + $0x10c] sm:$0xf]
      %v2987 = vld [vmem:[%s1936] sm:$0xf]
      %v2988 = vld [vmem:[%s1936 + $0x4] sm:$0xf]
      %v2989 = vld [vmem:[%s1936 + $0x8] sm:$0xf]
      %v2990 = vld [vmem:[%s1936 + $0xc] sm:$0xf]
      %v2991 = vld [vmem:[%s1936 + $0x10] sm:$0xf]
      %v2992 = vld [vmem:[%s1936 + $0x14] sm:$0xf]
      %v2993 = vld [vmem:[%s1936 + $0x18] sm:$0xf]
      %v2994 = vld [vmem:[%s1936 + $0x1c] sm:$0xf]
      %v2995 = vld [vmem:[%s1936 + $0x20] sm:$0xf]
      %v2996 = vld [vmem:[%s1936 + $0x24] sm:$0xf]
      %v2997 = vld [vmem:[%s1936 + $0x28] sm:$0xf]
      %v2998 = vld [vmem:[%s1936 + $0x2c] sm:$0xf]
      %v2999 = vld [vmem:[%s1936 + $0x30] sm:$0xf]
      %v3000 = vld [vmem:[%s1936 + $0x34] sm:$0xf]
      %v3001 = vld [vmem:[%s1936 + $0x38] sm:$0xf]
      %v3002 = vld [vmem:[%s1936 + $0x3c] sm:$0xf]
      %v3035 = vunpack.c.l.b16 %v2939
      %v3036 = vunpack.c.l.b16 %v2940
      %v3037 = vunpack.c.l.b16 %v2941
      %v3038 = vunpack.c.l.b16 %v2942
      %v3039 = vunpack.c.l.b16 %v2943
      %v3040 = vunpack.c.l.b16 %v2944
      %v3041 = vunpack.c.l.b16 %v2945
      %v3042 = vunpack.c.l.b16 %v2946
      %v3043 = vunpack.c.l.b16 %v2947
      %v3044 = vunpack.c.l.b16 %v2948
      %v3045 = vunpack.c.l.b16 %v2949
      %v3046 = vunpack.c.l.b16 %v2950
      %v3047 = vunpack.c.l.b16 %v2951
      %v3048 = vunpack.c.l.b16 %v2952
      %v3049 = vunpack.c.l.b16 %v2953
      %v3050 = vunpack.c.l.b16 %v2954
      %v3051 = vunpack.c.l.b16 %v2955
      %v3052 = vunpack.c.l.b16 %v2956
      %v3053 = vunpack.c.l.b16 %v2957
      %v3054 = vunpack.c.l.b16 %v2958
      %v3055 = vunpack.c.l.b16 %v2959
      %v3056 = vunpack.c.l.b16 %v2960
      %v3057 = vunpack.c.l.b16 %v2961
      %v3058 = vunpack.c.l.b16 %v2962
      %v3059 = vunpack.c.l.b16 %v2963
      %v3060 = vunpack.c.l.b16 %v2964
      %v3061 = vunpack.c.l.b16 %v2965
      %v3062 = vunpack.c.l.b16 %v2966
      %v3063 = vunpack.c.l.b16 %v2983
      %v3064 = vunpack.c.l.b16 %v2984
      %v3065 = vunpack.c.l.b16 %v2985
      %v3066 = vunpack.c.l.b16 %v2986
      %v3067 = vpack.c.b16 %v3036, %v3035
      %v3068 = vpack.c.b16 %v3038, %v3037
      %v3069 = vpack.c.b16 %v3040, %v3039
      %v3070 = vpack.c.b16 %v3042, %v3041
      %v3071 = vpack.c.b16 %v3044, %v3043
      %v3072 = vpack.c.b16 %v3046, %v3045
      %v3073 = vpack.c.b16 %v3048, %v3047
      %v3074 = vpack.c.b16 %v3050, %v3049
      %v3075 = vpack.c.b16 %v3052, %v3051
      %v3076 = vpack.c.b16 %v3054, %v3053
      %v3077 = vpack.c.b16 %v3056, %v3055
      %v3078 = vpack.c.b16 %v3058, %v3057
      %v3079 = vpack.c.b16 %v3060, %v3059
      %v3080 = vpack.c.b16 %v3062, %v3061
      %v3081 = vpack.c.b16 %v3064, %v3063
      %v3082 = vpack.c.b16 %v3066, %v3065
      %v3115 = vunpack.c.l.b16 %v2987
      %v3116 = vunpack.c.l.b16 %v2988
      %v3117 = vunpack.c.l.b16 %v2989
      %v3118 = vunpack.c.l.b16 %v2990
      %v3119 = vunpack.c.l.b16 %v2991
      %v3120 = vunpack.c.l.b16 %v2992
      %v3121 = vunpack.c.l.b16 %v2993
      %v3122 = vunpack.c.l.b16 %v2994
      %v3123 = vunpack.c.l.b16 %v2995
      %v3124 = vunpack.c.l.b16 %v2996
      %v3125 = vunpack.c.l.b16 %v2997
      %v3126 = vunpack.c.l.b16 %v2998
      %v3127 = vunpack.c.l.b16 %v2999
      %v3128 = vunpack.c.l.b16 %v3000
      %v3129 = vunpack.c.l.b16 %v3001
      %v3130 = vunpack.c.l.b16 %v3002
      %v3131 = vpack.c.b16 %v3116, %v3115
      %v3132 = vpack.c.b16 %v3118, %v3117
      %v3133 = vpack.c.b16 %v3120, %v3119
      %v3134 = vpack.c.b16 %v3122, %v3121
      %v3135 = vpack.c.b16 %v3124, %v3123
      %v3136 = vpack.c.b16 %v3126, %v3125
      %v3137 = vpack.c.b16 %v3128, %v3127
      %v3138 = vpack.c.b16 %v3130, %v3129
      %3147 = vmatprep.subr.bf16.mxu0 0
      %3148 = vmatpush1.bf16.msra.mxu0 %v3138
      %3149 = vmatprep.subr.bf16.mxu0 0
      %3150 = vmatpush1.bf16.msra.mxu0 %v3137
      %3151 = vmatprep.subr.bf16.mxu0 0
      %3152 = vmatpush1.bf16.msra.mxu0 %v3136
      %3153 = vmatprep.subr.bf16.mxu0 0
      %3154 = vmatpush1.bf16.msra.mxu0 %v3135
      %3155 = vmatprep.subr.bf16.mxu0 0
      %3156 = vmatpush1.bf16.msra.mxu0 %v3134
      %3157 = vmatprep.subr.bf16.mxu0 0
      %3158 = vmatpush1.bf16.msra.mxu0 %v3133
      %3159 = vmatprep.subr.bf16.mxu0 0
      %3160 = vmatpush1.bf16.msra.mxu0 %v3132
      %3161 = vmatprep.subr.bf16.mxu0 0
      %3162 = vmatpush1.bf16.msra.mxu0 %v3131
      %3163 = vmatprep.subr.bf16.mxu0 0
      %3164 = vmatpush2.bf16.msra.mxu0 0
      %3165 = vmatprep.subr.bf16.mxu0 0
      %3166 = vmatpush2.bf16.msra.mxu0 0
      %3167 = vmatprep.subr.bf16.mxu0 0
      %3168 = vmatpush2.bf16.msra.mxu0 0
      %3169 = vmatprep.subr.bf16.mxu0 0
      %3170 = vmatpush2.bf16.msra.mxu0 0
      %3171 = vmatprep.subr.bf16.mxu0 0
      %3172 = vmatpush2.bf16.msra.mxu0 0
      %3173 = vmatprep.subr.bf16.mxu0 0
      %3174 = vmatpush2.bf16.msra.mxu0 0
      %3175 = vmatprep.subr.bf16.mxu0 0
      %3176 = vmatpush2.bf16.msra.mxu0 0
      %3177 = vmatprep.subr.bf16.mxu0 0
      %3178 = vmatpush2.bf16.msra.mxu0 0
      %3179 = vmatprep.mubr.bf16.mxu0 0
      %3180 = vmatmul.mubr.bf16.gmra.mxu0 %v3067
      %v3181 = vpop.f32.mrf.mxu0
      %v3182 = vadd.f32 0.0, %v3181
      %v3183 = vpop.f32.mrf.mxu0
      %v3184 = vpop.f32.mrf.mxu0
      %v3185 = vadd.f32 0.0, %v3184
      %v3186 = vpop.f32.mrf.mxu0
      %3187 = vmatprep.mubr.bf16.mxu0 0
      %3188 = vmatmul.mubr.bf16.gmra.mxu0 %v3068
      %v3189 = vpop.f32.mrf.mxu0
      %v3190 = vadd.f32 0.0, %v3189
      %v3191 = vpop.f32.mrf.mxu0
      %v3192 = vpop.f32.mrf.mxu0
      %v3193 = vadd.f32 0.0, %v3192
      %v3194 = vpop.f32.mrf.mxu0
      %3195 = vmatprep.mubr.bf16.mxu0 0
      %3196 = vmatmul.mubr.bf16.gmra.mxu0 %v3069
      %v3197 = vpop.f32.mrf.mxu0
      %v3198 = vadd.f32 0.0, %v3197
      %v3199 = vpop.f32.mrf.mxu0
      %v3200 = vpop.f32.mrf.mxu0
      %v3201 = vadd.f32 0.0, %v3200
      %v3202 = vpop.f32.mrf.mxu0
      %3203 = vmatprep.mubr.bf16.mxu0 0
      %3204 = vmatmul.mubr.bf16.gmra.mxu0 %v3070
      %v3205 = vpop.f32.mrf.mxu0
      %v3206 = vadd.f32 0.0, %v3205
      %v3207 = vpop.f32.mrf.mxu0
      %v3208 = vpop.f32.mrf.mxu0
      %v3209 = vadd.f32 0.0, %v3208
      %v3210 = vpop.f32.mrf.mxu0
      %3211 = vmatprep.mubr.bf16.mxu0 0
      %3212 = vmatmul.mubr.bf16.gmra.mxu0 %v3071
      %v3213 = vpop.f32.mrf.mxu0
      %v3214 = vadd.f32 0.0, %v3213
      %v3215 = vpop.f32.mrf.mxu0
      %v3216 = vpop.f32.mrf.mxu0
      %v3217 = vadd.f32 0.0, %v3216
      %v3218 = vpop.f32.mrf.mxu0
      %3219 = vmatprep.mubr.bf16.mxu0 0
      %3220 = vmatmul.mubr.bf16.gmra.mxu0 %v3072
      %v3221 = vpop.f32.mrf.mxu0
      %v3222 = vadd.f32 0.0, %v3221
      %v3223 = vpop.f32.mrf.mxu0
      %v3224 = vpop.f32.mrf.mxu0
      %v3225 = vadd.f32 0.0, %v3224
      %v3226 = vpop.f32.mrf.mxu0
      %3227 = vmatprep.mubr.bf16.mxu0 0
      %3228 = vmatmul.mubr.bf16.gmra.mxu0 %v3073
      %v3229 = vpop.f32.mrf.mxu0
      %v3230 = vadd.f32 0.0, %v3229
      %v3231 = vpop.f32.mrf.mxu0
      %v3232 = vpop.f32.mrf.mxu0
      %v3233 = vadd.f32 0.0, %v3232
      %v3234 = vpop.f32.mrf.mxu0
      %3235 = vmatprep.mubr.bf16.mxu0 0
      %3236 = vmatmul.mubr.bf16.gmra.mxu0 %v3074
      %v3237 = vpop.f32.mrf.mxu0
      %v3238 = vadd.f32 0.0, %v3237
      %v3239 = vpop.f32.mrf.mxu0
      %v3240 = vpop.f32.mrf.mxu0
      %v3241 = vadd.f32 0.0, %v3240
      %v3242 = vpop.f32.mrf.mxu0
      %3243 = vmatprep.mubr.bf16.mxu0 0
      %3244 = vmatmul.mubr.bf16.gmra.mxu0 %v3075
      %v3245 = vpop.f32.mrf.mxu0
      %v3246 = vadd.f32 0.0, %v3245
      %v3247 = vpop.f32.mrf.mxu0
      %v3248 = vpop.f32.mrf.mxu0
      %v3249 = vadd.f32 0.0, %v3248
      %v3250 = vpop.f32.mrf.mxu0
      %3251 = vmatprep.mubr.bf16.mxu0 0
      %3252 = vmatmul.mubr.bf16.gmra.mxu0 %v3076
      %v3253 = vpop.f32.mrf.mxu0
      %v3254 = vadd.f32 0.0, %v3253
      %v3255 = vpop.f32.mrf.mxu0
      %v3256 = vpop.f32.mrf.mxu0
      %v3257 = vadd.f32 0.0, %v3256
      %v3258 = vpop.f32.mrf.mxu0
      %3259 = vmatprep.mubr.bf16.mxu0 0
      %3260 = vmatmul.mubr.bf16.gmra.mxu0 %v3077
      %v3261 = vpop.f32.mrf.mxu0
      %v3262 = vadd.f32 0.0, %v3261
      %v3263 = vpop.f32.mrf.mxu0
      %v3264 = vpop.f32.mrf.mxu0
      %v3265 = vadd.f32 0.0, %v3264
      %v3266 = vpop.f32.mrf.mxu0
      %3267 = vmatprep.mubr.bf16.mxu0 0
      %3268 = vmatmul.mubr.bf16.gmra.mxu0 %v3078
      %v3269 = vpop.f32.mrf.mxu0
      %v3270 = vadd.f32 0.0, %v3269
      %v3271 = vpop.f32.mrf.mxu0
      %v3272 = vpop.f32.mrf.mxu0
      %v3273 = vadd.f32 0.0, %v3272
      %v3274 = vpop.f32.mrf.mxu0
      %3275 = vmatprep.mubr.bf16.mxu0 0
      %3276 = vmatmul.mubr.bf16.gmra.mxu0 %v3079
      %v3277 = vpop.f32.mrf.mxu0
      %v3278 = vadd.f32 0.0, %v3277
      %v3279 = vpop.f32.mrf.mxu0
      %v3280 = vpop.f32.mrf.mxu0
      %v3281 = vadd.f32 0.0, %v3280
      %v3282 = vpop.f32.mrf.mxu0
      %3283 = vmatprep.mubr.bf16.mxu0 0
      %3284 = vmatmul.mubr.bf16.gmra.mxu0 %v3080
      %v3285 = vpop.f32.mrf.mxu0
      %v3286 = vadd.f32 0.0, %v3285
      %v3287 = vpop.f32.mrf.mxu0
      %v3288 = vpop.f32.mrf.mxu0
      %v3289 = vadd.f32 0.0, %v3288
      %v3290 = vpop.f32.mrf.mxu0
      %3291 = vmatprep.mubr.bf16.mxu0 0
      %3292 = vmatmul.mubr.bf16.gmra.mxu0 %v3081
      %v3293 = vpop.f32.mrf.mxu0
      %v3294 = vadd.f32 0.0, %v3293
      %v3295 = vpop.f32.mrf.mxu0
      %v3296 = vpop.f32.mrf.mxu0
      %v3297 = vadd.f32 0.0, %v3296
      %v3298 = vpop.f32.mrf.mxu0
      %3299 = vmatprep.mubr.bf16.mxu0 0
      %3300 = vmatmul.mubr.bf16.gmra.mxu0 %v3082
      %v3301 = vpop.f32.mrf.mxu0
      %v3302 = vadd.f32 0.0, %v3301
      %v3303 = vpop.f32.mrf.mxu0
      %v3304 = vpop.f32.mrf.mxu0
      %v3305 = vadd.f32 0.0, %v3304
      %v3306 = vpop.f32.mrf.mxu0
      %3307 = vdwg.mxu0
      %v3312 = vunpack.c.l.b16 %v2935
      %v3313 = vunpack.c.l.b16 %v2936
      %v3314 = vunpack.c.l.b16 %v2937
      %v3315 = vunpack.c.l.b16 %v2938
      %v3316 = vpack.c.b16 %v3313, %v3312
      %v3317 = vpack.c.b16 %v3315, %v3314
      %v3336 = vunpack.c.l.b16 %v2967
      %v3337 = vunpack.c.l.b16 %v2968
      %v3338 = vunpack.c.l.b16 %v2969
      %v3339 = vunpack.c.l.b16 %v2970
      %v3340 = vunpack.c.l.b16 %v2971
      %v3341 = vunpack.c.l.b16 %v2972
      %v3342 = vunpack.c.l.b16 %v2973
      %v3343 = vunpack.c.l.b16 %v2974
      %v3344 = vunpack.c.l.b16 %v2975
      %v3345 = vunpack.c.l.b16 %v2976
      %v3346 = vunpack.c.l.b16 %v2977
      %v3347 = vunpack.c.l.b16 %v2978
      %v3348 = vunpack.c.l.b16 %v2979
      %v3349 = vunpack.c.l.b16 %v2980
      %v3350 = vunpack.c.l.b16 %v2981
      %v3351 = vunpack.c.l.b16 %v2982
      %v3352 = vpack.c.b16 %v3337, %v3336
      %v3353 = vpack.c.b16 %v3339, %v3338
      %v3354 = vpack.c.b16 %v3341, %v3340
      %v3355 = vpack.c.b16 %v3343, %v3342
      %v3356 = vpack.c.b16 %v3345, %v3344
      %v3357 = vpack.c.b16 %v3347, %v3346
      %v3358 = vpack.c.b16 %v3349, %v3348
      %v3359 = vpack.c.b16 %v3351, %v3350
      %3368 = vmatprep.subr.bf16.mxu0 0
      %3369 = vmatpush1.bf16.msra.mxu0 %v3359
      %3370 = vmatprep.subr.bf16.mxu0 0
      %3371 = vmatpush1.bf16.msra.mxu0 %v3358
      %3372 = vmatprep.subr.bf16.mxu0 0
      %3373 = vmatpush1.bf16.msra.mxu0 %v3357
      %3374 = vmatprep.subr.bf16.mxu0 0
      %3375 = vmatpush1.bf16.msra.mxu0 %v3356
      %3376 = vmatprep.subr.bf16.mxu0 0
      %3377 = vmatpush1.bf16.msra.mxu0 %v3355
      %3378 = vmatprep.subr.bf16.mxu0 0
      %3379 = vmatpush1.bf16.msra.mxu0 %v3354
      %3380 = vmatprep.subr.bf16.mxu0 0
      %3381 = vmatpush1.bf16.msra.mxu0 %v3353
      %3382 = vmatprep.subr.bf16.mxu0 0
      %3383 = vmatpush1.bf16.msra.mxu0 %v3352
      %3384 = vmatprep.subr.bf16.mxu0 0
      %3385 = vmatpush2.bf16.msra.mxu0 0
      %3386 = vmatprep.subr.bf16.mxu0 0
      %3387 = vmatpush2.bf16.msra.mxu0 0
      %3388 = vmatprep.subr.bf16.mxu0 0
      %3389 = vmatpush2.bf16.msra.mxu0 0
      %3390 = vmatprep.subr.bf16.mxu0 0
      %3391 = vmatpush2.bf16.msra.mxu0 0
      %3392 = vmatprep.subr.bf16.mxu0 0
      %3393 = vmatpush2.bf16.msra.mxu0 0
      %3394 = vmatprep.subr.bf16.mxu0 0
      %3395 = vmatpush2.bf16.msra.mxu0 0
      %3396 = vmatprep.subr.bf16.mxu0 0
      %3397 = vmatpush2.bf16.msra.mxu0 0
      %3398 = vmatprep.subr.bf16.mxu0 0
      %3399 = vmatpush2.bf16.msra.mxu0 0
      %3400 = vmatprep.mubr.bf16.mxu0 0
      %3401 = vmatmul.mubr.bf16.gmra.mxu0 %v3316
      %v3402 = vpop.f32.mrf.mxu0
      %v3403 = vadd.f32 %v3182, %v3402
      %v3404 = vpop.f32.mrf.mxu0
      %v3405 = vpop.f32.mrf.mxu0
      %v3406 = vadd.f32 %v3185, %v3405
      %v3407 = vpop.f32.mrf.mxu0
      %3408 = vmatprep.mubr.bf16.mxu0 0
      %3409 = vmatmul.mubr.bf16.gmra.mxu0 %v3317
      %v3410 = vpop.f32.mrf.mxu0
      %v3411 = vadd.f32 %v3190, %v3410
      %v3412 = vpop.f32.mrf.mxu0
      %v3413 = vpop.f32.mrf.mxu0
      %v3414 = vadd.f32 %v3193, %v3413
      %v3415 = vpop.f32.mrf.mxu0
      %3416 = vmatprep.mubr.bf16.mxu0 0
      %3417 = vmatmul.mubr.bf16.gmra.mxu0 %v3067
      %v3418 = vpop.f32.mrf.mxu0
      %v3419 = vadd.f32 %v3198, %v3418
      %v3420 = vpop.f32.mrf.mxu0
      %v3421 = vpop.f32.mrf.mxu0
      %v3422 = vadd.f32 %v3201, %v3421
      %v3423 = vpop.f32.mrf.mxu0
      %3424 = vmatprep.mubr.bf16.mxu0 0
      %3425 = vmatmul.mubr.bf16.gmra.mxu0 %v3068
      %v3426 = vpop.f32.mrf.mxu0
      %v3427 = vadd.f32 %v3206, %v3426
      %v3428 = vpop.f32.mrf.mxu0
      %v3429 = vpop.f32.mrf.mxu0
      %v3430 = vadd.f32 %v3209, %v3429
      %v3431 = vpop.f32.mrf.mxu0
      %3432 = vmatprep.mubr.bf16.mxu0 0
      %3433 = vmatmul.mubr.bf16.gmra.mxu0 %v3069
      %v3434 = vpop.f32.mrf.mxu0
      %v3435 = vadd.f32 %v3214, %v3434
      %v3436 = vpop.f32.mrf.mxu0
      %v3437 = vpop.f32.mrf.mxu0
      %v3438 = vadd.f32 %v3217, %v3437
      %v3439 = vpop.f32.mrf.mxu0
      %3440 = vmatprep.mubr.bf16.mxu0 0
      %3441 = vmatmul.mubr.bf16.gmra.mxu0 %v3070
      %v3442 = vpop.f32.mrf.mxu0
      %v3443 = vadd.f32 %v3222, %v3442
      %v3444 = vpop.f32.mrf.mxu0
      %v3445 = vpop.f32.mrf.mxu0
      %v3446 = vadd.f32 %v3225, %v3445
      %v3447 = vpop.f32.mrf.mxu0
      %3448 = vmatprep.mubr.bf16.mxu0 0
      %3449 = vmatmul.mubr.bf16.gmra.mxu0 %v3071
      %v3450 = vpop.f32.mrf.mxu0
      %v3451 = vadd.f32 %v3230, %v3450
      %v3452 = vpop.f32.mrf.mxu0
      %v3453 = vpop.f32.mrf.mxu0
      %v3454 = vadd.f32 %v3233, %v3453
      %v3455 = vpop.f32.mrf.mxu0
      %3456 = vmatprep.mubr.bf16.mxu0 0
      %3457 = vmatmul.mubr.bf16.gmra.mxu0 %v3072
      %v3458 = vpop.f32.mrf.mxu0
      %v3459 = vadd.f32 %v3238, %v3458
      %v3460 = vpop.f32.mrf.mxu0
      %v3461 = vpop.f32.mrf.mxu0
      %v3462 = vadd.f32 %v3241, %v3461
      %v3463 = vpop.f32.mrf.mxu0
      %3464 = vmatprep.mubr.bf16.mxu0 0
      %3465 = vmatmul.mubr.bf16.gmra.mxu0 %v3073
      %v3466 = vpop.f32.mrf.mxu0
      %v3467 = vadd.f32 %v3246, %v3466
      %v3468 = vpop.f32.mrf.mxu0
      %v3469 = vpop.f32.mrf.mxu0
      %v3470 = vadd.f32 %v3249, %v3469
      %v3471 = vpop.f32.mrf.mxu0
      %3472 = vmatprep.mubr.bf16.mxu0 0
      %3473 = vmatmul.mubr.bf16.gmra.mxu0 %v3074
      %v3474 = vpop.f32.mrf.mxu0
      %v3475 = vadd.f32 %v3254, %v3474
      %v3476 = vpop.f32.mrf.mxu0
      %v3477 = vpop.f32.mrf.mxu0
      %v3478 = vadd.f32 %v3257, %v3477
      %v3479 = vpop.f32.mrf.mxu0
      %3480 = vmatprep.mubr.bf16.mxu0 0
      %3481 = vmatmul.mubr.bf16.gmra.mxu0 %v3075
      %v3482 = vpop.f32.mrf.mxu0
      %v3483 = vadd.f32 %v3262, %v3482
      %v3484 = vpop.f32.mrf.mxu0
      %v3485 = vpop.f32.mrf.mxu0
      %v3486 = vadd.f32 %v3265, %v3485
      %v3487 = vpop.f32.mrf.mxu0
      %3488 = vmatprep.mubr.bf16.mxu0 0
      %3489 = vmatmul.mubr.bf16.gmra.mxu0 %v3076
      %v3490 = vpop.f32.mrf.mxu0
      %v3491 = vadd.f32 %v3270, %v3490
      %v3492 = vpop.f32.mrf.mxu0
      %v3493 = vpop.f32.mrf.mxu0
      %v3494 = vadd.f32 %v3273, %v3493
      %v3495 = vpop.f32.mrf.mxu0
      %3496 = vmatprep.mubr.bf16.mxu0 0
      %3497 = vmatmul.mubr.bf16.gmra.mxu0 %v3077
      %v3498 = vpop.f32.mrf.mxu0
      %v3499 = vadd.f32 %v3278, %v3498
      %v3500 = vpop.f32.mrf.mxu0
      %v3501 = vpop.f32.mrf.mxu0
      %v3502 = vadd.f32 %v3281, %v3501
      %v3503 = vpop.f32.mrf.mxu0
      %3504 = vmatprep.mubr.bf16.mxu0 0
      %3505 = vmatmul.mubr.bf16.gmra.mxu0 %v3078
      %v3506 = vpop.f32.mrf.mxu0
      %v3507 = vadd.f32 %v3286, %v3506
      %v3508 = vpop.f32.mrf.mxu0
      %v3509 = vpop.f32.mrf.mxu0
      %v3510 = vadd.f32 %v3289, %v3509
      %v3511 = vpop.f32.mrf.mxu0
      %3512 = vmatprep.mubr.bf16.mxu0 0
      %3513 = vmatmul.mubr.bf16.gmra.mxu0 %v3079
      %v3514 = vpop.f32.mrf.mxu0
      %v3515 = vadd.f32 %v3294, %v3514
      %v3516 = vpop.f32.mrf.mxu0
      %v3517 = vpop.f32.mrf.mxu0
      %v3518 = vadd.f32 %v3297, %v3517
      %v3519 = vpop.f32.mrf.mxu0
      %3520 = vmatprep.mubr.bf16.mxu0 0
      %3521 = vmatmul.mubr.bf16.gmra.mxu0 %v3080
      %v3522 = vpop.f32.mrf.mxu0
      %v3523 = vadd.f32 %v3302, %v3522
      %v3524 = vpop.f32.mrf.mxu0
      %v3525 = vpop.f32.mrf.mxu0
      %v3526 = vadd.f32 %v3305, %v3525
      %v3527 = vpop.f32.mrf.mxu0
      %3528 = vdwg.mxu0
      %v3529 = vld [vmem:[#allocation2 + $0xa0] sm:$0xf]
      %v3530 = vld [vmem:[#allocation2 + $0xa4] sm:$0xf]
      %v3531 = vld [vmem:[#allocation2 + $0xa8] sm:$0xf]
      %v3532 = vld [vmem:[#allocation2 + $0xac] sm:$0xf]
      %v3533 = vld [vmem:[#allocation2 + $0xb0] sm:$0xf]
      %v3534 = vld [vmem:[#allocation2 + $0xb4] sm:$0xf]
      %v3535 = vld [vmem:[#allocation2 + $0xb8] sm:$0xf]
      %v3536 = vld [vmem:[#allocation2 + $0xbc] sm:$0xf]
      %v3537 = vld [vmem:[#allocation2 + $0xc0] sm:$0xf]
      %v3538 = vld [vmem:[#allocation2 + $0xc4] sm:$0xf]
      %v3539 = vld [vmem:[#allocation2 + $0xc8] sm:$0xf]
      %v3540 = vld [vmem:[#allocation2 + $0xcc] sm:$0xf]
      %v3541 = vld [vmem:[#allocation2 + $0xd0] sm:$0xf]
      %v3542 = vld [vmem:[#allocation2 + $0xd4] sm:$0xf]
      %v3543 = vld [vmem:[#allocation2 + $0xd8] sm:$0xf]
      %v3544 = vld [vmem:[#allocation2 + $0xdc] sm:$0xf]
      %v3545 = vld [vmem:[#allocation2 + $0xe0] sm:$0xf]
      %v3546 = vld [vmem:[#allocation2 + $0xe4] sm:$0xf]
      %v3547 = vld [vmem:[#allocation2 + $0xe8] sm:$0xf]
      %v3548 = vld [vmem:[#allocation2 + $0xec] sm:$0xf]
      %v3549 = vld [vmem:[#allocation2 + $0xf0] sm:$0xf]
      %v3550 = vld [vmem:[#allocation2 + $0xf4] sm:$0xf]
      %v3551 = vld [vmem:[#allocation2 + $0xf8] sm:$0xf]
      %v3552 = vld [vmem:[#allocation2 + $0xfc] sm:$0xf]
      %v3553 = vld [vmem:[#allocation2 + $0x100] sm:$0xf]
      %v3554 = vld [vmem:[#allocation2 + $0x104] sm:$0xf]
      %v3555 = vld [vmem:[#allocation2 + $0x108] sm:$0xf]
      %v3556 = vld [vmem:[#allocation2 + $0x10c] sm:$0xf]
      %v3557 = vld [vmem:[#allocation2 + $0x110] sm:$0xf]
      %v3558 = vld [vmem:[#allocation2 + $0x114] sm:$0xf]
      %v3559 = vld [vmem:[#allocation2 + $0x118] sm:$0xf]
      %v3560 = vld [vmem:[#allocation2 + $0x11c] sm:$0xf]
      %v3561 = vld [vmem:[%s2511] sm:$0xf]
      %v3562 = vld [vmem:[%s2511 + $0x4] sm:$0xf]
      %v3563 = vld [vmem:[%s2511 + $0x8] sm:$0xf]
      %v3564 = vld [vmem:[%s2511 + $0xc] sm:$0xf]
      %v3565 = vld [vmem:[%s2511 + $0x10] sm:$0xf]
      %v3566 = vld [vmem:[%s2511 + $0x14] sm:$0xf]
      %v3567 = vld [vmem:[%s2511 + $0x18] sm:$0xf]
      %v3568 = vld [vmem:[%s2511 + $0x1c] sm:$0xf]
      %v3569 = vld [vmem:[%s2511 + $0x20] sm:$0xf]
      %v3570 = vld [vmem:[%s2511 + $0x24] sm:$0xf]
      %v3571 = vld [vmem:[%s2511 + $0x28] sm:$0xf]
      %v3572 = vld [vmem:[%s2511 + $0x2c] sm:$0xf]
      %v3573 = vld [vmem:[%s2511 + $0x30] sm:$0xf]
      %v3574 = vld [vmem:[%s2511 + $0x34] sm:$0xf]
      %v3575 = vld [vmem:[%s2511 + $0x38] sm:$0xf]
      %v3576 = vld [vmem:[%s2511 + $0x3c] sm:$0xf]
      %v3609 = vunpack.c.l.b16 %v3529
      %v3610 = vunpack.c.l.b16 %v3530
      %v3611 = vunpack.c.l.b16 %v3531
      %v3612 = vunpack.c.l.b16 %v3532
      %v3613 = vunpack.c.l.b16 %v3533
      %v3614 = vunpack.c.l.b16 %v3534
      %v3615 = vunpack.c.l.b16 %v3535
      %v3616 = vunpack.c.l.b16 %v3536
      %v3617 = vunpack.c.l.b16 %v3537
      %v3618 = vunpack.c.l.b16 %v3538
      %v3619 = vunpack.c.l.b16 %v3539
      %v3620 = vunpack.c.l.b16 %v3540
      %v3621 = vunpack.c.l.b16 %v3541
      %v3622 = vunpack.c.l.b16 %v3542
      %v3623 = vunpack.c.l.b16 %v3543
      %v3624 = vunpack.c.l.b16 %v3544
      %v3625 = vunpack.c.l.b16 %v3545
      %v3626 = vunpack.c.l.b16 %v3546
      %v3627 = vunpack.c.l.b16 %v3547
      %v3628 = vunpack.c.l.b16 %v3548
      %v3629 = vunpack.c.l.b16 %v3549
      %v3630 = vunpack.c.l.b16 %v3550
      %v3631 = vunpack.c.l.b16 %v3551
      %v3632 = vunpack.c.l.b16 %v3552
      %v3633 = vunpack.c.l.b16 %v3553
      %v3634 = vunpack.c.l.b16 %v3554
      %v3635 = vunpack.c.l.b16 %v3555
      %v3636 = vunpack.c.l.b16 %v3556
      %v3637 = vunpack.c.l.b16 %v3557
      %v3638 = vunpack.c.l.b16 %v3558
      %v3639 = vunpack.c.l.b16 %v3559
      %v3640 = vunpack.c.l.b16 %v3560
      %v3641 = vpack.c.b16 %v3610, %v3609
      %v3642 = vpack.c.b16 %v3612, %v3611
      %v3643 = vpack.c.b16 %v3614, %v3613
      %v3644 = vpack.c.b16 %v3616, %v3615
      %v3645 = vpack.c.b16 %v3618, %v3617
      %v3646 = vpack.c.b16 %v3620, %v3619
      %v3647 = vpack.c.b16 %v3622, %v3621
      %v3648 = vpack.c.b16 %v3624, %v3623
      %v3649 = vpack.c.b16 %v3626, %v3625
      %v3650 = vpack.c.b16 %v3628, %v3627
      %v3651 = vpack.c.b16 %v3630, %v3629
      %v3652 = vpack.c.b16 %v3632, %v3631
      %v3653 = vpack.c.b16 %v3634, %v3633
      %v3654 = vpack.c.b16 %v3636, %v3635
      %v3655 = vpack.c.b16 %v3638, %v3637
      %v3656 = vpack.c.b16 %v3640, %v3639
      %v3689 = vunpack.c.l.b16 %v3561
      %v3690 = vunpack.c.l.b16 %v3562
      %v3691 = vunpack.c.l.b16 %v3563
      %v3692 = vunpack.c.l.b16 %v3564
      %v3693 = vunpack.c.l.b16 %v3565
      %v3694 = vunpack.c.l.b16 %v3566
      %v3695 = vunpack.c.l.b16 %v3567
      %v3696 = vunpack.c.l.b16 %v3568
      %v3697 = vunpack.c.l.b16 %v3569
      %v3698 = vunpack.c.l.b16 %v3570
      %v3699 = vunpack.c.l.b16 %v3571
      %v3700 = vunpack.c.l.b16 %v3572
      %v3701 = vunpack.c.l.b16 %v3573
      %v3702 = vunpack.c.l.b16 %v3574
      %v3703 = vunpack.c.l.b16 %v3575
      %v3704 = vunpack.c.l.b16 %v3576
      %v3705 = vpack.c.b16 %v3690, %v3689
      %v3706 = vpack.c.b16 %v3692, %v3691
      %v3707 = vpack.c.b16 %v3694, %v3693
      %v3708 = vpack.c.b16 %v3696, %v3695
      %v3709 = vpack.c.b16 %v3698, %v3697
      %v3710 = vpack.c.b16 %v3700, %v3699
      %v3711 = vpack.c.b16 %v3702, %v3701
      %v3712 = vpack.c.b16 %v3704, %v3703
      %3721 = vmatprep.subr.bf16.mxu0 0
      %3722 = vmatpush1.bf16.msra.mxu0 %v3712
      %3723 = vmatprep.subr.bf16.mxu0 0
      %3724 = vmatpush1.bf16.msra.mxu0 %v3711
      %3725 = vmatprep.subr.bf16.mxu0 0
      %3726 = vmatpush1.bf16.msra.mxu0 %v3710
      %3727 = vmatprep.subr.bf16.mxu0 0
      %3728 = vmatpush1.bf16.msra.mxu0 %v3709
      %3729 = vmatprep.subr.bf16.mxu0 0
      %3730 = vmatpush1.bf16.msra.mxu0 %v3708
      %3731 = vmatprep.subr.bf16.mxu0 0
      %3732 = vmatpush1.bf16.msra.mxu0 %v3707
      %3733 = vmatprep.subr.bf16.mxu0 0
      %3734 = vmatpush1.bf16.msra.mxu0 %v3706
      %3735 = vmatprep.subr.bf16.mxu0 0
      %3736 = vmatpush1.bf16.msra.mxu0 %v3705
      %3737 = vmatprep.subr.bf16.mxu0 0
      %3738 = vmatpush2.bf16.msra.mxu0 0
      %3739 = vmatprep.subr.bf16.mxu0 0
      %3740 = vmatpush2.bf16.msra.mxu0 0
      %3741 = vmatprep.subr.bf16.mxu0 0
      %3742 = vmatpush2.bf16.msra.mxu0 0
      %3743 = vmatprep.subr.bf16.mxu0 0
      %3744 = vmatpush2.bf16.msra.mxu0 0
      %3745 = vmatprep.subr.bf16.mxu0 0
      %3746 = vmatpush2.bf16.msra.mxu0 0
      %3747 = vmatprep.subr.bf16.mxu0 0
      %3748 = vmatpush2.bf16.msra.mxu0 0
      %3749 = vmatprep.subr.bf16.mxu0 0
      %3750 = vmatpush2.bf16.msra.mxu0 0
      %3751 = vmatprep.subr.bf16.mxu0 0
      %3752 = vmatpush2.bf16.msra.mxu0 0
      %3753 = vmatprep.mubr.bf16.mxu0 0
      %3754 = vmatmul.mubr.bf16.gmra.mxu0 %v3641
      %v3755 = vpop.f32.mrf.mxu0
      %v3756 = vadd.f32 0.0, %v3755
      %v3757 = vpop.f32.mrf.mxu0
      %v3758 = vpop.f32.mrf.mxu0
      %v3759 = vadd.f32 0.0, %v3758
      %v3760 = vpop.f32.mrf.mxu0
      %3761 = vmatprep.mubr.bf16.mxu0 0
      %3762 = vmatmul.mubr.bf16.gmra.mxu0 %v3642
      %v3763 = vpop.f32.mrf.mxu0
      %v3764 = vadd.f32 0.0, %v3763
      %v3765 = vpop.f32.mrf.mxu0
      %v3766 = vpop.f32.mrf.mxu0
      %v3767 = vadd.f32 0.0, %v3766
      %v3768 = vpop.f32.mrf.mxu0
      %3769 = vmatprep.mubr.bf16.mxu0 0
      %3770 = vmatmul.mubr.bf16.gmra.mxu0 %v3643
      %v3771 = vpop.f32.mrf.mxu0
      %v3772 = vadd.f32 0.0, %v3771
      %v3773 = vpop.f32.mrf.mxu0
      %v3774 = vpop.f32.mrf.mxu0
      %v3775 = vadd.f32 0.0, %v3774
      %v3776 = vpop.f32.mrf.mxu0
      %3777 = vmatprep.mubr.bf16.mxu0 0
      %3778 = vmatmul.mubr.bf16.gmra.mxu0 %v3644
      %v3779 = vpop.f32.mrf.mxu0
      %v3780 = vadd.f32 0.0, %v3779
      %v3781 = vpop.f32.mrf.mxu0
      %v3782 = vpop.f32.mrf.mxu0
      %v3783 = vadd.f32 0.0, %v3782
      %v3784 = vpop.f32.mrf.mxu0
      %3785 = vmatprep.mubr.bf16.mxu0 0
      %3786 = vmatmul.mubr.bf16.gmra.mxu0 %v3645
      %v3787 = vpop.f32.mrf.mxu0
      %v3788 = vadd.f32 0.0, %v3787
      %v3789 = vpop.f32.mrf.mxu0
      %v3790 = vpop.f32.mrf.mxu0
      %v3791 = vadd.f32 0.0, %v3790
      %v3792 = vpop.f32.mrf.mxu0
      %3793 = vmatprep.mubr.bf16.mxu0 0
      %3794 = vmatmul.mubr.bf16.gmra.mxu0 %v3646
      %v3795 = vpop.f32.mrf.mxu0
      %v3796 = vadd.f32 0.0, %v3795
      %v3797 = vpop.f32.mrf.mxu0
      %v3798 = vpop.f32.mrf.mxu0
      %v3799 = vadd.f32 0.0, %v3798
      %v3800 = vpop.f32.mrf.mxu0
      %3801 = vmatprep.mubr.bf16.mxu0 0
      %3802 = vmatmul.mubr.bf16.gmra.mxu0 %v3647
      %v3803 = vpop.f32.mrf.mxu0
      %v3804 = vadd.f32 0.0, %v3803
      %v3805 = vpop.f32.mrf.mxu0
      %v3806 = vpop.f32.mrf.mxu0
      %v3807 = vadd.f32 0.0, %v3806
      %v3808 = vpop.f32.mrf.mxu0
      %3809 = vmatprep.mubr.bf16.mxu0 0
      %3810 = vmatmul.mubr.bf16.gmra.mxu0 %v3648
      %v3811 = vpop.f32.mrf.mxu0
      %v3812 = vadd.f32 0.0, %v3811
      %v3813 = vpop.f32.mrf.mxu0
      %v3814 = vpop.f32.mrf.mxu0
      %v3815 = vadd.f32 0.0, %v3814
      %v3816 = vpop.f32.mrf.mxu0
      %3817 = vmatprep.mubr.bf16.mxu0 0
      %3818 = vmatmul.mubr.bf16.gmra.mxu0 %v3649
      %v3819 = vpop.f32.mrf.mxu0
      %v3820 = vadd.f32 0.0, %v3819
      %v3821 = vpop.f32.mrf.mxu0
      %v3822 = vpop.f32.mrf.mxu0
      %v3823 = vadd.f32 0.0, %v3822
      %v3824 = vpop.f32.mrf.mxu0
      %3825 = vmatprep.mubr.bf16.mxu0 0
      %3826 = vmatmul.mubr.bf16.gmra.mxu0 %v3650
      %v3827 = vpop.f32.mrf.mxu0
      %v3828 = vadd.f32 0.0, %v3827
      %v3829 = vpop.f32.mrf.mxu0
      %v3830 = vpop.f32.mrf.mxu0
      %v3831 = vadd.f32 0.0, %v3830
      %v3832 = vpop.f32.mrf.mxu0
      %3833 = vmatprep.mubr.bf16.mxu0 0
      %3834 = vmatmul.mubr.bf16.gmra.mxu0 %v3651
      %v3835 = vpop.f32.mrf.mxu0
      %v3836 = vadd.f32 0.0, %v3835
      %v3837 = vpop.f32.mrf.mxu0
      %v3838 = vpop.f32.mrf.mxu0
      %v3839 = vadd.f32 0.0, %v3838
      %v3840 = vpop.f32.mrf.mxu0
      %3841 = vmatprep.mubr.bf16.mxu0 0
      %3842 = vmatmul.mubr.bf16.gmra.mxu0 %v3652
      %v3843 = vpop.f32.mrf.mxu0
      %v3844 = vadd.f32 0.0, %v3843
      %v3845 = vpop.f32.mrf.mxu0
      %v3846 = vpop.f32.mrf.mxu0
      %v3847 = vadd.f32 0.0, %v3846
      %v3848 = vpop.f32.mrf.mxu0
      %3849 = vmatprep.mubr.bf16.mxu0 0
      %3850 = vmatmul.mubr.bf16.gmra.mxu0 %v3653
      %v3851 = vpop.f32.mrf.mxu0
      %v3852 = vadd.f32 0.0, %v3851
      %v3853 = vpop.f32.mrf.mxu0
      %v3854 = vpop.f32.mrf.mxu0
      %v3855 = vadd.f32 0.0, %v3854
      %v3856 = vpop.f32.mrf.mxu0
      %3857 = vmatprep.mubr.bf16.mxu0 0
      %3858 = vmatmul.mubr.bf16.gmra.mxu0 %v3654
      %v3859 = vpop.f32.mrf.mxu0
      %v3860 = vadd.f32 0.0, %v3859
      %v3861 = vpop.f32.mrf.mxu0
      %v3862 = vpop.f32.mrf.mxu0
      %v3863 = vadd.f32 0.0, %v3862
      %v3864 = vpop.f32.mrf.mxu0
      %3865 = vmatprep.mubr.bf16.mxu0 0
      %3866 = vmatmul.mubr.bf16.gmra.mxu0 %v3655
      %v3867 = vpop.f32.mrf.mxu0
      %v3868 = vadd.f32 0.0, %v3867
      %v3869 = vpop.f32.mrf.mxu0
      %v3870 = vpop.f32.mrf.mxu0
      %v3871 = vadd.f32 0.0, %v3870
      %v3872 = vpop.f32.mrf.mxu0
      %3873 = vmatprep.mubr.bf16.mxu0 0
      %3874 = vmatmul.mubr.bf16.gmra.mxu0 %v3656
      %v3875 = vpop.f32.mrf.mxu0
      %v3876 = vadd.f32 0.0, %v3875
      %v3877 = vpop.f32.mrf.mxu0
      %v3878 = vpop.f32.mrf.mxu0
      %v3879 = vadd.f32 0.0, %v3878
      %v3880 = vpop.f32.mrf.mxu0
      %3881 = vdwg.mxu0
      %v3882 = vadd.f32 %v3403, %v3756
      %v3883 = vadd.f32 %v3406, %v3759
      %v3884 = vadd.f32 %v3411, %v3764
      %v3885 = vadd.f32 %v3414, %v3767
      %v3886 = vadd.f32 %v3419, %v3772
      %v3887 = vadd.f32 %v3422, %v3775
      %v3888 = vadd.f32 %v3427, %v3780
      %v3889 = vadd.f32 %v3430, %v3783
      %v3890 = vadd.f32 %v3435, %v3788
      %v3891 = vadd.f32 %v3438, %v3791
      %v3892 = vadd.f32 %v3443, %v3796
      %v3893 = vadd.f32 %v3446, %v3799
      %v3894 = vadd.f32 %v3451, %v3804
      %v3895 = vadd.f32 %v3454, %v3807
      %v3896 = vadd.f32 %v3459, %v3812
      %v3897 = vadd.f32 %v3462, %v3815
      %v3898 = vadd.f32 %v3467, %v3820
      %v3899 = vadd.f32 %v3470, %v3823
      %v3900 = vadd.f32 %v3475, %v3828
      %v3901 = vadd.f32 %v3478, %v3831
      %v3902 = vadd.f32 %v3483, %v3836
      %v3903 = vadd.f32 %v3486, %v3839
      %v3904 = vadd.f32 %v3491, %v3844
      %v3905 = vadd.f32 %v3494, %v3847
      %v3906 = vadd.f32 %v3499, %v3852
      %v3907 = vadd.f32 %v3502, %v3855
      %v3908 = vadd.f32 %v3507, %v3860
      %v3909 = vadd.f32 %v3510, %v3863
      %v3910 = vadd.f32 %v3515, %v3868
      %v3911 = vadd.f32 %v3518, %v3871
      %v3912 = vadd.f32 %v3523, %v3876
      %v3913 = vadd.f32 %v3526, %v3879
      %v3914 = vadd.f32 %v3882, %v2869
      %v3915 = vadd.f32 %v3883, %v2869
      %v3916 = vadd.f32 %v3884, %v2869
      %v3917 = vadd.f32 %v3885, %v2869
      %v3918 = vadd.f32 %v3886, %v2869
      %v3919 = vadd.f32 %v3887, %v2869
      %v3920 = vadd.f32 %v3888, %v2869
      %v3921 = vadd.f32 %v3889, %v2869
      %v3922 = vadd.f32 %v3890, %v2869
      %v3923 = vadd.f32 %v3891, %v2869
      %v3924 = vadd.f32 %v3892, %v2869
      %v3925 = vadd.f32 %v3893, %v2869
      %v3926 = vadd.f32 %v3894, %v2869
      %v3927 = vadd.f32 %v3895, %v2869
      %v3928 = vadd.f32 %v3896, %v2869
      %v3929 = vadd.f32 %v3897, %v2869
      %v3930 = vadd.f32 %v3898, %v2869
      %v3931 = vadd.f32 %v3899, %v2869
      %v3932 = vadd.f32 %v3900, %v2869
      %v3933 = vadd.f32 %v3901, %v2869
      %v3934 = vadd.f32 %v3902, %v2869
      %v3935 = vadd.f32 %v3903, %v2869
      %v3936 = vadd.f32 %v3904, %v2869
      %v3937 = vadd.f32 %v3905, %v2869
      %v3938 = vadd.f32 %v3906, %v2869
      %v3939 = vadd.f32 %v3907, %v2869
      %v3940 = vadd.f32 %v3908, %v2869
      %v3941 = vadd.f32 %v3909, %v2869
      %v3942 = vadd.f32 %v3910, %v2869
      %v3943 = vadd.f32 %v3911, %v2869
      %v3944 = vadd.f32 %v3912, %v2869
      %v3945 = vadd.f32 %v3913, %v2869
      %3946 = vst [vmem:[#allocation3 + $0x100] sm:$0xff] %v3914
      %3947 = vst [vmem:[#allocation3 + $0x108] sm:$0xff] %v3915
      %3948 = vst [vmem:[#allocation3 + $0x110] sm:$0xff] %v3916
      %3949 = vst [vmem:[#allocation3 + $0x118] sm:$0xff] %v3917
      %3950 = vst [vmem:[#allocation3 + $0x120] sm:$0xff] %v3918
      %3951 = vst [vmem:[#allocation3 + $0x128] sm:$0xff] %v3919
      %3952 = vst [vmem:[#allocation3 + $0x130] sm:$0xff] %v3920
      %3953 = vst [vmem:[#allocation3 + $0x138] sm:$0xff] %v3921
      %3954 = vst [vmem:[#allocation3 + $0x140] sm:$0xff] %v3922
      %3955 = vst [vmem:[#allocation3 + $0x148] sm:$0xff] %v3923
      %3956 = vst [vmem:[#allocation3 + $0x150] sm:$0xff] %v3924
      %3957 = vst [vmem:[#allocation3 + $0x158] sm:$0xff] %v3925
      %3958 = vst [vmem:[#allocation3 + $0x160] sm:$0xff] %v3926
      %3959 = vst [vmem:[#allocation3 + $0x168] sm:$0xff] %v3927
      %3960 = vst [vmem:[#allocation3 + $0x170] sm:$0xff] %v3928
      %3961 = vst [vmem:[#allocation3 + $0x178] sm:$0xff] %v3929
      %3962 = vst [vmem:[#allocation3 + $0x180] sm:$0xff] %v3930
      %3963 = vst [vmem:[#allocation3 + $0x188] sm:$0xff] %v3931
      %3964 = vst [vmem:[#allocation3 + $0x190] sm:$0xff] %v3932
      %3965 = vst [vmem:[#allocation3 + $0x198] sm:$0xff] %v3933
      %3966 = vst [vmem:[#allocation3 + $0x1a0] sm:$0xff] %v3934
      %3967 = vst [vmem:[#allocation3 + $0x1a8] sm:$0xff] %v3935
      %3968 = vst [vmem:[#allocation3 + $0x1b0] sm:$0xff] %v3936
      %3969 = vst [vmem:[#allocation3 + $0x1b8] sm:$0xff] %v3937
      %3970 = vst [vmem:[#allocation3 + $0x1c0] sm:$0xff] %v3938
      %3971 = vst [vmem:[#allocation3 + $0x1c8] sm:$0xff] %v3939
      %3972 = vst [vmem:[#allocation3 + $0x1d0] sm:$0xff] %v3940
      %3973 = vst [vmem:[#allocation3 + $0x1d8] sm:$0xff] %v3941
      %3974 = vst [vmem:[#allocation3 + $0x1e0] sm:$0xff] %v3942
      %3975 = vst [vmem:[#allocation3 + $0x1e8] sm:$0xff] %v3943
      %3976 = vst [vmem:[#allocation3 + $0x1f0] sm:$0xff] %v3944
      %3977 = vst [vmem:[#allocation3 + $0x1f8] sm:$0xff] %v3945
      %v3978 = vld [vmem:[#allocation2 + $0x100] sm:$0xf]
      %v3979 = vld [vmem:[#allocation2 + $0x104] sm:$0xf]
      %v3980 = vld [vmem:[#allocation2 + $0x108] sm:$0xf]
      %v3981 = vld [vmem:[#allocation2 + $0x10c] sm:$0xf]
      %v3982 = vld [vmem:[#allocation2 + $0x110] sm:$0xf]
      %v3983 = vld [vmem:[#allocation2 + $0x114] sm:$0xf]
      %v3984 = vld [vmem:[#allocation2 + $0x118] sm:$0xf]
      %v3985 = vld [vmem:[#allocation2 + $0x11c] sm:$0xf]
      %v3986 = vld [vmem:[#allocation2 + $0x120] sm:$0xf]
      %v3987 = vld [vmem:[#allocation2 + $0x124] sm:$0xf]
      %v3988 = vld [vmem:[#allocation2 + $0x128] sm:$0xf]
      %v3989 = vld [vmem:[#allocation2 + $0x12c] sm:$0xf]
      %v3990 = vld [vmem:[#allocation2 + $0x130] sm:$0xf]
      %v3991 = vld [vmem:[#allocation2 + $0x134] sm:$0xf]
      %v3992 = vld [vmem:[#allocation2 + $0x138] sm:$0xf]
      %v3993 = vld [vmem:[#allocation2 + $0x13c] sm:$0xf]
      %v3994 = vld [vmem:[#allocation2 + $0x140] sm:$0xf]
      %v3995 = vld [vmem:[#allocation2 + $0x144] sm:$0xf]
      %v3996 = vld [vmem:[#allocation2 + $0x148] sm:$0xf]
      %v3997 = vld [vmem:[#allocation2 + $0x14c] sm:$0xf]
      %v3998 = vld [vmem:[#allocation2 + $0x150] sm:$0xf]
      %v3999 = vld [vmem:[#allocation2 + $0x154] sm:$0xf]
      %v4000 = vld [vmem:[#allocation2 + $0x158] sm:$0xf]
      %v4001 = vld [vmem:[#allocation2 + $0x15c] sm:$0xf]
      %v4002 = vld [vmem:[#allocation2 + $0x160] sm:$0xf]
      %v4003 = vld [vmem:[#allocation2 + $0x164] sm:$0xf]
      %v4004 = vld [vmem:[#allocation2 + $0x168] sm:$0xf]
      %v4005 = vld [vmem:[#allocation2 + $0x16c] sm:$0xf]
      %v4006 = vld [vmem:[#allocation2 + $0x170] sm:$0xf]
      %v4007 = vld [vmem:[#allocation2 + $0x174] sm:$0xf]
      %v4008 = vld [vmem:[#allocation2 + $0x178] sm:$0xf]
      %v4009 = vld [vmem:[#allocation2 + $0x17c] sm:$0xf]
      %v4010 = vld [vmem:[%s3] sm:$0xf]
      %v4011 = vld [vmem:[%s3 + $0x4] sm:$0xf]
      %v4012 = vld [vmem:[%s3 + $0x8] sm:$0xf]
      %v4013 = vld [vmem:[%s3 + $0xc] sm:$0xf]
      %v4014 = vld [vmem:[%s3 + $0x10] sm:$0xf]
      %v4015 = vld [vmem:[%s3 + $0x14] sm:$0xf]
      %v4016 = vld [vmem:[%s3 + $0x18] sm:$0xf]
      %v4017 = vld [vmem:[%s3 + $0x1c] sm:$0xf]
      %v4018 = vld [vmem:[%s3 + $0x20] sm:$0xf]
      %v4019 = vld [vmem:[%s3 + $0x24] sm:$0xf]
      %v4020 = vld [vmem:[%s3 + $0x28] sm:$0xf]
      %v4021 = vld [vmem:[%s3 + $0x2c] sm:$0xf]
      %v4022 = vld [vmem:[%s3 + $0x30] sm:$0xf]
      %v4023 = vld [vmem:[%s3 + $0x34] sm:$0xf]
      %v4024 = vld [vmem:[%s3 + $0x38] sm:$0xf]
      %v4025 = vld [vmem:[%s3 + $0x3c] sm:$0xf]
      %v4026 = vld [vmem:[#allocation2 + $0x180] sm:$0xf]
      %v4027 = vld [vmem:[#allocation2 + $0x184] sm:$0xf]
      %v4028 = vld [vmem:[#allocation2 + $0x188] sm:$0xf]
      %v4029 = vld [vmem:[#allocation2 + $0x18c] sm:$0xf]
      %v4030 = vld [vmem:[%s1936] sm:$0xf]
      %v4031 = vld [vmem:[%s1936 + $0x4] sm:$0xf]
      %v4032 = vld [vmem:[%s1936 + $0x8] sm:$0xf]
      %v4033 = vld [vmem:[%s1936 + $0xc] sm:$0xf]
      %v4034 = vld [vmem:[%s1936 + $0x10] sm:$0xf]
      %v4035 = vld [vmem:[%s1936 + $0x14] sm:$0xf]
      %v4036 = vld [vmem:[%s1936 + $0x18] sm:$0xf]
      %v4037 = vld [vmem:[%s1936 + $0x1c] sm:$0xf]
      %v4038 = vld [vmem:[%s1936 + $0x20] sm:$0xf]
      %v4039 = vld [vmem:[%s1936 + $0x24] sm:$0xf]
      %v4040 = vld [vmem:[%s1936 + $0x28] sm:$0xf]
      %v4041 = vld [vmem:[%s1936 + $0x2c] sm:$0xf]
      %v4042 = vld [vmem:[%s1936 + $0x30] sm:$0xf]
      %v4043 = vld [vmem:[%s1936 + $0x34] sm:$0xf]
      %v4044 = vld [vmem:[%s1936 + $0x38] sm:$0xf]
      %v4045 = vld [vmem:[%s1936 + $0x3c] sm:$0xf]
      %v4078 = vunpack.c.l.b16 %v3982
      %v4079 = vunpack.c.l.b16 %v3983
      %v4080 = vunpack.c.l.b16 %v3984
      %v4081 = vunpack.c.l.b16 %v3985
      %v4082 = vunpack.c.l.b16 %v3986
      %v4083 = vunpack.c.l.b16 %v3987
      %v4084 = vunpack.c.l.b16 %v3988
      %v4085 = vunpack.c.l.b16 %v3989
      %v4086 = vunpack.c.l.b16 %v3990
      %v4087 = vunpack.c.l.b16 %v3991
      %v4088 = vunpack.c.l.b16 %v3992
      %v4089 = vunpack.c.l.b16 %v3993
      %v4090 = vunpack.c.l.b16 %v3994
      %v4091 = vunpack.c.l.b16 %v3995
      %v4092 = vunpack.c.l.b16 %v3996
      %v4093 = vunpack.c.l.b16 %v3997
      %v4094 = vunpack.c.l.b16 %v3998
      %v4095 = vunpack.c.l.b16 %v3999
      %v4096 = vunpack.c.l.b16 %v4000
      %v4097 = vunpack.c.l.b16 %v4001
      %v4098 = vunpack.c.l.b16 %v4002
      %v4099 = vunpack.c.l.b16 %v4003
      %v4100 = vunpack.c.l.b16 %v4004
      %v4101 = vunpack.c.l.b16 %v4005
      %v4102 = vunpack.c.l.b16 %v4006
      %v4103 = vunpack.c.l.b16 %v4007
      %v4104 = vunpack.c.l.b16 %v4008
      %v4105 = vunpack.c.l.b16 %v4009
      %v4106 = vunpack.c.l.b16 %v4026
      %v4107 = vunpack.c.l.b16 %v4027
      %v4108 = vunpack.c.l.b16 %v4028
      %v4109 = vunpack.c.l.b16 %v4029
      %v4110 = vpack.c.b16 %v4079, %v4078
      %v4111 = vpack.c.b16 %v4081, %v4080
      %v4112 = vpack.c.b16 %v4083, %v4082
      %v4113 = vpack.c.b16 %v4085, %v4084
      %v4114 = vpack.c.b16 %v4087, %v4086
      %v4115 = vpack.c.b16 %v4089, %v4088
      %v4116 = vpack.c.b16 %v4091, %v4090
      %v4117 = vpack.c.b16 %v4093, %v4092
      %v4118 = vpack.c.b16 %v4095, %v4094
      %v4119 = vpack.c.b16 %v4097, %v4096
      %v4120 = vpack.c.b16 %v4099, %v4098
      %v4121 = vpack.c.b16 %v4101, %v4100
      %v4122 = vpack.c.b16 %v4103, %v4102
      %v4123 = vpack.c.b16 %v4105, %v4104
      %v4124 = vpack.c.b16 %v4107, %v4106
      %v4125 = vpack.c.b16 %v4109, %v4108
      %v4158 = vunpack.c.l.b16 %v4030
      %v4159 = vunpack.c.l.b16 %v4031
      %v4160 = vunpack.c.l.b16 %v4032
      %v4161 = vunpack.c.l.b16 %v4033
      %v4162 = vunpack.c.l.b16 %v4034
      %v4163 = vunpack.c.l.b16 %v4035
      %v4164 = vunpack.c.l.b16 %v4036
      %v4165 = vunpack.c.l.b16 %v4037
      %v4166 = vunpack.c.l.b16 %v4038
      %v4167 = vunpack.c.l.b16 %v4039
      %v4168 = vunpack.c.l.b16 %v4040
      %v4169 = vunpack.c.l.b16 %v4041
      %v4170 = vunpack.c.l.b16 %v4042
      %v4171 = vunpack.c.l.b16 %v4043
      %v4172 = vunpack.c.l.b16 %v4044
      %v4173 = vunpack.c.l.b16 %v4045
      %v4174 = vpack.c.b16 %v4159, %v4158
      %v4175 = vpack.c.b16 %v4161, %v4160
      %v4176 = vpack.c.b16 %v4163, %v4162
      %v4177 = vpack.c.b16 %v4165, %v4164
      %v4178 = vpack.c.b16 %v4167, %v4166
      %v4179 = vpack.c.b16 %v4169, %v4168
      %v4180 = vpack.c.b16 %v4171, %v4170
      %v4181 = vpack.c.b16 %v4173, %v4172
      %4190 = vmatprep.subr.bf16.mxu0 0
      %4191 = vmatpush1.bf16.msra.mxu0 %v4181
      %4192 = vmatprep.subr.bf16.mxu0 0
      %4193 = vmatpush1.bf16.msra.mxu0 %v4180
      %4194 = vmatprep.subr.bf16.mxu0 0
      %4195 = vmatpush1.bf16.msra.mxu0 %v4179
      %4196 = vmatprep.subr.bf16.mxu0 0
      %4197 = vmatpush1.bf16.msra.mxu0 %v4178
      %4198 = vmatprep.subr.bf16.mxu0 0
      %4199 = vmatpush1.bf16.msra.mxu0 %v4177
      %4200 = vmatprep.subr.bf16.mxu0 0
      %4201 = vmatpush1.bf16.msra.mxu0 %v4176
      %4202 = vmatprep.subr.bf16.mxu0 0
      %4203 = vmatpush1.bf16.msra.mxu0 %v4175
      %4204 = vmatprep.subr.bf16.mxu0 0
      %4205 = vmatpush1.bf16.msra.mxu0 %v4174
      %4206 = vmatprep.subr.bf16.mxu0 0
      %4207 = vmatpush2.bf16.msra.mxu0 0
      %4208 = vmatprep.subr.bf16.mxu0 0
      %4209 = vmatpush2.bf16.msra.mxu0 0
      %4210 = vmatprep.subr.bf16.mxu0 0
      %4211 = vmatpush2.bf16.msra.mxu0 0
      %4212 = vmatprep.subr.bf16.mxu0 0
      %4213 = vmatpush2.bf16.msra.mxu0 0
      %4214 = vmatprep.subr.bf16.mxu0 0
      %4215 = vmatpush2.bf16.msra.mxu0 0
      %4216 = vmatprep.subr.bf16.mxu0 0
      %4217 = vmatpush2.bf16.msra.mxu0 0
      %4218 = vmatprep.subr.bf16.mxu0 0
      %4219 = vmatpush2.bf16.msra.mxu0 0
      %4220 = vmatprep.subr.bf16.mxu0 0
      %4221 = vmatpush2.bf16.msra.mxu0 0
      %4222 = vmatprep.mubr.bf16.mxu0 0
      %4223 = vmatmul.mubr.bf16.gmra.mxu0 %v4110
      %v4224 = vpop.f32.mrf.mxu0
      %v4225 = vadd.f32 0.0, %v4224
      %v4226 = vpop.f32.mrf.mxu0
      %v4227 = vpop.f32.mrf.mxu0
      %v4228 = vadd.f32 0.0, %v4227
      %v4229 = vpop.f32.mrf.mxu0
      %4230 = vmatprep.mubr.bf16.mxu0 0
      %4231 = vmatmul.mubr.bf16.gmra.mxu0 %v4111
      %v4232 = vpop.f32.mrf.mxu0
      %v4233 = vadd.f32 0.0, %v4232
      %v4234 = vpop.f32.mrf.mxu0
      %v4235 = vpop.f32.mrf.mxu0
      %v4236 = vadd.f32 0.0, %v4235
      %v4237 = vpop.f32.mrf.mxu0
      %4238 = vmatprep.mubr.bf16.mxu0 0
      %4239 = vmatmul.mubr.bf16.gmra.mxu0 %v4112
      %v4240 = vpop.f32.mrf.mxu0
      %v4241 = vadd.f32 0.0, %v4240
      %v4242 = vpop.f32.mrf.mxu0
      %v4243 = vpop.f32.mrf.mxu0
      %v4244 = vadd.f32 0.0, %v4243
      %v4245 = vpop.f32.mrf.mxu0
      %4246 = vmatprep.mubr.bf16.mxu0 0
      %4247 = vmatmul.mubr.bf16.gmra.mxu0 %v4113
      %v4248 = vpop.f32.mrf.mxu0
      %v4249 = vadd.f32 0.0, %v4248
      %v4250 = vpop.f32.mrf.mxu0
      %v4251 = vpop.f32.mrf.mxu0
      %v4252 = vadd.f32 0.0, %v4251
      %v4253 = vpop.f32.mrf.mxu0
      %4254 = vmatprep.mubr.bf16.mxu0 0
      %4255 = vmatmul.mubr.bf16.gmra.mxu0 %v4114
      %v4256 = vpop.f32.mrf.mxu0
      %v4257 = vadd.f32 0.0, %v4256
      %v4258 = vpop.f32.mrf.mxu0
      %v4259 = vpop.f32.mrf.mxu0
      %v4260 = vadd.f32 0.0, %v4259
      %v4261 = vpop.f32.mrf.mxu0
      %4262 = vmatprep.mubr.bf16.mxu0 0
      %4263 = vmatmul.mubr.bf16.gmra.mxu0 %v4115
      %v4264 = vpop.f32.mrf.mxu0
      %v4265 = vadd.f32 0.0, %v4264
      %v4266 = vpop.f32.mrf.mxu0
      %v4267 = vpop.f32.mrf.mxu0
      %v4268 = vadd.f32 0.0, %v4267
      %v4269 = vpop.f32.mrf.mxu0
      %4270 = vmatprep.mubr.bf16.mxu0 0
      %4271 = vmatmul.mubr.bf16.gmra.mxu0 %v4116
      %v4272 = vpop.f32.mrf.mxu0
      %v4273 = vadd.f32 0.0, %v4272
      %v4274 = vpop.f32.mrf.mxu0
      %v4275 = vpop.f32.mrf.mxu0
      %v4276 = vadd.f32 0.0, %v4275
      %v4277 = vpop.f32.mrf.mxu0
      %4278 = vmatprep.mubr.bf16.mxu0 0
      %4279 = vmatmul.mubr.bf16.gmra.mxu0 %v4117
      %v4280 = vpop.f32.mrf.mxu0
      %v4281 = vadd.f32 0.0, %v4280
      %v4282 = vpop.f32.mrf.mxu0
      %v4283 = vpop.f32.mrf.mxu0
      %v4284 = vadd.f32 0.0, %v4283
      %v4285 = vpop.f32.mrf.mxu0
      %4286 = vmatprep.mubr.bf16.mxu0 0
      %4287 = vmatmul.mubr.bf16.gmra.mxu0 %v4118
      %v4288 = vpop.f32.mrf.mxu0
      %v4289 = vadd.f32 0.0, %v4288
      %v4290 = vpop.f32.mrf.mxu0
      %v4291 = vpop.f32.mrf.mxu0
      %v4292 = vadd.f32 0.0, %v4291
      %v4293 = vpop.f32.mrf.mxu0
      %4294 = vmatprep.mubr.bf16.mxu0 0
      %4295 = vmatmul.mubr.bf16.gmra.mxu0 %v4119
      %v4296 = vpop.f32.mrf.mxu0
      %v4297 = vadd.f32 0.0, %v4296
      %v4298 = vpop.f32.mrf.mxu0
      %v4299 = vpop.f32.mrf.mxu0
      %v4300 = vadd.f32 0.0, %v4299
      %v4301 = vpop.f32.mrf.mxu0
      %4302 = vmatprep.mubr.bf16.mxu0 0
      %4303 = vmatmul.mubr.bf16.gmra.mxu0 %v4120
      %v4304 = vpop.f32.mrf.mxu0
      %v4305 = vadd.f32 0.0, %v4304
      %v4306 = vpop.f32.mrf.mxu0
      %v4307 = vpop.f32.mrf.mxu0
      %v4308 = vadd.f32 0.0, %v4307
      %v4309 = vpop.f32.mrf.mxu0
      %4310 = vmatprep.mubr.bf16.mxu0 0
      %4311 = vmatmul.mubr.bf16.gmra.mxu0 %v4121
      %v4312 = vpop.f32.mrf.mxu0
      %v4313 = vadd.f32 0.0, %v4312
      %v4314 = vpop.f32.mrf.mxu0
      %v4315 = vpop.f32.mrf.mxu0
      %v4316 = vadd.f32 0.0, %v4315
      %v4317 = vpop.f32.mrf.mxu0
      %4318 = vmatprep.mubr.bf16.mxu0 0
      %4319 = vmatmul.mubr.bf16.gmra.mxu0 %v4122
      %v4320 = vpop.f32.mrf.mxu0
      %v4321 = vadd.f32 0.0, %v4320
      %v4322 = vpop.f32.mrf.mxu0
      %v4323 = vpop.f32.mrf.mxu0
      %v4324 = vadd.f32 0.0, %v4323
      %v4325 = vpop.f32.mrf.mxu0
      %4326 = vmatprep.mubr.bf16.mxu0 0
      %4327 = vmatmul.mubr.bf16.gmra.mxu0 %v4123
      %v4328 = vpop.f32.mrf.mxu0
      %v4329 = vadd.f32 0.0, %v4328
      %v4330 = vpop.f32.mrf.mxu0
      %v4331 = vpop.f32.mrf.mxu0
      %v4332 = vadd.f32 0.0, %v4331
      %v4333 = vpop.f32.mrf.mxu0
      %4334 = vmatprep.mubr.bf16.mxu0 0
      %4335 = vmatmul.mubr.bf16.gmra.mxu0 %v4124
      %v4336 = vpop.f32.mrf.mxu0
      %v4337 = vadd.f32 0.0, %v4336
      %v4338 = vpop.f32.mrf.mxu0
      %v4339 = vpop.f32.mrf.mxu0
      %v4340 = vadd.f32 0.0, %v4339
      %v4341 = vpop.f32.mrf.mxu0
      %4342 = vmatprep.mubr.bf16.mxu0 0
      %4343 = vmatmul.mubr.bf16.gmra.mxu0 %v4125
      %v4344 = vpop.f32.mrf.mxu0
      %v4345 = vadd.f32 0.0, %v4344
      %v4346 = vpop.f32.mrf.mxu0
      %v4347 = vpop.f32.mrf.mxu0
      %v4348 = vadd.f32 0.0, %v4347
      %v4349 = vpop.f32.mrf.mxu0
      %4350 = vdwg.mxu0
      %v4355 = vunpack.c.l.b16 %v3978
      %v4356 = vunpack.c.l.b16 %v3979
      %v4357 = vunpack.c.l.b16 %v3980
      %v4358 = vunpack.c.l.b16 %v3981
      %v4359 = vpack.c.b16 %v4356, %v4355
      %v4360 = vpack.c.b16 %v4358, %v4357
      %v4379 = vunpack.c.l.b16 %v4010
      %v4380 = vunpack.c.l.b16 %v4011
      %v4381 = vunpack.c.l.b16 %v4012
      %v4382 = vunpack.c.l.b16 %v4013
      %v4383 = vunpack.c.l.b16 %v4014
      %v4384 = vunpack.c.l.b16 %v4015
      %v4385 = vunpack.c.l.b16 %v4016
      %v4386 = vunpack.c.l.b16 %v4017
      %v4387 = vunpack.c.l.b16 %v4018
      %v4388 = vunpack.c.l.b16 %v4019
      %v4389 = vunpack.c.l.b16 %v4020
      %v4390 = vunpack.c.l.b16 %v4021
      %v4391 = vunpack.c.l.b16 %v4022
      %v4392 = vunpack.c.l.b16 %v4023
      %v4393 = vunpack.c.l.b16 %v4024
      %v4394 = vunpack.c.l.b16 %v4025
      %v4395 = vpack.c.b16 %v4380, %v4379
      %v4396 = vpack.c.b16 %v4382, %v4381
      %v4397 = vpack.c.b16 %v4384, %v4383
      %v4398 = vpack.c.b16 %v4386, %v4385
      %v4399 = vpack.c.b16 %v4388, %v4387
      %v4400 = vpack.c.b16 %v4390, %v4389
      %v4401 = vpack.c.b16 %v4392, %v4391
      %v4402 = vpack.c.b16 %v4394, %v4393
      %4411 = vmatprep.subr.bf16.mxu0 0
      %4412 = vmatpush1.bf16.msra.mxu0 %v4402
      %4413 = vmatprep.subr.bf16.mxu0 0
      %4414 = vmatpush1.bf16.msra.mxu0 %v4401
      %4415 = vmatprep.subr.bf16.mxu0 0
      %4416 = vmatpush1.bf16.msra.mxu0 %v4400
      %4417 = vmatprep.subr.bf16.mxu0 0
      %4418 = vmatpush1.bf16.msra.mxu0 %v4399
      %4419 = vmatprep.subr.bf16.mxu0 0
      %4420 = vmatpush1.bf16.msra.mxu0 %v4398
      %4421 = vmatprep.subr.bf16.mxu0 0
      %4422 = vmatpush1.bf16.msra.mxu0 %v4397
      %4423 = vmatprep.subr.bf16.mxu0 0
      %4424 = vmatpush1.bf16.msra.mxu0 %v4396
      %4425 = vmatprep.subr.bf16.mxu0 0
      %4426 = vmatpush1.bf16.msra.mxu0 %v4395
      %4427 = vmatprep.subr.bf16.mxu0 0
      %4428 = vmatpush2.bf16.msra.mxu0 0
      %4429 = vmatprep.subr.bf16.mxu0 0
      %4430 = vmatpush2.bf16.msra.mxu0 0
      %4431 = vmatprep.subr.bf16.mxu0 0
      %4432 = vmatpush2.bf16.msra.mxu0 0
      %4433 = vmatprep.subr.bf16.mxu0 0
      %4434 = vmatpush2.bf16.msra.mxu0 0
      %4435 = vmatprep.subr.bf16.mxu0 0
      %4436 = vmatpush2.bf16.msra.mxu0 0
      %4437 = vmatprep.subr.bf16.mxu0 0
      %4438 = vmatpush2.bf16.msra.mxu0 0
      %4439 = vmatprep.subr.bf16.mxu0 0
      %4440 = vmatpush2.bf16.msra.mxu0 0
      %4441 = vmatprep.subr.bf16.mxu0 0
      %4442 = vmatpush2.bf16.msra.mxu0 0
      %4443 = vmatprep.mubr.bf16.mxu0 0
      %4444 = vmatmul.mubr.bf16.gmra.mxu0 %v4359
      %v4445 = vpop.f32.mrf.mxu0
      %v4446 = vadd.f32 %v4225, %v4445
      %v4447 = vpop.f32.mrf.mxu0
      %v4448 = vpop.f32.mrf.mxu0
      %v4449 = vadd.f32 %v4228, %v4448
      %v4450 = vpop.f32.mrf.mxu0
      %4451 = vmatprep.mubr.bf16.mxu0 0
      %4452 = vmatmul.mubr.bf16.gmra.mxu0 %v4360
      %v4453 = vpop.f32.mrf.mxu0
      %v4454 = vadd.f32 %v4233, %v4453
      %v4455 = vpop.f32.mrf.mxu0
      %v4456 = vpop.f32.mrf.mxu0
      %v4457 = vadd.f32 %v4236, %v4456
      %v4458 = vpop.f32.mrf.mxu0
      %4459 = vmatprep.mubr.bf16.mxu0 0
      %4460 = vmatmul.mubr.bf16.gmra.mxu0 %v4110
      %v4461 = vpop.f32.mrf.mxu0
      %v4462 = vadd.f32 %v4241, %v4461
      %v4463 = vpop.f32.mrf.mxu0
      %v4464 = vpop.f32.mrf.mxu0
      %v4465 = vadd.f32 %v4244, %v4464
      %v4466 = vpop.f32.mrf.mxu0
      %4467 = vmatprep.mubr.bf16.mxu0 0
      %4468 = vmatmul.mubr.bf16.gmra.mxu0 %v4111
      %v4469 = vpop.f32.mrf.mxu0
      %v4470 = vadd.f32 %v4249, %v4469
      %v4471 = vpop.f32.mrf.mxu0
      %v4472 = vpop.f32.mrf.mxu0
      %v4473 = vadd.f32 %v4252, %v4472
      %v4474 = vpop.f32.mrf.mxu0
      %4475 = vmatprep.mubr.bf16.mxu0 0
      %4476 = vmatmul.mubr.bf16.gmra.mxu0 %v4112
      %v4477 = vpop.f32.mrf.mxu0
      %v4478 = vadd.f32 %v4257, %v4477
      %v4479 = vpop.f32.mrf.mxu0
      %v4480 = vpop.f32.mrf.mxu0
      %v4481 = vadd.f32 %v4260, %v4480
      %v4482 = vpop.f32.mrf.mxu0
      %4483 = vmatprep.mubr.bf16.mxu0 0
      %4484 = vmatmul.mubr.bf16.gmra.mxu0 %v4113
      %v4485 = vpop.f32.mrf.mxu0
      %v4486 = vadd.f32 %v4265, %v4485
      %v4487 = vpop.f32.mrf.mxu0
      %v4488 = vpop.f32.mrf.mxu0
      %v4489 = vadd.f32 %v4268, %v4488
      %v4490 = vpop.f32.mrf.mxu0
      %4491 = vmatprep.mubr.bf16.mxu0 0
      %4492 = vmatmul.mubr.bf16.gmra.mxu0 %v4114
      %v4493 = vpop.f32.mrf.mxu0
      %v4494 = vadd.f32 %v4273, %v4493
      %v4495 = vpop.f32.mrf.mxu0
      %v4496 = vpop.f32.mrf.mxu0
      %v4497 = vadd.f32 %v4276, %v4496
      %v4498 = vpop.f32.mrf.mxu0
      %4499 = vmatprep.mubr.bf16.mxu0 0
      %4500 = vmatmul.mubr.bf16.gmra.mxu0 %v4115
      %v4501 = vpop.f32.mrf.mxu0
      %v4502 = vadd.f32 %v4281, %v4501
      %v4503 = vpop.f32.mrf.mxu0
      %v4504 = vpop.f32.mrf.mxu0
      %v4505 = vadd.f32 %v4284, %v4504
      %v4506 = vpop.f32.mrf.mxu0
      %4507 = vmatprep.mubr.bf16.mxu0 0
      %4508 = vmatmul.mubr.bf16.gmra.mxu0 %v4116
      %v4509 = vpop.f32.mrf.mxu0
      %v4510 = vadd.f32 %v4289, %v4509
      %v4511 = vpop.f32.mrf.mxu0
      %v4512 = vpop.f32.mrf.mxu0
      %v4513 = vadd.f32 %v4292, %v4512
      %v4514 = vpop.f32.mrf.mxu0
      %4515 = vmatprep.mubr.bf16.mxu0 0
      %4516 = vmatmul.mubr.bf16.gmra.mxu0 %v4117
      %v4517 = vpop.f32.mrf.mxu0
      %v4518 = vadd.f32 %v4297, %v4517
      %v4519 = vpop.f32.mrf.mxu0
      %v4520 = vpop.f32.mrf.mxu0
      %v4521 = vadd.f32 %v4300, %v4520
      %v4522 = vpop.f32.mrf.mxu0
      %4523 = vmatprep.mubr.bf16.mxu0 0
      %4524 = vmatmul.mubr.bf16.gmra.mxu0 %v4118
      %v4525 = vpop.f32.mrf.mxu0
      %v4526 = vadd.f32 %v4305, %v4525
      %v4527 = vpop.f32.mrf.mxu0
      %v4528 = vpop.f32.mrf.mxu0
      %v4529 = vadd.f32 %v4308, %v4528
      %v4530 = vpop.f32.mrf.mxu0
      %4531 = vmatprep.mubr.bf16.mxu0 0
      %4532 = vmatmul.mubr.bf16.gmra.mxu0 %v4119
      %v4533 = vpop.f32.mrf.mxu0
      %v4534 = vadd.f32 %v4313, %v4533
      %v4535 = vpop.f32.mrf.mxu0
      %v4536 = vpop.f32.mrf.mxu0
      %v4537 = vadd.f32 %v4316, %v4536
      %v4538 = vpop.f32.mrf.mxu0
      %4539 = vmatprep.mubr.bf16.mxu0 0
      %4540 = vmatmul.mubr.bf16.gmra.mxu0 %v4120
      %v4541 = vpop.f32.mrf.mxu0
      %v4542 = vadd.f32 %v4321, %v4541
      %v4543 = vpop.f32.mrf.mxu0
      %v4544 = vpop.f32.mrf.mxu0
      %v4545 = vadd.f32 %v4324, %v4544
      %v4546 = vpop.f32.mrf.mxu0
      %4547 = vmatprep.mubr.bf16.mxu0 0
      %4548 = vmatmul.mubr.bf16.gmra.mxu0 %v4121
      %v4549 = vpop.f32.mrf.mxu0
      %v4550 = vadd.f32 %v4329, %v4549
      %v4551 = vpop.f32.mrf.mxu0
      %v4552 = vpop.f32.mrf.mxu0
      %v4553 = vadd.f32 %v4332, %v4552
      %v4554 = vpop.f32.mrf.mxu0
      %4555 = vmatprep.mubr.bf16.mxu0 0
      %4556 = vmatmul.mubr.bf16.gmra.mxu0 %v4122
      %v4557 = vpop.f32.mrf.mxu0
      %v4558 = vadd.f32 %v4337, %v4557
      %v4559 = vpop.f32.mrf.mxu0
      %v4560 = vpop.f32.mrf.mxu0
      %v4561 = vadd.f32 %v4340, %v4560
      %v4562 = vpop.f32.mrf.mxu0
      %4563 = vmatprep.mubr.bf16.mxu0 0
      %4564 = vmatmul.mubr.bf16.gmra.mxu0 %v4123
      %v4565 = vpop.f32.mrf.mxu0
      %v4566 = vadd.f32 %v4345, %v4565
      %v4567 = vpop.f32.mrf.mxu0
      %v4568 = vpop.f32.mrf.mxu0
      %v4569 = vadd.f32 %v4348, %v4568
      %v4570 = vpop.f32.mrf.mxu0
      %4571 = vdwg.mxu0
      %v4572 = vld [vmem:[#allocation2 + $0x120] sm:$0xf]
      %v4573 = vld [vmem:[#allocation2 + $0x124] sm:$0xf]
      %v4574 = vld [vmem:[#allocation2 + $0x128] sm:$0xf]
      %v4575 = vld [vmem:[#allocation2 + $0x12c] sm:$0xf]
      %v4576 = vld [vmem:[#allocation2 + $0x130] sm:$0xf]
      %v4577 = vld [vmem:[#allocation2 + $0x134] sm:$0xf]
      %v4578 = vld [vmem:[#allocation2 + $0x138] sm:$0xf]
      %v4579 = vld [vmem:[#allocation2 + $0x13c] sm:$0xf]
      %v4580 = vld [vmem:[#allocation2 + $0x140] sm:$0xf]
      %v4581 = vld [vmem:[#allocation2 + $0x144] sm:$0xf]
      %v4582 = vld [vmem:[#allocation2 + $0x148] sm:$0xf]
      %v4583 = vld [vmem:[#allocation2 + $0x14c] sm:$0xf]
      %v4584 = vld [vmem:[#allocation2 + $0x150] sm:$0xf]
      %v4585 = vld [vmem:[#allocation2 + $0x154] sm:$0xf]
      %v4586 = vld [vmem:[#allocation2 + $0x158] sm:$0xf]
      %v4587 = vld [vmem:[#allocation2 + $0x15c] sm:$0xf]
      %v4588 = vld [vmem:[#allocation2 + $0x160] sm:$0xf]
      %v4589 = vld [vmem:[#allocation2 + $0x164] sm:$0xf]
      %v4590 = vld [vmem:[#allocation2 + $0x168] sm:$0xf]
      %v4591 = vld [vmem:[#allocation2 + $0x16c] sm:$0xf]
      %v4592 = vld [vmem:[#allocation2 + $0x170] sm:$0xf]
      %v4593 = vld [vmem:[#allocation2 + $0x174] sm:$0xf]
      %v4594 = vld [vmem:[#allocation2 + $0x178] sm:$0xf]
      %v4595 = vld [vmem:[#allocation2 + $0x17c] sm:$0xf]
      %v4596 = vld [vmem:[#allocation2 + $0x180] sm:$0xf]
      %v4597 = vld [vmem:[#allocation2 + $0x184] sm:$0xf]
      %v4598 = vld [vmem:[#allocation2 + $0x188] sm:$0xf]
      %v4599 = vld [vmem:[#allocation2 + $0x18c] sm:$0xf]
      %v4600 = vld [vmem:[#allocation2 + $0x190] sm:$0xf]
      %v4601 = vld [vmem:[#allocation2 + $0x194] sm:$0xf]
      %v4602 = vld [vmem:[#allocation2 + $0x198] sm:$0xf]
      %v4603 = vld [vmem:[#allocation2 + $0x19c] sm:$0xf]
      %v4604 = vld [vmem:[%s2511] sm:$0xf]
      %v4605 = vld [vmem:[%s2511 + $0x4] sm:$0xf]
      %v4606 = vld [vmem:[%s2511 + $0x8] sm:$0xf]
      %v4607 = vld [vmem:[%s2511 + $0xc] sm:$0xf]
      %v4608 = vld [vmem:[%s2511 + $0x10] sm:$0xf]
      %v4609 = vld [vmem:[%s2511 + $0x14] sm:$0xf]
      %v4610 = vld [vmem:[%s2511 + $0x18] sm:$0xf]
      %v4611 = vld [vmem:[%s2511 + $0x1c] sm:$0xf]
      %v4612 = vld [vmem:[%s2511 + $0x20] sm:$0xf]
      %v4613 = vld [vmem:[%s2511 + $0x24] sm:$0xf]
      %v4614 = vld [vmem:[%s2511 + $0x28] sm:$0xf]
      %v4615 = vld [vmem:[%s2511 + $0x2c] sm:$0xf]
      %v4616 = vld [vmem:[%s2511 + $0x30] sm:$0xf]
      %v4617 = vld [vmem:[%s2511 + $0x34] sm:$0xf]
      %v4618 = vld [vmem:[%s2511 + $0x38] sm:$0xf]
      %v4619 = vld [vmem:[%s2511 + $0x3c] sm:$0xf]
      %v4652 = vunpack.c.l.b16 %v4572
      %v4653 = vunpack.c.l.b16 %v4573
      %v4654 = vunpack.c.l.b16 %v4574
      %v4655 = vunpack.c.l.b16 %v4575
      %v4656 = vunpack.c.l.b16 %v4576
      %v4657 = vunpack.c.l.b16 %v4577
      %v4658 = vunpack.c.l.b16 %v4578
      %v4659 = vunpack.c.l.b16 %v4579
      %v4660 = vunpack.c.l.b16 %v4580
      %v4661 = vunpack.c.l.b16 %v4581
      %v4662 = vunpack.c.l.b16 %v4582
      %v4663 = vunpack.c.l.b16 %v4583
      %v4664 = vunpack.c.l.b16 %v4584
      %v4665 = vunpack.c.l.b16 %v4585
      %v4666 = vunpack.c.l.b16 %v4586
      %v4667 = vunpack.c.l.b16 %v4587
      %v4668 = vunpack.c.l.b16 %v4588
      %v4669 = vunpack.c.l.b16 %v4589
      %v4670 = vunpack.c.l.b16 %v4590
      %v4671 = vunpack.c.l.b16 %v4591
      %v4672 = vunpack.c.l.b16 %v4592
      %v4673 = vunpack.c.l.b16 %v4593
      %v4674 = vunpack.c.l.b16 %v4594
      %v4675 = vunpack.c.l.b16 %v4595
      %v4676 = vunpack.c.l.b16 %v4596
      %v4677 = vunpack.c.l.b16 %v4597
      %v4678 = vunpack.c.l.b16 %v4598
      %v4679 = vunpack.c.l.b16 %v4599
      %v4680 = vunpack.c.l.b16 %v4600
      %v4681 = vunpack.c.l.b16 %v4601
      %v4682 = vunpack.c.l.b16 %v4602
      %v4683 = vunpack.c.l.b16 %v4603
      %v4684 = vpack.c.b16 %v4653, %v4652
      %v4685 = vpack.c.b16 %v4655, %v4654
      %v4686 = vpack.c.b16 %v4657, %v4656
      %v4687 = vpack.c.b16 %v4659, %v4658
      %v4688 = vpack.c.b16 %v4661, %v4660
      %v4689 = vpack.c.b16 %v4663, %v4662
      %v4690 = vpack.c.b16 %v4665, %v4664
      %v4691 = vpack.c.b16 %v4667, %v4666
      %v4692 = vpack.c.b16 %v4669, %v4668
      %v4693 = vpack.c.b16 %v4671, %v4670
      %v4694 = vpack.c.b16 %v4673, %v4672
      %v4695 = vpack.c.b16 %v4675, %v4674
      %v4696 = vpack.c.b16 %v4677, %v4676
      %v4697 = vpack.c.b16 %v4679, %v4678
      %v4698 = vpack.c.b16 %v4681, %v4680
      %v4699 = vpack.c.b16 %v4683, %v4682
      %v4732 = vunpack.c.l.b16 %v4604
      %v4733 = vunpack.c.l.b16 %v4605
      %v4734 = vunpack.c.l.b16 %v4606
      %v4735 = vunpack.c.l.b16 %v4607
      %v4736 = vunpack.c.l.b16 %v4608
      %v4737 = vunpack.c.l.b16 %v4609
      %v4738 = vunpack.c.l.b16 %v4610
      %v4739 = vunpack.c.l.b16 %v4611
      %v4740 = vunpack.c.l.b16 %v4612
      %v4741 = vunpack.c.l.b16 %v4613
      %v4742 = vunpack.c.l.b16 %v4614
      %v4743 = vunpack.c.l.b16 %v4615
      %v4744 = vunpack.c.l.b16 %v4616
      %v4745 = vunpack.c.l.b16 %v4617
      %v4746 = vunpack.c.l.b16 %v4618
      %v4747 = vunpack.c.l.b16 %v4619
      %v4748 = vpack.c.b16 %v4733, %v4732
      %v4749 = vpack.c.b16 %v4735, %v4734
      %v4750 = vpack.c.b16 %v4737, %v4736
      %v4751 = vpack.c.b16 %v4739, %v4738
      %v4752 = vpack.c.b16 %v4741, %v4740
      %v4753 = vpack.c.b16 %v4743, %v4742
      %v4754 = vpack.c.b16 %v4745, %v4744
      %v4755 = vpack.c.b16 %v4747, %v4746
      %4764 = vmatprep.subr.bf16.mxu0 0
      %4765 = vmatpush1.bf16.msra.mxu0 %v4755
      %4766 = vmatprep.subr.bf16.mxu0 0
      %4767 = vmatpush1.bf16.msra.mxu0 %v4754
      %4768 = vmatprep.subr.bf16.mxu0 0
      %4769 = vmatpush1.bf16.msra.mxu0 %v4753
      %4770 = vmatprep.subr.bf16.mxu0 0
      %4771 = vmatpush1.bf16.msra.mxu0 %v4752
      %4772 = vmatprep.subr.bf16.mxu0 0
      %4773 = vmatpush1.bf16.msra.mxu0 %v4751
      %4774 = vmatprep.subr.bf16.mxu0 0
      %4775 = vmatpush1.bf16.msra.mxu0 %v4750
      %4776 = vmatprep.subr.bf16.mxu0 0
      %4777 = vmatpush1.bf16.msra.mxu0 %v4749
      %4778 = vmatprep.subr.bf16.mxu0 0
      %4779 = vmatpush1.bf16.msra.mxu0 %v4748
      %4780 = vmatprep.subr.bf16.mxu0 0
      %4781 = vmatpush2.bf16.msra.mxu0 0
      %4782 = vmatprep.subr.bf16.mxu0 0
      %4783 = vmatpush2.bf16.msra.mxu0 0
      %4784 = vmatprep.subr.bf16.mxu0 0
      %4785 = vmatpush2.bf16.msra.mxu0 0
      %4786 = vmatprep.subr.bf16.mxu0 0
      %4787 = vmatpush2.bf16.msra.mxu0 0
      %4788 = vmatprep.subr.bf16.mxu0 0
      %4789 = vmatpush2.bf16.msra.mxu0 0
      %4790 = vmatprep.subr.bf16.mxu0 0
      %4791 = vmatpush2.bf16.msra.mxu0 0
      %4792 = vmatprep.subr.bf16.mxu0 0
      %4793 = vmatpush2.bf16.msra.mxu0 0
      %4794 = vmatprep.subr.bf16.mxu0 0
      %4795 = vmatpush2.bf16.msra.mxu0 0
      %4796 = vmatprep.mubr.bf16.mxu0 0
      %4797 = vmatmul.mubr.bf16.gmra.mxu0 %v4684
      %v4798 = vpop.f32.mrf.mxu0
      %v4799 = vadd.f32 0.0, %v4798
      %v4800 = vpop.f32.mrf.mxu0
      %v4801 = vpop.f32.mrf.mxu0
      %v4802 = vadd.f32 0.0, %v4801
      %v4803 = vpop.f32.mrf.mxu0
      %4804 = vmatprep.mubr.bf16.mxu0 0
      %4805 = vmatmul.mubr.bf16.gmra.mxu0 %v4685
      %v4806 = vpop.f32.mrf.mxu0
      %v4807 = vadd.f32 0.0, %v4806
      %v4808 = vpop.f32.mrf.mxu0
      %v4809 = vpop.f32.mrf.mxu0
      %v4810 = vadd.f32 0.0, %v4809
      %v4811 = vpop.f32.mrf.mxu0
      %4812 = vmatprep.mubr.bf16.mxu0 0
      %4813 = vmatmul.mubr.bf16.gmra.mxu0 %v4686
      %v4814 = vpop.f32.mrf.mxu0
      %v4815 = vadd.f32 0.0, %v4814
      %v4816 = vpop.f32.mrf.mxu0
      %v4817 = vpop.f32.mrf.mxu0
      %v4818 = vadd.f32 0.0, %v4817
      %v4819 = vpop.f32.mrf.mxu0
      %4820 = vmatprep.mubr.bf16.mxu0 0
      %4821 = vmatmul.mubr.bf16.gmra.mxu0 %v4687
      %v4822 = vpop.f32.mrf.mxu0
      %v4823 = vadd.f32 0.0, %v4822
      %v4824 = vpop.f32.mrf.mxu0
      %v4825 = vpop.f32.mrf.mxu0
      %v4826 = vadd.f32 0.0, %v4825
      %v4827 = vpop.f32.mrf.mxu0
      %4828 = vmatprep.mubr.bf16.mxu0 0
      %4829 = vmatmul.mubr.bf16.gmra.mxu0 %v4688
      %v4830 = vpop.f32.mrf.mxu0
      %v4831 = vadd.f32 0.0, %v4830
      %v4832 = vpop.f32.mrf.mxu0
      %v4833 = vpop.f32.mrf.mxu0
      %v4834 = vadd.f32 0.0, %v4833
      %v4835 = vpop.f32.mrf.mxu0
      %4836 = vmatprep.mubr.bf16.mxu0 0
      %4837 = vmatmul.mubr.bf16.gmra.mxu0 %v4689
      %v4838 = vpop.f32.mrf.mxu0
      %v4839 = vadd.f32 0.0, %v4838
      %v4840 = vpop.f32.mrf.mxu0
      %v4841 = vpop.f32.mrf.mxu0
      %v4842 = vadd.f32 0.0, %v4841
      %v4843 = vpop.f32.mrf.mxu0
      %4844 = vmatprep.mubr.bf16.mxu0 0
      %4845 = vmatmul.mubr.bf16.gmra.mxu0 %v4690
      %v4846 = vpop.f32.mrf.mxu0
      %v4847 = vadd.f32 0.0, %v4846
      %v4848 = vpop.f32.mrf.mxu0
      %v4849 = vpop.f32.mrf.mxu0
      %v4850 = vadd.f32 0.0, %v4849
      %v4851 = vpop.f32.mrf.mxu0
      %4852 = vmatprep.mubr.bf16.mxu0 0
      %4853 = vmatmul.mubr.bf16.gmra.mxu0 %v4691
      %v4854 = vpop.f32.mrf.mxu0
      %v4855 = vadd.f32 0.0, %v4854
      %v4856 = vpop.f32.mrf.mxu0
      %v4857 = vpop.f32.mrf.mxu0
      %v4858 = vadd.f32 0.0, %v4857
      %v4859 = vpop.f32.mrf.mxu0
      %4860 = vmatprep.mubr.bf16.mxu0 0
      %4861 = vmatmul.mubr.bf16.gmra.mxu0 %v4692
      %v4862 = vpop.f32.mrf.mxu0
      %v4863 = vadd.f32 0.0, %v4862
      %v4864 = vpop.f32.mrf.mxu0
      %v4865 = vpop.f32.mrf.mxu0
      %v4866 = vadd.f32 0.0, %v4865
      %v4867 = vpop.f32.mrf.mxu0
      %4868 = vmatprep.mubr.bf16.mxu0 0
      %4869 = vmatmul.mubr.bf16.gmra.mxu0 %v4693
      %v4870 = vpop.f32.mrf.mxu0
      %v4871 = vadd.f32 0.0, %v4870
      %v4872 = vpop.f32.mrf.mxu0
      %v4873 = vpop.f32.mrf.mxu0
      %v4874 = vadd.f32 0.0, %v4873
      %v4875 = vpop.f32.mrf.mxu0
      %4876 = vmatprep.mubr.bf16.mxu0 0
      %4877 = vmatmul.mubr.bf16.gmra.mxu0 %v4694
      %v4878 = vpop.f32.mrf.mxu0
      %v4879 = vadd.f32 0.0, %v4878
      %v4880 = vpop.f32.mrf.mxu0
      %v4881 = vpop.f32.mrf.mxu0
      %v4882 = vadd.f32 0.0, %v4881
      %v4883 = vpop.f32.mrf.mxu0
      %4884 = vmatprep.mubr.bf16.mxu0 0
      %4885 = vmatmul.mubr.bf16.gmra.mxu0 %v4695
      %v4886 = vpop.f32.mrf.mxu0
      %v4887 = vadd.f32 0.0, %v4886
      %v4888 = vpop.f32.mrf.mxu0
      %v4889 = vpop.f32.mrf.mxu0
      %v4890 = vadd.f32 0.0, %v4889
      %v4891 = vpop.f32.mrf.mxu0
      %4892 = vmatprep.mubr.bf16.mxu0 0
      %4893 = vmatmul.mubr.bf16.gmra.mxu0 %v4696
      %v4894 = vpop.f32.mrf.mxu0
      %v4895 = vadd.f32 0.0, %v4894
      %v4896 = vpop.f32.mrf.mxu0
      %v4897 = vpop.f32.mrf.mxu0
      %v4898 = vadd.f32 0.0, %v4897
      %v4899 = vpop.f32.mrf.mxu0
      %4900 = vmatprep.mubr.bf16.mxu0 0
      %4901 = vmatmul.mubr.bf16.gmra.mxu0 %v4697
      %v4902 = vpop.f32.mrf.mxu0
      %v4903 = vadd.f32 0.0, %v4902
      %v4904 = vpop.f32.mrf.mxu0
      %v4905 = vpop.f32.mrf.mxu0
      %v4906 = vadd.f32 0.0, %v4905
      %v4907 = vpop.f32.mrf.mxu0
      %4908 = vmatprep.mubr.bf16.mxu0 0
      %4909 = vmatmul.mubr.bf16.gmra.mxu0 %v4698
      %v4910 = vpop.f32.mrf.mxu0
      %v4911 = vadd.f32 0.0, %v4910
      %v4912 = vpop.f32.mrf.mxu0
      %v4913 = vpop.f32.mrf.mxu0
      %v4914 = vadd.f32 0.0, %v4913
      %v4915 = vpop.f32.mrf.mxu0
      %4916 = vmatprep.mubr.bf16.mxu0 0
      %4917 = vmatmul.mubr.bf16.gmra.mxu0 %v4699
      %v4918 = vpop.f32.mrf.mxu0
      %v4919 = vadd.f32 0.0, %v4918
      %v4920 = vpop.f32.mrf.mxu0
      %v4921 = vpop.f32.mrf.mxu0
      %v4922 = vadd.f32 0.0, %v4921
      %v4923 = vpop.f32.mrf.mxu0
      %4924 = vdwg.mxu0
      %v4925 = vadd.f32 %v4446, %v4799
      %v4926 = vadd.f32 %v4449, %v4802
      %v4927 = vadd.f32 %v4454, %v4807
      %v4928 = vadd.f32 %v4457, %v4810
      %v4929 = vadd.f32 %v4462, %v4815
      %v4930 = vadd.f32 %v4465, %v4818
      %v4931 = vadd.f32 %v4470, %v4823
      %v4932 = vadd.f32 %v4473, %v4826
      %v4933 = vadd.f32 %v4478, %v4831
      %v4934 = vadd.f32 %v4481, %v4834
      %v4935 = vadd.f32 %v4486, %v4839
      %v4936 = vadd.f32 %v4489, %v4842
      %v4937 = vadd.f32 %v4494, %v4847
      %v4938 = vadd.f32 %v4497, %v4850
      %v4939 = vadd.f32 %v4502, %v4855
      %v4940 = vadd.f32 %v4505, %v4858
      %v4941 = vadd.f32 %v4510, %v4863
      %v4942 = vadd.f32 %v4513, %v4866
      %v4943 = vadd.f32 %v4518, %v4871
      %v4944 = vadd.f32 %v4521, %v4874
      %v4945 = vadd.f32 %v4526, %v4879
      %v4946 = vadd.f32 %v4529, %v4882
      %v4947 = vadd.f32 %v4534, %v4887
      %v4948 = vadd.f32 %v4537, %v4890
      %v4949 = vadd.f32 %v4542, %v4895
      %v4950 = vadd.f32 %v4545, %v4898
      %v4951 = vadd.f32 %v4550, %v4903
      %v4952 = vadd.f32 %v4553, %v4906
      %v4953 = vadd.f32 %v4558, %v4911
      %v4954 = vadd.f32 %v4561, %v4914
      %v4955 = vadd.f32 %v4566, %v4919
      %v4956 = vadd.f32 %v4569, %v4922
      %v4957 = vadd.f32 %v4925, %v2869
      %v4958 = vadd.f32 %v4926, %v2869
      %v4959 = vadd.f32 %v4927, %v2869
      %v4960 = vadd.f32 %v4928, %v2869
      %v4961 = vadd.f32 %v4929, %v2869
      %v4962 = vadd.f32 %v4930, %v2869
      %v4963 = vadd.f32 %v4931, %v2869
      %v4964 = vadd.f32 %v4932, %v2869
      %v4965 = vadd.f32 %v4933, %v2869
      %v4966 = vadd.f32 %v4934, %v2869
      %v4967 = vadd.f32 %v4935, %v2869
      %v4968 = vadd.f32 %v4936, %v2869
      %v4969 = vadd.f32 %v4937, %v2869
      %v4970 = vadd.f32 %v4938, %v2869
      %v4971 = vadd.f32 %v4939, %v2869
      %v4972 = vadd.f32 %v4940, %v2869
      %v4973 = vadd.f32 %v4941, %v2869
      %v4974 = vadd.f32 %v4942, %v2869
      %v4975 = vadd.f32 %v4943, %v2869
      %v4976 = vadd.f32 %v4944, %v2869
      %v4977 = vadd.f32 %v4945, %v2869
      %v4978 = vadd.f32 %v4946, %v2869
      %v4979 = vadd.f32 %v4947, %v2869
      %v4980 = vadd.f32 %v4948, %v2869
      %v4981 = vadd.f32 %v4949, %v2869
      %v4982 = vadd.f32 %v4950, %v2869
      %v4983 = vadd.f32 %v4951, %v2869
      %v4984 = vadd.f32 %v4952, %v2869
      %v4985 = vadd.f32 %v4953, %v2869
      %v4986 = vadd.f32 %v4954, %v2869
      %v4987 = vadd.f32 %v4955, %v2869
      %v4988 = vadd.f32 %v4956, %v2869
      %4989 = vst [vmem:[#allocation3 + $0x200] sm:$0xff] %v4957
      %4990 = vst [vmem:[#allocation3 + $0x208] sm:$0xff] %v4958
      %4991 = vst [vmem:[#allocation3 + $0x210] sm:$0xff] %v4959
      %4992 = vst [vmem:[#allocation3 + $0x218] sm:$0xff] %v4960
      %4993 = vst [vmem:[#allocation3 + $0x220] sm:$0xff] %v4961
      %4994 = vst [vmem:[#allocation3 + $0x228] sm:$0xff] %v4962
      %4995 = vst [vmem:[#allocation3 + $0x230] sm:$0xff] %v4963
      %4996 = vst [vmem:[#allocation3 + $0x238] sm:$0xff] %v4964
      %4997 = vst [vmem:[#allocation3 + $0x240] sm:$0xff] %v4965
      %4998 = vst [vmem:[#allocation3 + $0x248] sm:$0xff] %v4966
      %4999 = vst [vmem:[#allocation3 + $0x250] sm:$0xff] %v4967
      %5000 = vst [vmem:[#allocation3 + $0x258] sm:$0xff] %v4968
      %5001 = vst [vmem:[#allocation3 + $0x260] sm:$0xff] %v4969
      %5002 = vst [vmem:[#allocation3 + $0x268] sm:$0xff] %v4970
      %5003 = vst [vmem:[#allocation3 + $0x270] sm:$0xff] %v4971
      %5004 = vst [vmem:[#allocation3 + $0x278] sm:$0xff] %v4972
      %5005 = vst [vmem:[#allocation3 + $0x280] sm:$0xff] %v4973
      %5006 = vst [vmem:[#allocation3 + $0x288] sm:$0xff] %v4974
      %5007 = vst [vmem:[#allocation3 + $0x290] sm:$0xff] %v4975
      %5008 = vst [vmem:[#allocation3 + $0x298] sm:$0xff] %v4976
      %5009 = vst [vmem:[#allocation3 + $0x2a0] sm:$0xff] %v4977
      %5010 = vst [vmem:[#allocation3 + $0x2a8] sm:$0xff] %v4978
      %5011 = vst [vmem:[#allocation3 + $0x2b0] sm:$0xff] %v4979
      %5012 = vst [vmem:[#allocation3 + $0x2b8] sm:$0xff] %v4980
      %5013 = vst [vmem:[#allocation3 + $0x2c0] sm:$0xff] %v4981
      %5014 = vst [vmem:[#allocation3 + $0x2c8] sm:$0xff] %v4982
      %5015 = vst [vmem:[#allocation3 + $0x2d0] sm:$0xff] %v4983
      %5016 = vst [vmem:[#allocation3 + $0x2d8] sm:$0xff] %v4984
      %5017 = vst [vmem:[#allocation3 + $0x2e0] sm:$0xff] %v4985
      %5018 = vst [vmem:[#allocation3 + $0x2e8] sm:$0xff] %v4986
      %5019 = vst [vmem:[#allocation3 + $0x2f0] sm:$0xff] %v4987
      %5020 = vst [vmem:[#allocation3 + $0x2f8] sm:$0xff] %v4988
      %v5021 = vld [vmem:[#allocation3] sm:$0xff]
      %v5022 = vld [vmem:[#allocation3 + $0x8] sm:$0xff]
      %v5023 = vld [vmem:[#allocation3 + $0x10] sm:$0xff]
      %v5024 = vld [vmem:[#allocation3 + $0x18] sm:$0xff]
      %v5025 = vld [vmem:[#allocation3 + $0x20] sm:$0xff]
      %v5026 = vld [vmem:[#allocation3 + $0x28] sm:$0xff]
      %v5027 = vld [vmem:[#allocation3 + $0x30] sm:$0xff]
      %v5028 = vld [vmem:[#allocation3 + $0x38] sm:$0xff]
      %v5029 = vld [vmem:[#allocation3 + $0x40] sm:$0xff]
      %v5030 = vld [vmem:[#allocation3 + $0x48] sm:$0xff]
      %v5031 = vld [vmem:[#allocation3 + $0x50] sm:$0xff]
      %v5032 = vld [vmem:[#allocation3 + $0x58] sm:$0xff]
      %v5033 = vld [vmem:[#allocation3 + $0x60] sm:$0xff]
      %v5034 = vld [vmem:[#allocation3 + $0x1] sm:$0xff]
      %v5035 = vld [vmem:[#allocation3 + $0x9] sm:$0xff]
      %v5036 = vld [vmem:[#allocation3 + $0x11] sm:$0xff]
      %v5037 = vld [vmem:[#allocation3 + $0x19] sm:$0xff]
      %v5038 = vld [vmem:[#allocation3 + $0x21] sm:$0xff]
      %v5039 = vld [vmem:[#allocation3 + $0x29] sm:$0xff]
      %v5040 = vld [vmem:[#allocation3 + $0x31] sm:$0xff]
      %v5041 = vld [vmem:[#allocation3 + $0x39] sm:$0xff]
      %v5042 = vld [vmem:[#allocation3 + $0x41] sm:$0xff]
      %v5043 = vld [vmem:[#allocation3 + $0x49] sm:$0xff]
      %v5044 = vld [vmem:[#allocation3 + $0x51] sm:$0xff]
      %v5045 = vld [vmem:[#allocation3 + $0x59] sm:$0xff]
      %v5046 = vld [vmem:[#allocation3 + $0x61] sm:$0xff]
      %v5047 = vmax.f32 %v5021, %v5034
      %v5048 = vmax.f32 %v5022, %v5035
      %v5049 = vmax.f32 %v5023, %v5036
      %v5050 = vmax.f32 %v5024, %v5037
      %v5051 = vmax.f32 %v5025, %v5038
      %v5052 = vmax.f32 %v5026, %v5039
      %v5053 = vmax.f32 %v5027, %v5040
      %v5054 = vmax.f32 %v5028, %v5041
      %v5055 = vmax.f32 %v5029, %v5042
      %v5056 = vmax.f32 %v5030, %v5043
      %v5057 = vmax.f32 %v5031, %v5044
      %v5058 = vmax.f32 %v5032, %v5045
      %v5059 = vmax.f32 %v5033, %v5046
      %v5060 = vld [vmem:[#allocation3 + $0x68] sm:$0xff]
      %v5061 = vld [vmem:[#allocation3 + $0x70] sm:$0xff]
      %v5062 = vld [vmem:[#allocation3 + $0x78] sm:$0xff]
      %v5063 = vld [vmem:[#allocation3 + $0x80] sm:$0xff]
      %v5064 = vld [vmem:[#allocation3 + $0x69] sm:$0xff]
      %v5065 = vld [vmem:[#allocation3 + $0x71] sm:$0xff]
      %v5066 = vld [vmem:[#allocation3 + $0x79] sm:$0xff]
      %v5067 = vld [vmem:[#allocation3 + $0x81] sm:$0xff]
      %v5068 = vmax.f32 %v5060, %v5064
      %v5069 = vmax.f32 %v5061, %v5065
      %v5070 = vmax.f32 %v5062, %v5066
      %v5071 = vmax.f32 %v5063, %v5067
      %v5072 = vmax.f32 %v5047, %v5051
      %v5073 = vmax.f32 %v5048, %v5052
      %v5074 = vmax.f32 %v5049, %v5053
      %v5075 = vmax.f32 %v5050, %v5054
      %v5076 = vmax.f32 %v5051, %v5055
      %v5077 = vmax.f32 %v5052, %v5056
      %v5078 = vmax.f32 %v5053, %v5057
      %v5079 = vmax.f32 %v5054, %v5058
      %v5080 = vmax.f32 %v5055, %v5059
      %v5081 = vmax.f32 %v5056, %v5068
      %v5082 = vmax.f32 %v5057, %v5069
      %v5083 = vmax.f32 %v5058, %v5070
      %v5084 = vmax.f32 %v5059, %v5071
      %v5085 = vld [vmem:[%s5] sm:$0xff]
      %v5086 = vld [vmem:[%s5 + $0x8] sm:$0xff]
      %v5087 = vld [vmem:[%s5 + $0x10] sm:$0xff]
      %v5088 = vld [vmem:[%s5 + $0x18] sm:$0xff]
      %v5089 = vld [vmem:[%s5 + $0x20] sm:$0xff]
      %v5090 = vld [vmem:[%s5 + $0x28] sm:$0xff]
      %v5091 = vld [vmem:[%s5 + $0x30] sm:$0xff]
      %v5092 = vld [vmem:[%s5 + $0x38] sm:$0xff]
      %v5093 = vld [vmem:[%s5 + $0x40] sm:$0xff]
      %v5094 = vld [vmem:[%s5 + $0x48] sm:$0xff]
      %v5095 = vld [vmem:[%s5 + $0x50] sm:$0xff]
      %v5096 = vld [vmem:[%s5 + $0x58] sm:$0xff]
      %v5097 = vld [vmem:[%s5 + $0x60] sm:$0xff]
      %v5098 = vmul.f32 %v5072, %v5085
      %v5099 = vmul.f32 %v5073, %v5086
      %v5100 = vmul.f32 %v5074, %v5087
      %v5101 = vmul.f32 %v5075, %v5088
      %v5102 = vmul.f32 %v5076, %v5089
      %v5103 = vmul.f32 %v5077, %v5090
      %v5104 = vmul.f32 %v5078, %v5091
      %v5105 = vmul.f32 %v5079, %v5092
      %v5106 = vmul.f32 %v5080, %v5093
      %v5107 = vmul.f32 %v5081, %v5094
      %v5108 = vmul.f32 %v5082, %v5095
      %v5109 = vmul.f32 %v5083, %v5096
      %v5110 = vmul.f32 %v5084, %v5097
      %v5111 = vadd.f32 %v5098, %v5099
      %v5112 = vadd.f32 %v5111, %v5100
      %v5113 = vadd.f32 %v5112, %v5101
      %v5114 = vadd.f32 %v5113, %v5102
      %v5115 = vadd.f32 %v5114, %v5103
      %v5116 = vadd.f32 %v5115, %v5104
      %v5117 = vadd.f32 %v5116, %v5105
      %v5118 = vadd.f32 %v5117, %v5106
      %v5119 = vadd.f32 %v5118, %v5107
      %v5120 = vadd.f32 %v5119, %v5108
      %v5121 = vadd.f32 %v5120, %v5109
      %v5122 = vadd.f32 %v5121, %v5110
      %v5123 = vrot.slane %v5122, 4
      %v5124 = vadd.f32 %v5122, %v5123
      %v5125 = vrot.slane %v5124, 2
      %v5126 = vadd.f32 %v5124, %v5125
      %v5127 = vrot.slane %v5126, 1
      %v5128 = vadd.f32 %v5126, %v5127
      %v5129 = vadd.f32 %v5128, 0.0
      %v5130 = vld [vmem:[#allocation3 + $0x88] sm:$0xff]
      %v5131 = vld [vmem:[#allocation3 + $0x90] sm:$0xff]
      %v5132 = vld [vmem:[#allocation3 + $0x98] sm:$0xff]
      %v5133 = vld [vmem:[#allocation3 + $0xa0] sm:$0xff]
      %v5134 = vld [vmem:[#allocation3 + $0xa8] sm:$0xff]
      %v5135 = vld [vmem:[#allocation3 + $0xb0] sm:$0xff]
      %v5136 = vld [vmem:[#allocation3 + $0xb8] sm:$0xff]
      %v5137 = vld [vmem:[#allocation3 + $0xc0] sm:$0xff]
      %v5138 = vld [vmem:[#allocation3 + $0xc8] sm:$0xff]
      %v5139 = vld [vmem:[#allocation3 + $0x89] sm:$0xff]
      %v5140 = vld [vmem:[#allocation3 + $0x91] sm:$0xff]
      %v5141 = vld [vmem:[#allocation3 + $0x99] sm:$0xff]
      %v5142 = vld [vmem:[#allocation3 + $0xa1] sm:$0xff]
      %v5143 = vld [vmem:[#allocation3 + $0xa9] sm:$0xff]
      %v5144 = vld [vmem:[#allocation3 + $0xb1] sm:$0xff]
      %v5145 = vld [vmem:[#allocation3 + $0xb9] sm:$0xff]
      %v5146 = vld [vmem:[#allocation3 + $0xc1] sm:$0xff]
      %v5147 = vld [vmem:[#allocation3 + $0xc9] sm:$0xff]
      %v5148 = vmax.f32 %v5130, %v5139
      %v5149 = vmax.f32 %v5131, %v5140
      %v5150 = vmax.f32 %v5132, %v5141
      %v5151 = vmax.f32 %v5133, %v5142
      %v5152 = vmax.f32 %v5134, %v5143
      %v5153 = vmax.f32 %v5135, %v5144
      %v5154 = vmax.f32 %v5136, %v5145
      %v5155 = vmax.f32 %v5137, %v5146
      %v5156 = vmax.f32 %v5138, %v5147
      %v5157 = vld [vmem:[#allocation3 + $0xd0] sm:$0xff]
      %v5158 = vld [vmem:[#allocation3 + $0xd8] sm:$0xff]
      %v5159 = vld [vmem:[#allocation3 + $0xe0] sm:$0xff]
      %v5160 = vld [vmem:[#allocation3 + $0xe8] sm:$0xff]
      %v5161 = vld [vmem:[#allocation3 + $0xd1] sm:$0xff]
      %v5162 = vld [vmem:[#allocation3 + $0xd9] sm:$0xff]
      %v5163 = vld [vmem:[#allocation3 + $0xe1] sm:$0xff]
      %v5164 = vld [vmem:[#allocation3 + $0xe9] sm:$0xff]
      %v5165 = vmax.f32 %v5157, %v5161
      %v5166 = vmax.f32 %v5158, %v5162
      %v5167 = vmax.f32 %v5159, %v5163
      %v5168 = vmax.f32 %v5160, %v5164
      %v5169 = vmax.f32 %v5068, %v5148
      %v5170 = vmax.f32 %v5069, %v5149
      %v5171 = vmax.f32 %v5070, %v5150
      %v5172 = vmax.f32 %v5071, %v5151
      %v5173 = vmax.f32 %v5148, %v5152
      %v5174 = vmax.f32 %v5149, %v5153
      %v5175 = vmax.f32 %v5150, %v5154
      %v5176 = vmax.f32 %v5151, %v5155
      %v5177 = vmax.f32 %v5152, %v5156
      %v5178 = vmax.f32 %v5153, %v5165
      %v5179 = vmax.f32 %v5154, %v5166
      %v5180 = vmax.f32 %v5155, %v5167
      %v5181 = vmax.f32 %v5156, %v5168
      %v5182 = vld [vmem:[%s5 + $0x68] sm:$0xff]
      %v5183 = vld [vmem:[%s5 + $0x70] sm:$0xff]
      %v5184 = vld [vmem:[%s5 + $0x78] sm:$0xff]
      %v5185 = vld [vmem:[%s5 + $0x80] sm:$0xff]
      %v5186 = vld [vmem:[%s5 + $0x88] sm:$0xff]
      %v5187 = vld [vmem:[%s5 + $0x90] sm:$0xff]
      %v5188 = vld [vmem:[%s5 + $0x98] sm:$0xff]
      %v5189 = vld [vmem:[%s5 + $0xa0] sm:$0xff]
      %v5190 = vld [vmem:[%s5 + $0xa8] sm:$0xff]
      %v5191 = vld [vmem:[%s5 + $0xb0] sm:$0xff]
      %v5192 = vld [vmem:[%s5 + $0xb8] sm:$0xff]
      %v5193 = vld [vmem:[%s5 + $0xc0] sm:$0xff]
      %v5194 = vld [vmem:[%s5 + $0xc8] sm:$0xff]
      %v5195 = vmul.f32 %v5169, %v5182
      %v5196 = vmul.f32 %v5170, %v5183
      %v5197 = vmul.f32 %v5171, %v5184
      %v5198 = vmul.f32 %v5172, %v5185
      %v5199 = vmul.f32 %v5173, %v5186
      %v5200 = vmul.f32 %v5174, %v5187
      %v5201 = vmul.f32 %v5175, %v5188
      %v5202 = vmul.f32 %v5176, %v5189
      %v5203 = vmul.f32 %v5177, %v5190
      %v5204 = vmul.f32 %v5178, %v5191
      %v5205 = vmul.f32 %v5179, %v5192
      %v5206 = vmul.f32 %v5180, %v5193
      %v5207 = vmul.f32 %v5181, %v5194
      %v5208 = vadd.f32 %v5195, %v5196
      %v5209 = vadd.f32 %v5208, %v5197
      %v5210 = vadd.f32 %v5209, %v5198
      %v5211 = vadd.f32 %v5210, %v5199
      %v5212 = vadd.f32 %v5211, %v5200
      %v5213 = vadd.f32 %v5212, %v5201
      %v5214 = vadd.f32 %v5213, %v5202
      %v5215 = vadd.f32 %v5214, %v5203
      %v5216 = vadd.f32 %v5215, %v5204
      %v5217 = vadd.f32 %v5216, %v5205
      %v5218 = vadd.f32 %v5217, %v5206
      %v5219 = vadd.f32 %v5218, %v5207
      %v5220 = vrot.slane %v5219, 4
      %v5221 = vadd.f32 %v5219, %v5220
      %v5222 = vrot.slane %v5221, 2
      %v5223 = vadd.f32 %v5221, %v5222
      %v5224 = vrot.slane %v5223, 1
      %v5225 = vadd.f32 %v5223, %v5224
      %v5226 = vadd.f32 %v5129, %v5225
      %v5227 = vld [vmem:[#allocation3 + $0xf0] sm:$0xff]
      %v5228 = vld [vmem:[#allocation3 + $0xf8] sm:$0xff]
      %v5229 = vld [vmem:[#allocation3 + $0x100] sm:$0xff]
      %v5230 = vld [vmem:[#allocation3 + $0x108] sm:$0xff]
      %v5231 = vld [vmem:[#allocation3 + $0x110] sm:$0xff]
      %v5232 = vld [vmem:[#allocation3 + $0x118] sm:$0xff]
      %v5233 = vld [vmem:[#allocation3 + $0x120] sm:$0xff]
      %v5234 = vld [vmem:[#allocation3 + $0x128] sm:$0xff]
      %v5235 = vld [vmem:[#allocation3 + $0x130] sm:$0xff]
      %v5236 = vld [vmem:[#allocation3 + $0xf1] sm:$0xff]
      %v5237 = vld [vmem:[#allocation3 + $0xf9] sm:$0xff]
      %v5238 = vld [vmem:[#allocation3 + $0x101] sm:$0xff]
      %v5239 = vld [vmem:[#allocation3 + $0x109] sm:$0xff]
      %v5240 = vld [vmem:[#allocation3 + $0x111] sm:$0xff]
      %v5241 = vld [vmem:[#allocation3 + $0x119] sm:$0xff]
      %v5242 = vld [vmem:[#allocation3 + $0x121] sm:$0xff]
      %v5243 = vld [vmem:[#allocation3 + $0x129] sm:$0xff]
      %v5244 = vld [vmem:[#allocation3 + $0x131] sm:$0xff]
      %v5245 = vmax.f32 %v5227, %v5236
      %v5246 = vmax.f32 %v5228, %v5237
      %v5247 = vmax.f32 %v5229, %v5238
      %v5248 = vmax.f32 %v5230, %v5239
      %v5249 = vmax.f32 %v5231, %v5240
      %v5250 = vmax.f32 %v5232, %v5241
      %v5251 = vmax.f32 %v5233, %v5242
      %v5252 = vmax.f32 %v5234, %v5243
      %v5253 = vmax.f32 %v5235, %v5244
      %v5254 = vld [vmem:[#allocation3 + $0x138] sm:$0xff]
      %v5255 = vld [vmem:[#allocation3 + $0x140] sm:$0xff]
      %v5256 = vld [vmem:[#allocation3 + $0x148] sm:$0xff]
      %v5257 = vld [vmem:[#allocation3 + $0x150] sm:$0xff]
      %v5258 = vld [vmem:[#allocation3 + $0x139] sm:$0xff]
      %v5259 = vld [vmem:[#allocation3 + $0x141] sm:$0xff]
      %v5260 = vld [vmem:[#allocation3 + $0x149] sm:$0xff]
      %v5261 = vld [vmem:[#allocation3 + $0x151] sm:$0xff]
      %v5262 = vmax.f32 %v5254, %v5258
      %v5263 = vmax.f32 %v5255, %v5259
      %v5264 = vmax.f32 %v5256, %v5260
      %v5265 = vmax.f32 %v5257, %v5261
      %v5266 = vmax.f32 %v5165, %v5245
      %v5267 = vmax.f32 %v5166, %v5246
      %v5268 = vmax.f32 %v5167, %v5247
      %v5269 = vmax.f32 %v5168, %v5248
      %v5270 = vmax.f32 %v5245, %v5249
      %v5271 = vmax.f32 %v5246, %v5250
      %v5272 = vmax.f32 %v5247, %v5251
      %v5273 = vmax.f32 %v5248, %v5252
      %v5274 = vmax.f32 %v5249, %v5253
      %v5275 = vmax.f32 %v5250, %v5262
      %v5276 = vmax.f32 %v5251, %v5263
      %v5277 = vmax.f32 %v5252, %v5264
      %v5278 = vmax.f32 %v5253, %v5265
      %v5279 = vld [vmem:[%s5 + $0xd0] sm:$0xff]
      %v5280 = vld [vmem:[%s5 + $0xd8] sm:$0xff]
      %v5281 = vld [vmem:[%s5 + $0xe0] sm:$0xff]
      %v5282 = vld [vmem:[%s5 + $0xe8] sm:$0xff]
      %v5283 = vld [vmem:[%s5 + $0xf0] sm:$0xff]
      %v5284 = vld [vmem:[%s5 + $0xf8] sm:$0xff]
      %v5285 = vld [vmem:[%s5 + $0x100] sm:$0xff]
      %v5286 = vld [vmem:[%s5 + $0x108] sm:$0xff]
      %v5287 = vld [vmem:[%s5 + $0x110] sm:$0xff]
      %v5288 = vld [vmem:[%s5 + $0x118] sm:$0xff]
      %v5289 = vld [vmem:[%s5 + $0x120] sm:$0xff]
      %v5290 = vld [vmem:[%s5 + $0x128] sm:$0xff]
      %v5291 = vld [vmem:[%s5 + $0x130] sm:$0xff]
      %v5292 = vmul.f32 %v5266, %v5279
      %v5293 = vmul.f32 %v5267, %v5280
      %v5294 = vmul.f32 %v5268, %v5281
      %v5295 = vmul.f32 %v5269, %v5282
      %v5296 = vmul.f32 %v5270, %v5283
      %v5297 = vmul.f32 %v5271, %v5284
      %v5298 = vmul.f32 %v5272, %v5285
      %v5299 = vmul.f32 %v5273, %v5286
      %v5300 = vmul.f32 %v5274, %v5287
      %v5301 = vmul.f32 %v5275, %v5288
      %v5302 = vmul.f32 %v5276, %v5289
      %v5303 = vmul.f32 %v5277, %v5290
      %v5304 = vmul.f32 %v5278, %v5291
      %v5305 = vadd.f32 %v5292, %v5293
      %v5306 = vadd.f32 %v5305, %v5294
      %v5307 = vadd.f32 %v5306, %v5295
      %v5308 = vadd.f32 %v5307, %v5296
      %v5309 = vadd.f32 %v5308, %v5297
      %v5310 = vadd.f32 %v5309, %v5298
      %v5311 = vadd.f32 %v5310, %v5299
      %v5312 = vadd.f32 %v5311, %v5300
      %v5313 = vadd.f32 %v5312, %v5301
      %v5314 = vadd.f32 %v5313, %v5302
      %v5315 = vadd.f32 %v5314, %v5303
      %v5316 = vadd.f32 %v5315, %v5304
      %v5317 = vrot.slane %v5316, 4
      %v5318 = vadd.f32 %v5316, %v5317
      %v5319 = vrot.slane %v5318, 2
      %v5320 = vadd.f32 %v5318, %v5319
      %v5321 = vrot.slane %v5320, 1
      %v5322 = vadd.f32 %v5320, %v5321
      %v5323 = vadd.f32 %v5226, %v5322
      %v5324 = vld [vmem:[#allocation3 + $0x158] sm:$0xff]
      %v5325 = vld [vmem:[#allocation3 + $0x160] sm:$0xff]
      %v5326 = vld [vmem:[#allocation3 + $0x168] sm:$0xff]
      %v5327 = vld [vmem:[#allocation3 + $0x170] sm:$0xff]
      %v5328 = vld [vmem:[#allocation3 + $0x178] sm:$0xff]
      %v5329 = vld [vmem:[#allocation3 + $0x180] sm:$0xff]
      %v5330 = vld [vmem:[#allocation3 + $0x188] sm:$0xff]
      %v5331 = vld [vmem:[#allocation3 + $0x190] sm:$0xff]
      %v5332 = vld [vmem:[#allocation3 + $0x198] sm:$0xff]
      %v5333 = vld [vmem:[#allocation3 + $0x159] sm:$0xff]
      %v5334 = vld [vmem:[#allocation3 + $0x161] sm:$0xff]
      %v5335 = vld [vmem:[#allocation3 + $0x169] sm:$0xff]
      %v5336 = vld [vmem:[#allocation3 + $0x171] sm:$0xff]
      %v5337 = vld [vmem:[#allocation3 + $0x179] sm:$0xff]
      %v5338 = vld [vmem:[#allocation3 + $0x181] sm:$0xff]
      %v5339 = vld [vmem:[#allocation3 + $0x189] sm:$0xff]
      %v5340 = vld [vmem:[#allocation3 + $0x191] sm:$0xff]
      %v5341 = vld [vmem:[#allocation3 + $0x199] sm:$0xff]
      %v5342 = vmax.f32 %v5324, %v5333
      %v5343 = vmax.f32 %v5325, %v5334
      %v5344 = vmax.f32 %v5326, %v5335
      %v5345 = vmax.f32 %v5327, %v5336
      %v5346 = vmax.f32 %v5328, %v5337
      %v5347 = vmax.f32 %v5329, %v5338
      %v5348 = vmax.f32 %v5330, %v5339
      %v5349 = vmax.f32 %v5331, %v5340
      %v5350 = vmax.f32 %v5332, %v5341
      %v5351 = vld [vmem:[#allocation3 + $0x1a0] sm:$0xff]
      %v5352 = vld [vmem:[#allocation3 + $0x1a8] sm:$0xff]
      %v5353 = vld [vmem:[#allocation3 + $0x1b0] sm:$0xff]
      %v5354 = vld [vmem:[#allocation3 + $0x1b8] sm:$0xff]
      %v5355 = vld [vmem:[#allocation3 + $0x1a1] sm:$0xff]
      %v5356 = vld [vmem:[#allocation3 + $0x1a9] sm:$0xff]
      %v5357 = vld [vmem:[#allocation3 + $0x1b1] sm:$0xff]
      %v5358 = vld [vmem:[#allocation3 + $0x1b9] sm:$0xff]
      %v5359 = vmax.f32 %v5351, %v5355
      %v5360 = vmax.f32 %v5352, %v5356
      %v5361 = vmax.f32 %v5353, %v5357
      %v5362 = vmax.f32 %v5354, %v5358
      %v5363 = vmax.f32 %v5262, %v5342
      %v5364 = vmax.f32 %v5263, %v5343
      %v5365 = vmax.f32 %v5264, %v5344
      %v5366 = vmax.f32 %v5265, %v5345
      %v5367 = vmax.f32 %v5342, %v5346
      %v5368 = vmax.f32 %v5343, %v5347
      %v5369 = vmax.f32 %v5344, %v5348
      %v5370 = vmax.f32 %v5345, %v5349
      %v5371 = vmax.f32 %v5346, %v5350
      %v5372 = vmax.f32 %v5347, %v5359
      %v5373 = vmax.f32 %v5348, %v5360
      %v5374 = vmax.f32 %v5349, %v5361
      %v5375 = vmax.f32 %v5350, %v5362
      %v5376 = vld [vmem:[%s5 + $0x138] sm:$0xff]
      %v5377 = vld [vmem:[%s5 + $0x140] sm:$0xff]
      %v5378 = vld [vmem:[%s5 + $0x148] sm:$0xff]
      %v5379 = vld [vmem:[%s5 + $0x150] sm:$0xff]
      %v5380 = vld [vmem:[%s5 + $0x158] sm:$0xff]
      %v5381 = vld [vmem:[%s5 + $0x160] sm:$0xff]
      %v5382 = vld [vmem:[%s5 + $0x168] sm:$0xff]
      %v5383 = vld [vmem:[%s5 + $0x170] sm:$0xff]
      %v5384 = vld [vmem:[%s5 + $0x178] sm:$0xff]
      %v5385 = vld [vmem:[%s5 + $0x180] sm:$0xff]
      %v5386 = vld [vmem:[%s5 + $0x188] sm:$0xff]
      %v5387 = vld [vmem:[%s5 + $0x190] sm:$0xff]
      %v5388 = vld [vmem:[%s5 + $0x198] sm:$0xff]
      %v5389 = vmul.f32 %v5363, %v5376
      %v5390 = vmul.f32 %v5364, %v5377
      %v5391 = vmul.f32 %v5365, %v5378
      %v5392 = vmul.f32 %v5366, %v5379
      %v5393 = vmul.f32 %v5367, %v5380
      %v5394 = vmul.f32 %v5368, %v5381
      %v5395 = vmul.f32 %v5369, %v5382
      %v5396 = vmul.f32 %v5370, %v5383
      %v5397 = vmul.f32 %v5371, %v5384
      %v5398 = vmul.f32 %v5372, %v5385
      %v5399 = vmul.f32 %v5373, %v5386
      %v5400 = vmul.f32 %v5374, %v5387
      %v5401 = vmul.f32 %v5375, %v5388
      %v5402 = vadd.f32 %v5389, %v5390
      %v5403 = vadd.f32 %v5402, %v5391
      %v5404 = vadd.f32 %v5403, %v5392
      %v5405 = vadd.f32 %v5404, %v5393
      %v5406 = vadd.f32 %v5405, %v5394
      %v5407 = vadd.f32 %v5406, %v5395
      %v5408 = vadd.f32 %v5407, %v5396
      %v5409 = vadd.f32 %v5408, %v5397
      %v5410 = vadd.f32 %v5409, %v5398
      %v5411 = vadd.f32 %v5410, %v5399
      %v5412 = vadd.f32 %v5411, %v5400
      %v5413 = vadd.f32 %v5412, %v5401
      %v5414 = vrot.slane %v5413, 4
      %v5415 = vadd.f32 %v5413, %v5414
      %v5416 = vrot.slane %v5415, 2
      %v5417 = vadd.f32 %v5415, %v5416
      %v5418 = vrot.slane %v5417, 1
      %v5419 = vadd.f32 %v5417, %v5418
      %v5420 = vadd.f32 %v5323, %v5419
      %v5421 = vld [vmem:[#allocation3 + $0x1c0] sm:$0xff]
      %v5422 = vld [vmem:[#allocation3 + $0x1c8] sm:$0xff]
      %v5423 = vld [vmem:[#allocation3 + $0x1d0] sm:$0xff]
      %v5424 = vld [vmem:[#allocation3 + $0x1d8] sm:$0xff]
      %v5425 = vld [vmem:[#allocation3 + $0x1e0] sm:$0xff]
      %v5426 = vld [vmem:[#allocation3 + $0x1e8] sm:$0xff]
      %v5427 = vld [vmem:[#allocation3 + $0x1f0] sm:$0xff]
      %v5428 = vld [vmem:[#allocation3 + $0x1f8] sm:$0xff]
      %v5429 = vld [vmem:[#allocation3 + $0x200] sm:$0xff]
      %v5430 = vld [vmem:[#allocation3 + $0x1c1] sm:$0xff]
      %v5431 = vld [vmem:[#allocation3 + $0x1c9] sm:$0xff]
      %v5432 = vld [vmem:[#allocation3 + $0x1d1] sm:$0xff]
      %v5433 = vld [vmem:[#allocation3 + $0x1d9] sm:$0xff]
      %v5434 = vld [vmem:[#allocation3 + $0x1e1] sm:$0xff]
      %v5435 = vld [vmem:[#allocation3 + $0x1e9] sm:$0xff]
      %v5436 = vld [vmem:[#allocation3 + $0x1f1] sm:$0xff]
      %v5437 = vld [vmem:[#allocation3 + $0x1f9] sm:$0xff]
      %v5438 = vld [vmem:[#allocation3 + $0x201] sm:$0xff]
      %v5439 = vmax.f32 %v5421, %v5430
      %v5440 = vmax.f32 %v5422, %v5431
      %v5441 = vmax.f32 %v5423, %v5432
      %v5442 = vmax.f32 %v5424, %v5433
      %v5443 = vmax.f32 %v5425, %v5434
      %v5444 = vmax.f32 %v5426, %v5435
      %v5445 = vmax.f32 %v5427, %v5436
      %v5446 = vmax.f32 %v5428, %v5437
      %v5447 = vmax.f32 %v5429, %v5438
      %v5448 = vld [vmem:[#allocation3 + $0x208] sm:$0xff]
      %v5449 = vld [vmem:[#allocation3 + $0x210] sm:$0xff]
      %v5450 = vld [vmem:[#allocation3 + $0x218] sm:$0xff]
      %v5451 = vld [vmem:[#allocation3 + $0x220] sm:$0xff]
      %v5452 = vld [vmem:[#allocation3 + $0x209] sm:$0xff]
      %v5453 = vld [vmem:[#allocation3 + $0x211] sm:$0xff]
      %v5454 = vld [vmem:[#allocation3 + $0x219] sm:$0xff]
      %v5455 = vld [vmem:[#allocation3 + $0x221] sm:$0xff]
      %v5456 = vmax.f32 %v5448, %v5452
      %v5457 = vmax.f32 %v5449, %v5453
      %v5458 = vmax.f32 %v5450, %v5454
      %v5459 = vmax.f32 %v5451, %v5455
      %v5460 = vmax.f32 %v5359, %v5439
      %v5461 = vmax.f32 %v5360, %v5440
      %v5462 = vmax.f32 %v5361, %v5441
      %v5463 = vmax.f32 %v5362, %v5442
      %v5464 = vmax.f32 %v5439, %v5443
      %v5465 = vmax.f32 %v5440, %v5444
      %v5466 = vmax.f32 %v5441, %v5445
      %v5467 = vmax.f32 %v5442, %v5446
      %v5468 = vmax.f32 %v5443, %v5447
      %v5469 = vmax.f32 %v5444, %v5456
      %v5470 = vmax.f32 %v5445, %v5457
      %v5471 = vmax.f32 %v5446, %v5458
      %v5472 = vmax.f32 %v5447, %v5459
      %v5473 = vld [vmem:[%s5 + $0x1a0] sm:$0xff]
      %v5474 = vld [vmem:[%s5 + $0x1a8] sm:$0xff]
      %v5475 = vld [vmem:[%s5 + $0x1b0] sm:$0xff]
      %v5476 = vld [vmem:[%s5 + $0x1b8] sm:$0xff]
      %v5477 = vld [vmem:[%s5 + $0x1c0] sm:$0xff]
      %v5478 = vld [vmem:[%s5 + $0x1c8] sm:$0xff]
      %v5479 = vld [vmem:[%s5 + $0x1d0] sm:$0xff]
      %v5480 = vld [vmem:[%s5 + $0x1d8] sm:$0xff]
      %v5481 = vld [vmem:[%s5 + $0x1e0] sm:$0xff]
      %v5482 = vld [vmem:[%s5 + $0x1e8] sm:$0xff]
      %v5483 = vld [vmem:[%s5 + $0x1f0] sm:$0xff]
      %v5484 = vld [vmem:[%s5 + $0x1f8] sm:$0xff]
      %v5485 = vld [vmem:[%s5 + $0x200] sm:$0xff]
      %v5486 = vmul.f32 %v5460, %v5473
      %v5487 = vmul.f32 %v5461, %v5474
      %v5488 = vmul.f32 %v5462, %v5475
      %v5489 = vmul.f32 %v5463, %v5476
      %v5490 = vmul.f32 %v5464, %v5477
      %v5491 = vmul.f32 %v5465, %v5478
      %v5492 = vmul.f32 %v5466, %v5479
      %v5493 = vmul.f32 %v5467, %v5480
      %v5494 = vmul.f32 %v5468, %v5481
      %v5495 = vmul.f32 %v5469, %v5482
      %v5496 = vmul.f32 %v5470, %v5483
      %v5497 = vmul.f32 %v5471, %v5484
      %v5498 = vmul.f32 %v5472, %v5485
      %v5499 = vadd.f32 %v5486, %v5487
      %v5500 = vadd.f32 %v5499, %v5488
      %v5501 = vadd.f32 %v5500, %v5489
      %v5502 = vadd.f32 %v5501, %v5490
      %v5503 = vadd.f32 %v5502, %v5491
      %v5504 = vadd.f32 %v5503, %v5492
      %v5505 = vadd.f32 %v5504, %v5493
      %v5506 = vadd.f32 %v5505, %v5494
      %v5507 = vadd.f32 %v5506, %v5495
      %v5508 = vadd.f32 %v5507, %v5496
      %v5509 = vadd.f32 %v5508, %v5497
      %v5510 = vadd.f32 %v5509, %v5498
      %v5511 = vrot.slane %v5510, 4
      %v5512 = vadd.f32 %v5510, %v5511
      %v5513 = vrot.slane %v5512, 2
      %v5514 = vadd.f32 %v5512, %v5513
      %v5515 = vrot.slane %v5514, 1
      %v5516 = vadd.f32 %v5514, %v5515
      %v5517 = vadd.f32 %v5420, %v5516
      %v5518 = vld [vmem:[#allocation3 + $0x228] sm:$0xff]
      %v5519 = vld [vmem:[#allocation3 + $0x230] sm:$0xff]
      %v5520 = vld [vmem:[#allocation3 + $0x238] sm:$0xff]
      %v5521 = vld [vmem:[#allocation3 + $0x240] sm:$0xff]
      %v5522 = vld [vmem:[#allocation3 + $0x248] sm:$0xff]
      %v5523 = vld [vmem:[#allocation3 + $0x250] sm:$0xff]
      %v5524 = vld [vmem:[#allocation3 + $0x258] sm:$0xff]
      %v5525 = vld [vmem:[#allocation3 + $0x260] sm:$0xff]
      %v5526 = vld [vmem:[#allocation3 + $0x268] sm:$0xff]
      %v5527 = vld [vmem:[#allocation3 + $0x229] sm:$0xff]
      %v5528 = vld [vmem:[#allocation3 + $0x231] sm:$0xff]
      %v5529 = vld [vmem:[#allocation3 + $0x239] sm:$0xff]
      %v5530 = vld [vmem:[#allocation3 + $0x241] sm:$0xff]
      %v5531 = vld [vmem:[#allocation3 + $0x249] sm:$0xff]
      %v5532 = vld [vmem:[#allocation3 + $0x251] sm:$0xff]
      %v5533 = vld [vmem:[#allocation3 + $0x259] sm:$0xff]
      %v5534 = vld [vmem:[#allocation3 + $0x261] sm:$0xff]
      %v5535 = vld [vmem:[#allocation3 + $0x269] sm:$0xff]
      %v5536 = vmax.f32 %v5518, %v5527
      %v5537 = vmax.f32 %v5519, %v5528
      %v5538 = vmax.f32 %v5520, %v5529
      %v5539 = vmax.f32 %v5521, %v5530
      %v5540 = vmax.f32 %v5522, %v5531
      %v5541 = vmax.f32 %v5523, %v5532
      %v5542 = vmax.f32 %v5524, %v5533
      %v5543 = vmax.f32 %v5525, %v5534
      %v5544 = vmax.f32 %v5526, %v5535
      %v5545 = vld [vmem:[#allocation3 + $0x270] sm:$0xff]
      %v5546 = vld [vmem:[#allocation3 + $0x278] sm:$0xff]
      %v5547 = vld [vmem:[#allocation3 + $0x280] sm:$0xff]
      %v5548 = vld [vmem:[#allocation3 + $0x288] sm:$0xff]
      %v5549 = vld [vmem:[#allocation3 + $0x271] sm:$0xff]
      %v5550 = vld [vmem:[#allocation3 + $0x279] sm:$0xff]
      %v5551 = vld [vmem:[#allocation3 + $0x281] sm:$0xff]
      %v5552 = vld [vmem:[#allocation3 + $0x289] sm:$0xff]
      %v5553 = vmax.f32 %v5545, %v5549
      %v5554 = vmax.f32 %v5546, %v5550
      %v5555 = vmax.f32 %v5547, %v5551
      %v5556 = vmax.f32 %v5548, %v5552
      %v5557 = vmax.f32 %v5456, %v5536
      %v5558 = vmax.f32 %v5457, %v5537
      %v5559 = vmax.f32 %v5458, %v5538
      %v5560 = vmax.f32 %v5459, %v5539
      %v5561 = vmax.f32 %v5536, %v5540
      %v5562 = vmax.f32 %v5537, %v5541
      %v5563 = vmax.f32 %v5538, %v5542
      %v5564 = vmax.f32 %v5539, %v5543
      %v5565 = vmax.f32 %v5540, %v5544
      %v5566 = vmax.f32 %v5541, %v5553
      %v5567 = vmax.f32 %v5542, %v5554
      %v5568 = vmax.f32 %v5543, %v5555
      %v5569 = vmax.f32 %v5544, %v5556
      %v5570 = vld [vmem:[%s5 + $0x208] sm:$0xff]
      %v5571 = vld [vmem:[%s5 + $0x210] sm:$0xff]
      %v5572 = vld [vmem:[%s5 + $0x218] sm:$0xff]
      %v5573 = vld [vmem:[%s5 + $0x220] sm:$0xff]
      %v5574 = vld [vmem:[%s5 + $0x228] sm:$0xff]
      %v5575 = vld [vmem:[%s5 + $0x230] sm:$0xff]
      %v5576 = vld [vmem:[%s5 + $0x238] sm:$0xff]
      %v5577 = vld [vmem:[%s5 + $0x240] sm:$0xff]
      %v5578 = vld [vmem:[%s5 + $0x248] sm:$0xff]
      %v5579 = vld [vmem:[%s5 + $0x250] sm:$0xff]
      %v5580 = vld [vmem:[%s5 + $0x258] sm:$0xff]
      %v5581 = vld [vmem:[%s5 + $0x260] sm:$0xff]
      %v5582 = vld [vmem:[%s5 + $0x268] sm:$0xff]
      %v5583 = vmul.f32 %v5557, %v5570
      %v5584 = vmul.f32 %v5558, %v5571
      %v5585 = vmul.f32 %v5559, %v5572
      %v5586 = vmul.f32 %v5560, %v5573
      %v5587 = vmul.f32 %v5561, %v5574
      %v5588 = vmul.f32 %v5562, %v5575
      %v5589 = vmul.f32 %v5563, %v5576
      %v5590 = vmul.f32 %v5564, %v5577
      %v5591 = vmul.f32 %v5565, %v5578
      %v5592 = vmul.f32 %v5566, %v5579
      %v5593 = vmul.f32 %v5567, %v5580
      %v5594 = vmul.f32 %v5568, %v5581
      %v5595 = vmul.f32 %v5569, %v5582
      %v5596 = vadd.f32 %v5583, %v5584
      %v5597 = vadd.f32 %v5596, %v5585
      %v5598 = vadd.f32 %v5597, %v5586
      %v5599 = vadd.f32 %v5598, %v5587
      %v5600 = vadd.f32 %v5599, %v5588
      %v5601 = vadd.f32 %v5600, %v5589
      %v5602 = vadd.f32 %v5601, %v5590
      %v5603 = vadd.f32 %v5602, %v5591
      %v5604 = vadd.f32 %v5603, %v5592
      %v5605 = vadd.f32 %v5604, %v5593
      %v5606 = vadd.f32 %v5605, %v5594
      %v5607 = vadd.f32 %v5606, %v5595
      %v5608 = vrot.slane %v5607, 4
      %v5609 = vadd.f32 %v5607, %v5608
      %v5610 = vrot.slane %v5609, 2
      %v5611 = vadd.f32 %v5609, %v5610
      %v5612 = vrot.slane %v5611, 1
      %v5613 = vadd.f32 %v5611, %v5612
      %v5614 = vadd.f32 %v5517, %v5613
      %v5615 = vld [vmem:[#allocation3 + $0x290] sm:$0xff]
      %v5616 = vld [vmem:[#allocation3 + $0x298] sm:$0xff]
      %v5617 = vld [vmem:[#allocation3 + $0x2a0] sm:$0xff]
      %v5618 = vld [vmem:[#allocation3 + $0x2a8] sm:$0xff]
      %v5619 = vld [vmem:[#allocation3 + $0x2b0] sm:$0xff]
      %v5620 = vld [vmem:[#allocation3 + $0x2b8] sm:$0xff]
      %v5621 = vld [vmem:[#allocation3 + $0x2c0] sm:$0xff]
      %v5622 = vld [vmem:[#allocation3 + $0x2c8] sm:$0xff]
      %v5623 = vld [vmem:[#allocation3 + $0x2d0] sm:$0xff]
      %v5624 = vld [vmem:[#allocation3 + $0x291] sm:$0xff]
      %v5625 = vld [vmem:[#allocation3 + $0x299] sm:$0xff]
      %v5626 = vld [vmem:[#allocation3 + $0x2a1] sm:$0xff]
      %v5627 = vld [vmem:[#allocation3 + $0x2a9] sm:$0xff]
      %v5628 = vld [vmem:[#allocation3 + $0x2b1] sm:$0xff]
      %v5629 = vld [vmem:[#allocation3 + $0x2b9] sm:$0xff]
      %v5630 = vld [vmem:[#allocation3 + $0x2c1] sm:$0xff]
      %v5631 = vld [vmem:[#allocation3 + $0x2c9] sm:$0xff]
      %v5632 = vld [vmem:[#allocation3 + $0x2d1] sm:$0xff]
      %v5633 = vmax.f32 %v5615, %v5624
      %v5634 = vmax.f32 %v5616, %v5625
      %v5635 = vmax.f32 %v5617, %v5626
      %v5636 = vmax.f32 %v5618, %v5627
      %v5637 = vmax.f32 %v5619, %v5628
      %v5638 = vmax.f32 %v5620, %v5629
      %v5639 = vmax.f32 %v5621, %v5630
      %v5640 = vmax.f32 %v5622, %v5631
      %v5641 = vmax.f32 %v5623, %v5632
      %v5642 = vld [vmem:[#allocation3 + $0x2d8] sm:$0xff]
      %v5643 = vld [vmem:[#allocation3 + $0x2e0] sm:$0xff]
      %v5644 = vld [vmem:[#allocation3 + $0x2e8] sm:$0xff]
      %v5645 = vld [vmem:[#allocation3 + $0x2f0] sm:$0xff]
      %v5646 = vld [vmem:[#allocation3 + $0x2d9] sm:$0xff]
      %v5647 = vld [vmem:[#allocation3 + $0x2e1] sm:$0xff]
      %v5648 = vld [vmem:[#allocation3 + $0x2e9] sm:$0xff]
      %v5649 = vld [vmem:[#allocation3 + $0x2f1] sm:$0xff]
      %v5650 = vmax.f32 %v5642, %v5646
      %v5651 = vmax.f32 %v5643, %v5647
      %v5652 = vmax.f32 %v5644, %v5648
      %v5653 = vmax.f32 %v5645, %v5649
      %v5654 = vmax.f32 %v5553, %v5633
      %v5655 = vmax.f32 %v5554, %v5634
      %v5656 = vmax.f32 %v5555, %v5635
      %v5657 = vmax.f32 %v5556, %v5636
      %v5658 = vmax.f32 %v5633, %v5637
      %v5659 = vmax.f32 %v5634, %v5638
      %v5660 = vmax.f32 %v5635, %v5639
      %v5661 = vmax.f32 %v5636, %v5640
      %v5662 = vmax.f32 %v5637, %v5641
      %v5663 = vmax.f32 %v5638, %v5650
      %v5664 = vmax.f32 %v5639, %v5651
      %v5665 = vmax.f32 %v5640, %v5652
      %v5666 = vmax.f32 %v5641, %v5653
      %v5667 = vld [vmem:[%s5 + $0x270] sm:$0xff]
      %v5668 = vld [vmem:[%s5 + $0x278] sm:$0xff]
      %v5669 = vld [vmem:[%s5 + $0x280] sm:$0xff]
      %v5670 = vld [vmem:[%s5 + $0x288] sm:$0xff]
      %v5671 = vld [vmem:[%s5 + $0x290] sm:$0xff]
      %v5672 = vld [vmem:[%s5 + $0x298] sm:$0xff]
      %v5673 = vld [vmem:[%s5 + $0x2a0] sm:$0xff]
      %v5674 = vld [vmem:[%s5 + $0x2a8] sm:$0xff]
      %v5675 = vld [vmem:[%s5 + $0x2b0] sm:$0xff]
      %v5676 = vld [vmem:[%s5 + $0x2b8] sm:$0xff]
      %v5677 = vld [vmem:[%s5 + $0x2c0] sm:$0xff]
      %v5678 = vld [vmem:[%s5 + $0x2c8] sm:$0xff]
      %v5679 = vld [vmem:[%s5 + $0x2d0] sm:$0xff]
      %v5680 = vmul.f32 %v5654, %v5667
      %v5681 = vmul.f32 %v5655, %v5668
      %v5682 = vmul.f32 %v5656, %v5669
      %v5683 = vmul.f32 %v5657, %v5670
      %v5684 = vmul.f32 %v5658, %v5671
      %v5685 = vmul.f32 %v5659, %v5672
      %v5686 = vmul.f32 %v5660, %v5673
      %v5687 = vmul.f32 %v5661, %v5674
      %v5688 = vmul.f32 %v5662, %v5675
      %v5689 = vmul.f32 %v5663, %v5676
      %v5690 = vmul.f32 %v5664, %v5677
      %v5691 = vmul.f32 %v5665, %v5678
      %v5692 = vmul.f32 %v5666, %v5679
      %v5693 = vadd.f32 %v5680, %v5681
      %v5694 = vadd.f32 %v5693, %v5682
      %v5695 = vadd.f32 %v5694, %v5683
      %v5696 = vadd.f32 %v5695, %v5684
      %v5697 = vadd.f32 %v5696, %v5685
      %v5698 = vadd.f32 %v5697, %v5686
      %v5699 = vadd.f32 %v5698, %v5687
      %v5700 = vadd.f32 %v5699, %v5688
      %v5701 = vadd.f32 %v5700, %v5689
      %v5702 = vadd.f32 %v5701, %v5690
      %v5703 = vadd.f32 %v5702, %v5691
      %v5704 = vadd.f32 %v5703, %v5692
      %v5705 = vrot.slane %v5704, 4
      %v5706 = vadd.f32 %v5704, %v5705
      %v5707 = vrot.slane %v5706, 2
      %v5708 = vadd.f32 %v5706, %v5707
      %v5709 = vrot.slane %v5708, 1
      %v5710 = vadd.f32 %v5708, %v5709
      %v5711 = vadd.f32 %v5614, %v5710
      %5712 = vadd.xlane.f32.xlu0 %v5711
      %v5713 = vpop.xlane.xlu0 %5712
      %v5714 = vadd.f32 %v5713, %v282
      %vm5715 = vcmask 0
      %5716 = vst.msk [vmem:[%s276] sm:$0x1] %vm5715, %v5714
      %p5717 = scmp.lt.s32.totalorder %s20, 1
      %s5718 = scalar_select %p5717, %s20, 1
      %s5719 = scalar_lea.vmem %s7, %s5718
      // Predicated region
      $region49: #{net_forward_pallas.1} parent=47 // pred_check
        %p5720 = pneg %p190
      $region50: #{net_forward_pallas.1} parent=47 // pred_check_branch
        %5722 = sbr.rel (%p5720) target = $region52
      $region51: #{net_forward_pallas.1} parent=47 // pred_region
        _
      $region52: #{net_forward_pallas.1} parent=47 // pred_fallthru
        _
    $region48: #{net_forward_pallas.1} parent=5 // pred_fallthru
      _
    %p5723 = scmp.le.s32.totalorder 2, %s15
    // Predicated region
    $region53: #{net_forward_pallas.1} parent=5 // pred_check
      %p5724 = pneg %p5723
    $region54: #{net_forward_pallas.1} parent=5 // pred_check_branch
      %5726 = sbr.rel (%p5724) target = $region56
    $region55: #{net_forward_pallas.1} parent=5 // pred_region
      %s5727 = ssub.s32 %s15, 2
      // Predicated region
      $region57: #{net_forward_pallas.1} parent=55 // pred_check
        %p5728 = pneg %p196
      $region58: #{net_forward_pallas.1} parent=55 // pred_check_branch
        %5730 = sbr.rel (%p5728) target = $region60
      $region59: #{net_forward_pallas.1} parent=55 // pred_region
        %p5731 = scmp.lt.s32.totalorder %s21, 1
        %s5732 = scalar_select %p5731, %s21, 1
        %s5733 = scalar_lea.vmem %s7, %s5732
      $region60: #{net_forward_pallas.1} parent=55 // pred_fallthru
        _
    $region56: #{net_forward_pallas.1} parent=5 // pred_fallthru
      _
  $region6: #{net_forward_pallas.1} parent=0 // loop_footer
    %s19 = sadd.s32 1, %s15
  $region7: #{net_forward_pallas.1} parent=0 // loop_footer_branch
    %14 = sbr.rel target = $region3
  $region8: #{net_forward_pallas.1} parent=0 // loop_exit
    _

</llo_original>
